<compile_context>
chip_gen: v6e
topology: v6e:2x2x1
jax: 0.10.0
libtpu: 0.0.40
codegen_flags: <defaults>
</compile_context>

<pallas_src>
import functools

import jax
import jax.numpy as jnp
import numpy as np
from jax.experimental import pallas as pl
from jax.experimental.pallas import tpu as pltpu


# ---------------------------------------------------------------------------
# K1: GroupNorm (affine=False) on the native NCHW flat view (N*G, Cg*H*W).
# ---------------------------------------------------------------------------
def _group_norm_kernel(x_ref, o_ref, *, eps):
    x = x_ref[...].astype(jnp.float32)                       # (T, L)
    mean = jnp.mean(x, axis=1, keepdims=True)
    xc = x - mean
    var = jnp.mean(xc * xc, axis=1, keepdims=True)           # biased var (PyTorch)
    o_ref[...] = (xc * jax.lax.rsqrt(var + eps)).astype(o_ref.dtype)


def _pick_row_tile(rows, bytes_per_row, target_bytes=4 << 20):
    """Largest multiple-of-8 divisor of `rows` whose block fits `target_bytes`,
    preferring a grid of >= 2 steps (keeps both v7x TensorCores busy)."""
    if rows % 8 != 0:
        return rows                               # full-dim block is always legal
    divisors = [t for t in range(8, rows + 1, 8) if rows % t == 0]
    fitting = [t for t in divisors if t * bytes_per_row <= target_bytes]
    if not fitting:
        return 8
    multi_step = [t for t in fitting if rows // t >= 2]
    return max(multi_step) if multi_step else max(fitting)


def group_norm(x, num_groups, eps=1e-5):
    n, c, h, w = x.shape
    g = num_groups
    length = (c // g) * h * w
    rows = n * g
    x2 = x.reshape(rows, length)                  # pure view of NCHW, no transpose
    tile = _pick_row_tile(rows, length * x2.dtype.itemsize)
    out = pl.pallas_call(
        functools.partial(_group_norm_kernel, eps=eps),
        out_shape=jax.ShapeDtypeStruct((rows, length), x.dtype),
        grid_spec=pltpu.PrefetchScalarGridSpec(
            num_scalar_prefetch=0,
            grid=(rows // tile,),
            in_specs=[pl.BlockSpec((tile, length), lambda i: (i, 0))],
            out_specs=pl.BlockSpec((tile, length), lambda i: (i, 0)),
        ),
        compiler_params=pltpu.CompilerParams(dimension_semantics=("parallel",)),
    )(x2)
    return out.reshape(n, c, h, w)


# ---------------------------------------------------------------------------
# Host-side constant operators (tiny, shape-static numpy).
# ---------------------------------------------------------------------------
def _interp_matrix_np(out_size, in_size):
    """(out, in) 1-D linear-interp matrix, align_corners=True (PyTorch)."""
    m = np.zeros((out_size, in_size), np.float32)
    if out_size == 1 or in_size == 1:
        m[:, 0] = 1.0
        return m
    src = np.arange(out_size) * (in_size - 1) / (out_size - 1)
    i0 = np.clip(np.floor(src).astype(np.int64), 0, in_size - 2)
    frac = (src - i0).astype(np.float32)
    m[np.arange(out_size), i0] = 1.0 - frac
    m[np.arange(out_size), i0 + 1] += frac
    return m


def _bilinear_kron_t(out_h, out_w, in_h, in_w, dtype):
    """(Hy*Wy, H*W) operator so that  y_up_flat = y_flat @ M^T  is the
    align_corners=True bilinear resize (M = kron(A_h, A_w))."""
    ah = _interp_matrix_np(out_h, in_h)                     # (H, Hy)
    aw = _interp_matrix_np(out_w, in_w)                     # (W, Wy)
    return jnp.asarray(np.kron(ah, aw).T, dtype)            # (Hy*Wy, H*W)


def _conv_shift_masks(h, w):
    """(9, H*W) validity masks for the 9 taps of a 3x3 'same' conv, indexed
    by flat output position r = hh*W + ww."""
    hh = np.repeat(np.arange(h), w)
    ww = np.tile(np.arange(w), h)
    m = np.zeros((9, h * w), np.float32)
    for tap in range(9):
        dy, dx = tap // 3, tap % 3
        valid = ((hh + dy - 1 >= 0) & (hh + dy - 1 < h) &
                 (ww + dx - 1 >= 0) & (ww + dx - 1 < w))
        m[tap] = valid.astype(np.float32)
    return jnp.asarray(m)


# ---------------------------------------------------------------------------
# KA: fused bilinear resize + 3x3 conv (3 -> 128) + bias + LeakyReLU.
#     Output: feat in channel-major flat layout (N, 128, H*W).
# ---------------------------------------------------------------------------
def _resize_conv_lrelu_kernel(y_ref, mt_ref, w_ref, b_ref, msk_ref, o_ref,
                              col_ref, *, W, slope):
    ci = y_ref.shape[1]                                      # 3
    hw = o_ref.shape[2]
    # Bilinear (align_corners=True) resize as one lane-dense matmul.
    yf = y_ref[0].astype(jnp.float32)                        # (ci, Hy*Wy)
    yup = jnp.dot(yf, mt_ref[...].astype(jnp.float32),
                  preferred_element_type=jnp.float32)        # (ci, H*W)
    # im2col of the 9 taps via lane rolls + precomputed boundary masks;
    # each (ci, H*W) block is written once into the scratch.
    for tap in range(9):
        dy, dx = tap // 3, tap % 3
        s = (dy - 1) * W + (dx - 1)                          # flat source offset
        if s == 0:
            col_ref[tap * ci:(tap + 1) * ci, :] = yup
        else:
            shifted = pltpu.roll(yup, (-s) % hw, axis=1)     # out[r] = yup[r + s]
            col_ref[tap * ci:(tap + 1) * ci, :] = (
                shifted * msk_ref[tap:tap + 1, :].astype(jnp.float32))
    # One (Cmid, 9*ci) @ (9*ci, H*W) MXU matmul + bias + LeakyReLU, stored once.
    acc = jnp.dot(w_ref[...].astype(jnp.float32), col_ref[...],
                  preferred_element_type=jnp.float32)        # (Cmid, H*W)
    acc = acc + b_ref[...].astype(jnp.float32)               # (Cmid, 1) broadcast
    acc = jnp.where(acc >= 0.0, acc, slope * acc)
    o_ref[0] = acc.astype(o_ref.dtype)


def resize_conv_lrelu(y_flat, mt, w1r, b1, mask9, *, H, W, slope=0.2):
    n, ci, hywy = y_flat.shape
    cmid = w1r.shape[0]
    hw = H * W
    return pl.pallas_call(
        functools.partial(_resize_conv_lrelu_kernel, W=W, slope=slope),
        out_shape=jax.ShapeDtypeStruct((n, cmid, hw), y_flat.dtype),
        grid_spec=pltpu.PrefetchScalarGridSpec(
            num_scalar_prefetch=0,
            grid=(n,),
            in_specs=[
                pl.BlockSpec((1, ci, hywy), lambda i: (i, 0, 0)),
                pl.BlockSpec((hywy, hw), lambda i: (0, 0)),
                pl.BlockSpec((cmid, 9 * ci), lambda i: (0, 0)),
                pl.BlockSpec((cmid, 1), lambda i: (0, 0)),
                pl.BlockSpec((9, hw), lambda i: (0, 0)),
            ],
            out_specs=pl.BlockSpec((1, cmid, hw), lambda i: (i, 0, 0)),
            scratch_shapes=[pltpu.VMEM((9 * ci, hw), jnp.float32)],
        ),
        compiler_params=pltpu.CompilerParams(dimension_semantics=("parallel",)),
    )(y_flat, mt, w1r, b1, mask9)


# ---------------------------------------------------------------------------
# KB: fused conv_gamma + conv_beta (one concatenated weight, one matmul with
#     contraction depth 9*128 = 1152) + SPADE modulation, all in (C, H*W).
# ---------------------------------------------------------------------------
def _spade_modulate_kernel(f_ref, w_ref, b_ref, msk_ref, nz_ref, o_ref,
                           col_ref, *, W):
    cmid = f_ref.shape[1]                                    # 128
    hw = f_ref.shape[2]
    c_out = o_ref.shape[1]
    feat = f_ref[0].astype(jnp.float32)                      # (Cmid, H*W)
    # Build the (9*Cmid, H*W) im2col once; reused by gamma AND beta via the
    # concatenated weight (single MXU matmul, no per-tap slice+reshape copies).
    for tap in range(9):
        dy, dx = tap // 3, tap % 3
        s = (dy - 1) * W + (dx - 1)
        if s == 0:
            col_ref[tap * cmid:(tap + 1) * cmid, :] = feat
        else:
            shifted = pltpu.roll(feat, (-s) % hw, axis=1)    # out[r] = feat[r + s]
            col_ref[tap * cmid:(tap + 1) * cmid, :] = (
                shifted * msk_ref[tap:tap + 1, :].astype(jnp.float32))
    gb = jnp.dot(w_ref[...].astype(jnp.float32), col_ref[...],
                 preferred_element_type=jnp.float32)         # (2C, H*W)
    gb = gb + b_ref[...].astype(jnp.float32)                 # (2C, 1) broadcast
    gamma = gb[:c_out, :]
    beta = gb[c_out:, :]
    nz = nz_ref[0].astype(jnp.float32)                       # (C, H*W)
    o_ref[0] = (nz * (1.0 + gamma) + beta).astype(o_ref.dtype)


def spade_modulate(feat, wcat, bcat, mask9, nz_flat, *, W):
    n, cmid, hw = feat.shape
    c_out = nz_flat.shape[1]
    return pl.pallas_call(
        functools.partial(_spade_modulate_kernel, W=W),
        out_shape=jax.ShapeDtypeStruct((n, c_out, hw), nz_flat.dtype),
        grid_spec=pltpu.PrefetchScalarGridSpec(
            num_scalar_prefetch=0,
            grid=(n,),
            in_specs=[
                pl.BlockSpec((1, cmid, hw), lambda i: (i, 0, 0)),
                pl.BlockSpec((2 * c_out, 9 * cmid), lambda i: (0, 0)),
                pl.BlockSpec((2 * c_out, 1), lambda i: (0, 0)),
                pl.BlockSpec((9, hw), lambda i: (0, 0)),
                pl.BlockSpec((1, c_out, hw), lambda i: (i, 0, 0)),
            ],
            out_specs=pl.BlockSpec((1, c_out, hw), lambda i: (i, 0, 0)),
            scratch_shapes=[pltpu.VMEM((9 * cmid, hw), jnp.float32)],
        ),
        compiler_params=pltpu.CompilerParams(dimension_semantics=("parallel",)),
    )(feat, wcat, bcat, mask9, nz_flat)


# ---------------------------------------------------------------------------
# Full Spade forward (GroupNorm branch).  Only free reshapes in the wrapper.
# ---------------------------------------------------------------------------
def spade_forward(x, y, params, num_groups=16, eps=1e-5):
    """x: (N, C, H, W), y: (N, 3, Hy, Wy); conv params in PyTorch layout."""
    n, c, h, w = x.shape
    g = num_groups
    while c % g != 0:                             # matches the PyTorch __init__
        g -= 1

    normalized = group_norm(x, g, eps)                               # K1
    nz_flat = normalized.reshape(n, c, h * w)                        # free view

    hy, wy = y.shape[-2:]
    ci = y.shape[1]
    cmid = params["w1"].shape[0]

    mt = _bilinear_kron_t(h, w, hy, wy, y.dtype)                     # (Hy*Wy, H*W)
    mask9 = _conv_shift_masks(h, w)                                  # (9, H*W)
    y_flat = y.reshape(n, ci, hy * wy)                               # free view

    # Weight prep (tiny, one matmul-ready layout per conv).
    w1r = jnp.transpose(params["w1"], (0, 2, 3, 1)).reshape(cmid, 9 * ci)
    b1 = params["b1"].reshape(cmid, 1)
    feat = resize_conv_lrelu(y_flat, mt, w1r, b1, mask9,
                             H=h, W=w, slope=0.2)                    # KA (N,128,H*W)

    wcat = jnp.concatenate([params["w_gamma"], params["w_beta"]], axis=0)
    wcat = jnp.transpose(wcat, (0, 2, 3, 1)).reshape(2 * c, 9 * cmid)
    bcat = jnp.concatenate([params["b_gamma"], params["b_beta"]],
                           axis=0).reshape(2 * c, 1)

    out_flat = spade_modulate(feat, wcat, bcat, mask9, nz_flat, W=w)  # KB (N,C,H*W)
    return out_flat.reshape(n, c, h, w)


# ---------------------------------------------------------------------------
# Plain-JAX reference (independent path: lax.conv + gather-based resize).
# ---------------------------------------------------------------------------
def _reference_group_norm(x, num_groups, eps=1e-5):
    n, c, h, w = x.shape
    xg = x.reshape(n, num_groups, c // num_groups, h, w)
    mean = xg.mean(axis=(2, 3, 4), keepdims=True)
    var = ((xg - mean) ** 2).mean(axis=(2, 3, 4), keepdims=True)
    return ((xg - mean) / jnp.sqrt(var + eps)).reshape(n, c, h, w)


def _reference_bilinear(y, out_h, out_w):
    _, _, in_h, in_w = y.shape
    hs = jnp.linspace(0.0, in_h - 1.0, out_h)
    ws = jnp.linspace(0.0, in_w - 1.0, out_w)
    h0 = jnp.clip(jnp.floor(hs).astype(jnp.int32), 0, max(in_h - 2, 0))
    w0 = jnp.clip(jnp.floor(ws).astype(jnp.int32), 0, max(in_w - 2, 0))
    hf = (hs - h0)[None, None, :, None]
    wf = (ws - w0)[None, None, None, :]
    v00 = y[:, :, h0, :][:, :, :, w0]
    v01 = y[:, :, h0, :][:, :, :, w0 + 1]
    v10 = y[:, :, h0 + 1, :][:, :, :, w0]
    v11 = y[:, :, h0 + 1, :][:, :, :, w0 + 1]
    top = v00 * (1.0 - wf) + v01 * wf
    bot = v10 * (1.0 - wf) + v11 * wf
    return top * (1.0 - hf) + bot * hf


def _reference_spade(x, y, params, num_groups=16, eps=1e-5):
    n, c, h, w = x.shape
    g = num_groups
    while c % g != 0:
        g -= 1
    normalized = _reference_group_norm(x, g, eps)
    y_up = _reference_bilinear(y, h, w)

    def conv3x3(v, wgt, b):
        o = jax.lax.conv_general_dilated(
            v, wgt, window_strides=(1, 1), padding=((1, 1), (1, 1)),
            dimension_numbers=("NCHW", "OIHW", "NCHW"))
        return o + b[None, :, None, None]

    feat = conv3x3(y_up, params["w1"], params["b1"])
    feat = jnp.where(feat >= 0.0, feat, 0.2 * feat)
    gamma = conv3x3(feat, params["w_gamma"], params["b_gamma"])
    beta = conv3x3(feat, params["w_beta"], params["b_beta"])
    return normalized * (1.0 + gamma) + beta


if __name__ == "__main__":
    key = jax.random.PRNGKey(0)
    kx, ky, k1, k2, k3, k4, k5, k6 = jax.random.split(key, 8)

    # num_features=32 (-> 16 groups of 2), x is a (2, 32, 16, 16) NCHW feature
    # map, y a (2, 3, 8, 8) RGB-like guidance map upsampled to 16x16.
    N, C, H, W = 2, 32, 16, 16
    HY, WY = 8, 8
    x = jax.random.normal(kx, (N, C, H, W), jnp.float32)
    y = jax.random.normal(ky, (N, 3, HY, WY), jnp.float32)

    def _uniform(k, shape, fan_in):
        bound = 1.0 / float(np.sqrt(fan_in))
        return jax.random.uniform(k, shape, jnp.float32, -bound, bound)

    # Conv parameters in PyTorch layout: weight (Cout, Cin, 3, 3), bias (Cout,).
    params = {
        "w1": _uniform(k1, (128, 3, 3, 3), 3 * 9),
        "b1": _uniform(k2, (128,), 3 * 9),
        "w_gamma": _uniform(k3, (C, 128, 3, 3), 128 * 9),
        "b_gamma": _uniform(k4, (C,), 128 * 9),
        "w_beta": _uniform(k5, (C, 128, 3, 3), 128 * 9),
        "b_beta": _uniform(k6, (C,), 128 * 9),
    }

    out = jax.jit(spade_forward)(x, y, params)
    jax.block_until_ready(out)
    assert out.shape == (N, C, H, W)

    # GroupNorm sub-check (no matmuls involved -> tight tolerance).
    gn = group_norm(x, 16)
    gn_ref = _reference_group_norm(x, 16)
    assert jnp.allclose(gn, gn_ref, atol=1e-4, rtol=1e-4), "group-norm mismatch"

    # End-to-end check against the plain-JAX / lax.conv reference.  Tolerance
    # covers MXU multi-pass f32 rounding differences vs XLA's convolution.
    ref = _reference_spade(x, y, params, num_groups=16)
    max_err = float(jnp.max(jnp.abs(out - ref)))
    assert jnp.allclose(out, ref, atol=5e-3, rtol=5e-3), (
        "spade output mismatch, max|err|=%g" % max_err)

    print("KERNEL_OK")
</pallas_src>

<mosaic_0001>
module attributes {stable_mosaic.version = 11 : i64} {
  func.func @_group_norm_kernel(%arg0: i32, %arg1: memref<16x512xf32, #tpu.memory_space<vmem>>, %arg2: memref<16x512xf32, #tpu.memory_space<vmem>>) attributes {dimension_semantics = [#tpu.dimension_semantics<parallel>], iteration_bounds = array<i64: 2>, scalar_prefetch = 0 : i64, scratch_operands = 0 : i64, tpu.core_type = #tpu.core_type<tc>, window_params = [{transform_indices = @transform_0, window_bounds = array<i64: 16, 512>}, {transform_indices = @transform_1, window_bounds = array<i64: 16, 512>}]} {
    %c0 = arith.constant 0 : index
    %c0_0 = arith.constant 0 : index
    %0 = vector.load %arg1[%c0, %c0_0] : memref<16x512xf32, #tpu.memory_space<vmem>>, vector<16x512xf32>
    %cst = arith.constant dense<0.000000e+00> : vector<16xf32>
    %1 = vector.multi_reduction <add>, %0, %cst [1] : vector<16x512xf32> to vector<16xf32>
    %2 = vector.shape_cast %1 : vector<16xf32> to vector<16x1xf32>
    %cst_1 = arith.constant 5.120000e+02 : f32
    %3 = vector.broadcast %cst_1 : f32 to vector<16x1xf32>
    %4 = arith.divf %2, %3 : vector<16x1xf32>
    %5 = vector.broadcast %4 : vector<16x1xf32> to vector<16x512xf32>
    %6 = arith.subf %0, %5 : vector<16x512xf32>
    %7 = arith.mulf %6, %6 : vector<16x512xf32>
    %cst_2 = arith.constant dense<0.000000e+00> : vector<16xf32>
    %8 = vector.multi_reduction <add>, %7, %cst_2 [1] : vector<16x512xf32> to vector<16xf32>
    %9 = vector.shape_cast %8 : vector<16xf32> to vector<16x1xf32>
    %cst_3 = arith.constant 5.120000e+02 : f32
    %10 = vector.broadcast %cst_3 : f32 to vector<16x1xf32>
    %11 = arith.divf %9, %10 : vector<16x1xf32>
    %cst_4 = arith.constant 9.99999974E-6 : f32
    %12 = vector.broadcast %cst_4 : f32 to vector<16x1xf32>
    %13 = arith.addf %11, %12 : vector<16x1xf32>
    %14 = math.rsqrt %13 : vector<16x1xf32>
    %15 = vector.broadcast %14 : vector<16x1xf32> to vector<16x512xf32>
    %16 = arith.mulf %6, %15 : vector<16x512xf32>
    %c0_5 = arith.constant 0 : index
    %c0_6 = arith.constant 0 : index
    %17 = vector.load %arg2[%c0_5, %c0_6] : memref<16x512xf32, #tpu.memory_space<vmem>>, vector<16x512xf32>
    tpu.vector_store %arg2[%c0_5, %c0_6], %16 {strides = array<i32>} : memref<16x512xf32, #tpu.memory_space<vmem>>, vector<16x512xf32>,
    return
  }
  func.func @transform_0(%arg0: i32) -> (i32, i32) {
    %c0_i32 = arith.constant 0 : i32
    %c0_i32_0 = arith.constant 0 : i32
    return %arg0, %c0_i32 : i32, i32
  }
  func.func @transform_1(%arg0: i32) -> (i32, i32) {
    %c0_i32 = arith.constant 0 : i32
    %c0_i32_0 = arith.constant 0 : i32
    return %arg0, %c0_i32 : i32, i32
  }
}

module attributes {stable_mosaic.version = 11 : i64} {
  func.func @_resize_conv_lrelu_kernel(%arg0: i32, %arg1: memref<1x3x64xf32, #tpu.memory_space<vmem>>, %arg2: memref<64x256xf32, #tpu.memory_space<vmem>>, %arg3: memref<128x27xf32, #tpu.memory_space<vmem>>, %arg4: memref<128x1xf32, #tpu.memory_space<vmem>>, %arg5: memref<9x256xf32, #tpu.memory_space<vmem>>, %arg6: memref<1x128x256xf32, #tpu.memory_space<vmem>>, %arg7: memref<27x256xf32, #tpu.memory_space<vmem>>) attributes {dimension_semantics = [#tpu.dimension_semantics<parallel>], iteration_bounds = array<i64: 2>, scalar_prefetch = 0 : i64, scratch_operands = 1 : i64, tpu.core_type = #tpu.core_type<tc>, window_params = [{transform_indices = @transform_0, window_bounds = array<i64: 1, 3, 64>}, {pipeline_mode = #tpu.pipeline_mode<synchronous>, transform_indices = @transform_1, window_bounds = array<i64: 64, 256>}, {pipeline_mode = #tpu.pipeline_mode<synchronous>, transform_indices = @transform_2, window_bounds = array<i64: 128, 27>}, {pipeline_mode = #tpu.pipeline_mode<synchronous>, transform_indices = @transform_3, window_bounds = array<i64: 128, 1>}, {pipeline_mode = #tpu.pipeline_mode<synchronous>, transform_indices = @transform_4, window_bounds = array<i64: 9, 256>}, {transform_indices = @transform_5, window_bounds = array<i64: 1, 128, 256>}]} {
    %c0 = arith.constant 0 : index
    %c0_0 = arith.constant 0 : index
    %c0_1 = arith.constant 0 : index
    %0 = vector.load %arg1[%c0, %c0_0, %c0_1] : memref<1x3x64xf32, #tpu.memory_space<vmem>>, vector<1x3x64xf32>
    %1 = vector.shape_cast %0 : vector<1x3x64xf32> to vector<3x64xf32>
    %c0_2 = arith.constant 0 : index
    %c0_3 = arith.constant 0 : index
    %2 = vector.load %arg2[%c0_2, %c0_3] : memref<64x256xf32, #tpu.memory_space<vmem>>, vector<64x256xf32>
    %cst = arith.constant dense<0.000000e+00> : vector<3x256xf32>
    %3 = tpu.matmul %1, %2, %cst {dimension_numbers = #tpu.dot_dimension_numbers<[1], [0], [0], [1], [0, 0, 1, 1], [], []>} : vector<3x64xf32>, vector<64x256xf32>, vector<3x256xf32> -> vector<3x256xf32>
    %c17_i32 = arith.constant 17 : i32
    %4 = tpu.dynamic_rotate %3 by %c17_i32 dim 1 : vector<3x256xf32>, i32 -> vector<3x256xf32>
    %c0_4 = arith.constant 0 : index
    %c0_5 = arith.constant 0 : index
    %5 = vector.load %arg5[%c0_4, %c0_5] : memref<9x256xf32, #tpu.memory_space<vmem>>, vector<1x256xf32>
    %6 = vector.broadcast %5 : vector<1x256xf32> to vector<3x256xf32>
    %7 = arith.mulf %4, %6 : vector<3x256xf32>
    %c0_6 = arith.constant 0 : index
    %c0_7 = arith.constant 0 : index
    %8 = vector.load %arg7[%c0_6, %c0_7] : memref<27x256xf32, #tpu.memory_space<vmem>>, vector<3x256xf32>
    tpu.vector_store %arg7[%c0_6, %c0_7], %7 {strides = array<i32>} : memref<27x256xf32, #tpu.memory_space<vmem>>, vector<3x256xf32>,
    %c16_i32 = arith.constant 16 : i32
    %9 = tpu.dynamic_rotate %3 by %c16_i32 dim 1 : vector<3x256xf32>, i32 -> vector<3x256xf32>
    %c1 = arith.constant 1 : index
    %c0_8 = arith.constant 0 : index
    %10 = vector.load %arg5[%c1, %c0_8] : memref<9x256xf32, #tpu.memory_space<vmem>>, vector<1x256xf32>
    %11 = vector.broadcast %10 : vector<1x256xf32> to vector<3x256xf32>
    %12 = arith.mulf %9, %11 : vector<3x256xf32>
    %c3 = arith.constant 3 : index
    %c0_9 = arith.constant 0 : index
    %13 = vector.load %arg7[%c3, %c0_9] : memref<27x256xf32, #tpu.memory_space<vmem>>, vector<3x256xf32>
    tpu.vector_store %arg7[%c3, %c0_9], %12 {strides = array<i32>} : memref<27x256xf32, #tpu.memory_space<vmem>>, vector<3x256xf32>,
    %c15_i32 = arith.constant 15 : i32
    %14 = tpu.dynamic_rotate %3 by %c15_i32 dim 1 : vector<3x256xf32>, i32 -> vector<3x256xf32>
    %c2 = arith.constant 2 : index
    %c0_10 = arith.constant 0 : index
    %15 = vector.load %arg5[%c2, %c0_10] : memref<9x256xf32, #tpu.memory_space<vmem>>, vector<1x256xf32>
    %16 = vector.broadcast %15 : vector<1x256xf32> to vector<3x256xf32>
    %17 = arith.mulf %14, %16 : vector<3x256xf32>
    %c6 = arith.constant 6 : index
    %c0_11 = arith.constant 0 : index
    %18 = vector.load %arg7[%c6, %c0_11] : memref<27x256xf32, #tpu.memory_space<vmem>>, vector<3x256xf32>
    tpu.vector_store %arg7[%c6, %c0_11], %17 {strides = array<i32>} : memref<27x256xf32, #tpu.memory_space<vmem>>, vector<3x256xf32>,
    %c1_i32 = arith.constant 1 : i32
    %19 = tpu.dynamic_rotate %3 by %c1_i32 dim 1 : vector<3x256xf32>, i32 -> vector<3x256xf32>
    %c3_12 = arith.constant 3 : index
    %c0_13 = arith.constant 0 : index
    %20 = vector.load %arg5[%c3_12, %c0_13] : memref<9x256xf32, #tpu.memory_space<vmem>>, vector<1x256xf32>
    %21 = vector.broadcast %20 : vector<1x256xf32> to vector<3x256xf32>
    %22 = arith.mulf %19, %21 : vector<3x256xf32>
    %c9 = arith.constant 9 : index
    %c0_14 = arith.constant 0 : index
    %23 = vector.load %arg7[%c9, %c0_14] : memref<27x256xf32, #tpu.memory_space<vmem>>, vector<3x256xf32>
    tpu.vector_store %arg7[%c9, %c0_14], %22 {strides = array<i32>} : memref<27x256xf32, #tpu.memory_space<vmem>>, vector<3x256xf32>,
    %c12 = arith.constant 12 : index
    %c0_15 = arith.constant 0 : index
    %24 = vector.load %arg7[%c12, %c0_15] : memref<27x256xf32, #tpu.memory_space<vmem>>, vector<3x256xf32>
    tpu.vector_store %arg7[%c12, %c0_15], %3 {strides = array<i32>} : memref<27x256xf32, #tpu.memory_space<vmem>>, vector<3x256xf32>,
    %c255_i32 = arith.constant 255 : i32
    %25 = tpu.dynamic_rotate %3 by %c255_i32 dim 1 : vector<3x256xf32>, i32 -> vector<3x256xf32>
    %c5 = arith.constant 5 : index
    %c0_16 = arith.constant 0 : index
    %26 = vector.load %arg5[%c5, %c0_16] : memref<9x256xf32, #tpu.memory_space<vmem>>, vector<1x256xf32>
    %27 = vector.broadcast %26 : vector<1x256xf32> to vector<3x256xf32>
    %28 = arith.mulf %25, %27 : vector<3x256xf32>
    %c15 = arith.constant 15 : index
    %c0_17 = arith.constant 0 : index
    %29 = vector.load %arg7[%c15, %c0_17] : memref<27x256xf32, #tpu.memory_space<vmem>>, vector<3x256xf32>
    tpu.vector_store %arg7[%c15, %c0_17], %28 {strides = array<i32>} : memref<27x256xf32, #tpu.memory_space<vmem>>, vector<3x256xf32>,
    %c241_i32 = arith.constant 241 : i32
    %30 = tpu.dynamic_rotate %3 by %c241_i32 dim 1 : vector<3x256xf32>, i32 -> vector<3x256xf32>
    %c6_18 = arith.constant 6 : index
    %c0_19 = arith.constant 0 : index
    %31 = vector.load %arg5[%c6_18, %c0_19] : memref<9x256xf32, #tpu.memory_space<vmem>>, vector<1x256xf32>
    %32 = vector.broadcast %31 : vector<1x256xf32> to vector<3x256xf32>
    %33 = arith.mulf %30, %32 : vector<3x256xf32>
    %c18 = arith.constant 18 : index
    %c0_20 = arith.constant 0 : index
    %34 = vector.load %arg7[%c18, %c0_20] : memref<27x256xf32, #tpu.memory_space<vmem>>, vector<3x256xf32>
    tpu.vector_store %arg7[%c18, %c0_20], %33 {strides = array<i32>} : memref<27x256xf32, #tpu.memory_space<vmem>>, vector<3x256xf32>,
    %c240_i32 = arith.constant 240 : i32
    %35 = tpu.dynamic_rotate %3 by %c240_i32 dim 1 : vector<3x256xf32>, i32 -> vector<3x256xf32>
    %c7 = arith.constant 7 : index
    %c0_21 = arith.constant 0 : index
    %36 = vector.load %arg5[%c7, %c0_21] : memref<9x256xf32, #tpu.memory_space<vmem>>, vector<1x256xf32>
    %37 = vector.broadcast %36 : vector<1x256xf32> to vector<3x256xf32>
    %38 = arith.mulf %35, %37 : vector<3x256xf32>
    %c21 = arith.constant 21 : index
    %c0_22 = arith.constant 0 : index
    %39 = vector.load %arg7[%c21, %c0_22] : memref<27x256xf32, #tpu.memory_space<vmem>>, vector<3x256xf32>
    tpu.vector_store %arg7[%c21, %c0_22], %38 {strides = array<i32>} : memref<27x256xf32, #tpu.memory_space<vmem>>, vector<3x256xf32>,
    %c239_i32 = arith.constant 239 : i32
    %40 = tpu.dynamic_rotate %3 by %c239_i32 dim 1 : vector<3x256xf32>, i32 -> vector<3x256xf32>
    %c8 = arith.constant 8 : index
    %c0_23 = arith.constant 0 : index
    %41 = vector.load %arg5[%c8, %c0_23] : memref<9x256xf32, #tpu.memory_space<vmem>>, vector<1x256xf32>
    %42 = vector.broadcast %41 : vector<1x256xf32> to vector<3x256xf32>
    %43 = arith.mulf %40, %42 : vector<3x256xf32>
    %c24 = arith.constant 24 : index
    %c0_24 = arith.constant 0 : index
    %44 = vector.load %arg7[%c24, %c0_24] : memref<27x256xf32, #tpu.memory_space<vmem>>, vector<3x256xf32>
    tpu.vector_store %arg7[%c24, %c0_24], %43 {strides = array<i32>} : memref<27x256xf32, #tpu.memory_space<vmem>>, vector<3x256xf32>,
    %c0_25 = arith.constant 0 : index
    %c0_26 = arith.constant 0 : index
    %45 = vector.load %arg3[%c0_25, %c0_26] : memref<128x27xf32, #tpu.memory_space<vmem>>, vector<128x27xf32>
    %c0_27 = arith.constant 0 : index
    %c0_28 = arith.constant 0 : index
    %46 = vector.load %arg7[%c0_27, %c0_28] : memref<27x256xf32, #tpu.memory_space<vmem>>, vector<27x256xf32>
    %cst_29 = arith.constant dense<0.000000e+00> : vector<128x256xf32>
    %47 = tpu.matmul %45, %46, %cst_29 {dimension_numbers = #tpu.dot_dimension_numbers<[1], [0], [0], [1], [0, 0, 1, 1], [], []>} : vector<128x27xf32>, vector<27x256xf32>, vector<128x256xf32> -> vector<128x256xf32>
    %c0_30 = arith.constant 0 : index
    %c0_31 = arith.constant 0 : index
    %48 = vector.load %arg4[%c0_30, %c0_31] : memref<128x1xf32, #tpu.memory_space<vmem>>, vector<128x1xf32>
    %49 = vector.broadcast %48 : vector<128x1xf32> to vector<128x256xf32>
    %50 = arith.addf %47, %49 : vector<128x256xf32>
    %cst_32 = arith.constant 0.000000e+00 : f32
    %51 = vector.broadcast %cst_32 : f32 to vector<128x256xf32>
    %52 = arith.cmpf oge, %50, %51 : vector<128x256xf32>
    %cst_33 = arith.constant 2.000000e-01 : f32
    %53 = vector.broadcast %cst_33 : f32 to vector<128x256xf32>
    %54 = arith.mulf %53, %50 : vector<128x256xf32>
    %55 = arith.select %52, %50, %54 : vector<128x256xi1>, vector<128x256xf32>
    %c0_34 = arith.constant 0 : index
    %c0_35 = arith.constant 0 : index
    %c0_36 = arith.constant 0 : index
    %56 = vector.load %arg6[%c0_34, %c0_35, %c0_36] : memref<1x128x256xf32, #tpu.memory_space<vmem>>, vector<1x128x256xf32>
    %57 = vector.shape_cast %56 : vector<1x128x256xf32> to vector<128x256xf32>
    %58 = vector.shape_cast %55 : vector<128x256xf32> to vector<1x128x256xf32>
    tpu.vector_store %arg6[%c0_34, %c0_35, %c0_36], %58 {strides = array<i32>} : memref<1x128x256xf32, #tpu.memory_space<vmem>>, vector<1x128x256xf32>,
    return
  }
  func.func @transform_0(%arg0: i32) -> (i32, i32, i32) {
    %c0_i32 = arith.constant 0 : i32
    %c0_i32_0 = arith.constant 0 : i32
    %c0_i32_1 = arith.constant 0 : i32
    return %arg0, %c0_i32, %c0_i32_0 : i32, i32, i32
  }
  func.func @transform_1(%arg0: i32) -> (i32, i32) {
    %c0_i32 = arith.constant 0 : i32
    %c0_i32_0 = arith.constant 0 : i32
    %c0_i32_1 = arith.constant 0 : i32
    return %c0_i32, %c0_i32_0 : i32, i32
  }
  func.func @transform_2(%arg0: i32) -> (i32, i32) {
    %c0_i32 = arith.constant 0 : i32
    %c0_i32_0 = arith.constant 0 : i32
    %c0_i32_1 = arith.constant 0 : i32
    return %c0_i32, %c0_i32_0 : i32, i32
  }
  func.func @transform_3(%arg0: i32) -> (i32, i32) {
    %c0_i32 = arith.constant 0 : i32
    %c0_i32_0 = arith.constant 0 : i32
    %c0_i32_1 = arith.constant 0 : i32
    return %c0_i32, %c0_i32_0 : i32, i32
  }
  func.func @transform_4(%arg0: i32) -> (i32, i32) {
    %c0_i32 = arith.constant 0 : i32
    %c0_i32_0 = arith.constant 0 : i32
    %c0_i32_1 = arith.constant 0 : i32
    return %c0_i32, %c0_i32_0 : i32, i32
  }
  func.func @transform_5(%arg0: i32) -> (i32, i32, i32) {
    %c0_i32 = arith.constant 0 : i32
    %c0_i32_0 = arith.constant 0 : i32
    %c0_i32_1 = arith.constant 0 : i32
    return %arg0, %c0_i32, %c0_i32_0 : i32, i32, i32
  }
}

module attributes {stable_mosaic.version = 11 : i64} {
  func.func @_spade_modulate_kernel(%arg0: i32, %arg1: memref<1x128x256xf32, #tpu.memory_space<vmem>>, %arg2: memref<64x1152xf32, #tpu.memory_space<vmem>>, %arg3: memref<64x1xf32, #tpu.memory_space<vmem>>, %arg4: memref<9x256xf32, #tpu.memory_space<vmem>>, %arg5: memref<1x32x256xf32, #tpu.memory_space<vmem>>, %arg6: memref<1x32x256xf32, #tpu.memory_space<vmem>>, %arg7: memref<1152x256xf32, #tpu.memory_space<vmem>>) attributes {dimension_semantics = [#tpu.dimension_semantics<parallel>], iteration_bounds = array<i64: 2>, scalar_prefetch = 0 : i64, scratch_operands = 1 : i64, tpu.core_type = #tpu.core_type<tc>, window_params = [{transform_indices = @transform_0, window_bounds = array<i64: 1, 128, 256>}, {pipeline_mode = #tpu.pipeline_mode<synchronous>, transform_indices = @transform_1, window_bounds = array<i64: 64, 1152>}, {pipeline_mode = #tpu.pipeline_mode<synchronous>, transform_indices = @transform_2, window_bounds = array<i64: 64, 1>}, {pipeline_mode = #tpu.pipeline_mode<synchronous>, transform_indices = @transform_3, window_bounds = array<i64: 9, 256>}, {transform_indices = @transform_4, window_bounds = array<i64: 1, 32, 256>}, {transform_indices = @transform_5, window_bounds = array<i64: 1, 32, 256>}]} {
    %c0 = arith.constant 0 : index
    %c0_0 = arith.constant 0 : index
    %c0_1 = arith.constant 0 : index
    %0 = vector.load %arg1[%c0, %c0_0, %c0_1] : memref<1x128x256xf32, #tpu.memory_space<vmem>>, vector<1x128x256xf32>
    %1 = vector.shape_cast %0 : vector<1x128x256xf32> to vector<128x256xf32>
    %c17_i32 = arith.constant 17 : i32
    %2 = tpu.dynamic_rotate %1 by %c17_i32 dim 1 : vector<128x256xf32>, i32 -> vector<128x256xf32>
    %c0_2 = arith.constant 0 : index
    %c0_3 = arith.constant 0 : index
    %3 = vector.load %arg4[%c0_2, %c0_3] : memref<9x256xf32, #tpu.memory_space<vmem>>, vector<1x256xf32>
    %4 = vector.broadcast %3 : vector<1x256xf32> to vector<128x256xf32>
    %5 = arith.mulf %2, %4 : vector<128x256xf32>
    %c0_4 = arith.constant 0 : index
    %c0_5 = arith.constant 0 : index
    %6 = vector.load %arg7[%c0_4, %c0_5] : memref<1152x256xf32, #tpu.memory_space<vmem>>, vector<128x256xf32>
    tpu.vector_store %arg7[%c0_4, %c0_5], %5 {strides = array<i32>} : memref<1152x256xf32, #tpu.memory_space<vmem>>, vector<128x256xf32>,
    %c16_i32 = arith.constant 16 : i32
    %7 = tpu.dynamic_rotate %1 by %c16_i32 dim 1 : vector<128x256xf32>, i32 -> vector<128x256xf32>
    %c1 = arith.constant 1 : index
    %c0_6 = arith.constant 0 : index
    %8 = vector.load %arg4[%c1, %c0_6] : memref<9x256xf32, #tpu.memory_space<vmem>>, vector<1x256xf32>
    %9 = vector.broadcast %8 : vector<1x256xf32> to vector<128x256xf32>
    %10 = arith.mulf %7, %9 : vector<128x256xf32>
    %c128 = arith.constant 128 : index
    %c0_7 = arith.constant 0 : index
    %11 = vector.load %arg7[%c128, %c0_7] : memref<1152x256xf32, #tpu.memory_space<vmem>>, vector<128x256xf32>
    tpu.vector_store %arg7[%c128, %c0_7], %10 {strides = array<i32>} : memref<1152x256xf32, #tpu.memory_space<vmem>>, vector<128x256xf32>,
    %c15_i32 = arith.constant 15 : i32
    %12 = tpu.dynamic_rotate %1 by %c15_i32 dim 1 : vector<128x256xf32>, i32 -> vector<128x256xf32>
    %c2 = arith.constant 2 : index
    %c0_8 = arith.constant 0 : index
    %13 = vector.load %arg4[%c2, %c0_8] : memref<9x256xf32, #tpu.memory_space<vmem>>, vector<1x256xf32>
    %14 = vector.broadcast %13 : vector<1x256xf32> to vector<128x256xf32>
    %15 = arith.mulf %12, %14 : vector<128x256xf32>
    %c256 = arith.constant 256 : index
    %c0_9 = arith.constant 0 : index
    %16 = vector.load %arg7[%c256, %c0_9] : memref<1152x256xf32, #tpu.memory_space<vmem>>, vector<128x256xf32>
    tpu.vector_store %arg7[%c256, %c0_9], %15 {strides = array<i32>} : memref<1152x256xf32, #tpu.memory_space<vmem>>, vector<128x256xf32>,
    %c1_i32 = arith.constant 1 : i32
    %17 = tpu.dynamic_rotate %1 by %c1_i32 dim 1 : vector<128x256xf32>, i32 -> vector<128x256xf32>
    %c3 = arith.constant 3 : index
    %c0_10 = arith.constant 0 : index
    %18 = vector.load %arg4[%c3, %c0_10] : memref<9x256xf32, #tpu.memory_space<vmem>>, vector<1x256xf32>
    %19 = vector.broadcast %18 : vector<1x256xf32> to vector<128x256xf32>
    %20 = arith.mulf %17, %19 : vector<128x256xf32>
    %c384 = arith.constant 384 : index
    %c0_11 = arith.constant 0 : index
    %21 = vector.load %arg7[%c384, %c0_11] : memref<1152x256xf32, #tpu.memory_space<vmem>>, vector<128x256xf32>
    tpu.vector_store %arg7[%c384, %c0_11], %20 {strides = array<i32>} : memref<1152x256xf32, #tpu.memory_space<vmem>>, vector<128x256xf32>,
    %c512 = arith.constant 512 : index
    %c0_12 = arith.constant 0 : index
    %22 = vector.load %arg7[%c512, %c0_12] : memref<1152x256xf32, #tpu.memory_space<vmem>>, vector<128x256xf32>
    tpu.vector_store %arg7[%c512, %c0_12], %1 {strides = array<i32>} : memref<1152x256xf32, #tpu.memory_space<vmem>>, vector<128x256xf32>,
    %c255_i32 = arith.constant 255 : i32
    %23 = tpu.dynamic_rotate %1 by %c255_i32 dim 1 : vector<128x256xf32>, i32 -> vector<128x256xf32>
    %c5 = arith.constant 5 : index
    %c0_13 = arith.constant 0 : index
    %24 = vector.load %arg4[%c5, %c0_13] : memref<9x256xf32, #tpu.memory_space<vmem>>, vector<1x256xf32>
    %25 = vector.broadcast %24 : vector<1x256xf32> to vector<128x256xf32>
    %26 = arith.mulf %23, %25 : vector<128x256xf32>
    %c640 = arith.constant 640 : index
    %c0_14 = arith.constant 0 : index
    %27 = vector.load %arg7[%c640, %c0_14] : memref<1152x256xf32, #tpu.memory_space<vmem>>, vector<128x256xf32>
    tpu.vector_store %arg7[%c640, %c0_14], %26 {strides = array<i32>} : memref<1152x256xf32, #tpu.memory_space<vmem>>, vector<128x256xf32>,
    %c241_i32 = arith.constant 241 : i32
    %28 = tpu.dynamic_rotate %1 by %c241_i32 dim 1 : vector<128x256xf32>, i32 -> vector<128x256xf32>
    %c6 = arith.constant 6 : index
    %c0_15 = arith.constant 0 : index
    %29 = vector.load %arg4[%c6, %c0_15] : memref<9x256xf32, #tpu.memory_space<vmem>>, vector<1x256xf32>
    %30 = vector.broadcast %29 : vector<1x256xf32> to vector<128x256xf32>
    %31 = arith.mulf %28, %30 : vector<128x256xf32>
    %c768 = arith.constant 768 : index
    %c0_16 = arith.constant 0 : index
    %32 = vector.load %arg7[%c768, %c0_16] : memref<1152x256xf32, #tpu.memory_space<vmem>>, vector<128x256xf32>
    tpu.vector_store %arg7[%c768, %c0_16], %31 {strides = array<i32>} : memref<1152x256xf32, #tpu.memory_space<vmem>>, vector<128x256xf32>,
    %c240_i32 = arith.constant 240 : i32
    %33 = tpu.dynamic_rotate %1 by %c240_i32 dim 1 : vector<128x256xf32>, i32 -> vector<128x256xf32>
    %c7 = arith.constant 7 : index
    %c0_17 = arith.constant 0 : index
    %34 = vector.load %arg4[%c7, %c0_17] : memref<9x256xf32, #tpu.memory_space<vmem>>, vector<1x256xf32>
    %35 = vector.broadcast %34 : vector<1x256xf32> to vector<128x256xf32>
    %36 = arith.mulf %33, %35 : vector<128x256xf32>
    %c896 = arith.constant 896 : index
    %c0_18 = arith.constant 0 : index
    %37 = vector.load %arg7[%c896, %c0_18] : memref<1152x256xf32, #tpu.memory_space<vmem>>, vector<128x256xf32>
    tpu.vector_store %arg7[%c896, %c0_18], %36 {strides = array<i32>} : memref<1152x256xf32, #tpu.memory_space<vmem>>, vector<128x256xf32>,
    %c239_i32 = arith.constant 239 : i32
    %38 = tpu.dynamic_rotate %1 by %c239_i32 dim 1 : vector<128x256xf32>, i32 -> vector<128x256xf32>
    %c8 = arith.constant 8 : index
    %c0_19 = arith.constant 0 : index
    %39 = vector.load %arg4[%c8, %c0_19] : memref<9x256xf32, #tpu.memory_space<vmem>>, vector<1x256xf32>
    %40 = vector.broadcast %39 : vector<1x256xf32> to vector<128x256xf32>
    %41 = arith.mulf %38, %40 : vector<128x256xf32>
    %c1024 = arith.constant 1024 : index
    %c0_20 = arith.constant 0 : index
    %42 = vector.load %arg7[%c1024, %c0_20] : memref<1152x256xf32, #tpu.memory_space<vmem>>, vector<128x256xf32>
    tpu.vector_store %arg7[%c1024, %c0_20], %41 {strides = array<i32>} : memref<1152x256xf32, #tpu.memory_space<vmem>>, vector<128x256xf32>,
    %c0_21 = arith.constant 0 : index
    %c0_22 = arith.constant 0 : index
    %43 = vector.load %arg2[%c0_21, %c0_22] : memref<64x1152xf32, #tpu.memory_space<vmem>>, vector<64x1152xf32>
    %c0_23 = arith.constant 0 : index
    %c0_24 = arith.constant 0 : index
    %44 = vector.load %arg7[%c0_23, %c0_24] : memref<1152x256xf32, #tpu.memory_space<vmem>>, vector<1152x256xf32>
    %cst = arith.constant dense<0.000000e+00> : vector<64x256xf32>
    %45 = tpu.matmul %43, %44, %cst {dimension_numbers = #tpu.dot_dimension_numbers<[1], [0], [0], [1], [0, 0, 1, 1], [], []>} : vector<64x1152xf32>, vector<1152x256xf32>, vector<64x256xf32> -> vector<64x256xf32>
    %c0_25 = arith.constant 0 : index
    %c0_26 = arith.constant 0 : index
    %46 = vector.load %arg3[%c0_25, %c0_26] : memref<64x1xf32, #tpu.memory_space<vmem>>, vector<64x1xf32>
    %47 = vector.broadcast %46 : vector<64x1xf32> to vector<64x256xf32>
    %48 = arith.addf %45, %47 : vector<64x256xf32>
    %49 = vector.extract_strided_slice %48 {offsets = [0, 0], sizes = [32, 256], strides = [1, 1]} : vector<64x256xf32> to vector<32x256xf32>
    %50 = vector.extract_strided_slice %48 {offsets = [32, 0], sizes = [32, 256], strides = [1, 1]} : vector<64x256xf32> to vector<32x256xf32>
    %c0_27 = arith.constant 0 : index
    %c0_28 = arith.constant 0 : index
    %c0_29 = arith.constant 0 : index
    %51 = vector.load %arg5[%c0_27, %c0_28, %c0_29] : memref<1x32x256xf32, #tpu.memory_space<vmem>>, vector<1x32x256xf32>
    %52 = vector.shape_cast %51 : vector<1x32x256xf32> to vector<32x256xf32>
    %cst_30 = arith.constant 1.000000e+00 : f32
    %53 = vector.broadcast %cst_30 : f32 to vector<32x256xf32>
    %54 = arith.addf %53, %49 : vector<32x256xf32>
    %55 = arith.mulf %52, %54 : vector<32x256xf32>
    %56 = arith.addf %55, %50 : vector<32x256xf32>
    %c0_31 = arith.constant 0 : index
    %c0_32 = arith.constant 0 : index
    %c0_33 = arith.constant 0 : index
    %57 = vector.load %arg6[%c0_31, %c0_32, %c0_33] : memref<1x32x256xf32, #tpu.memory_space<vmem>>, vector<1x32x256xf32>
    %58 = vector.shape_cast %57 : vector<1x32x256xf32> to vector<32x256xf32>
    %59 = vector.shape_cast %56 : vector<32x256xf32> to vector<1x32x256xf32>
    tpu.vector_store %arg6[%c0_31, %c0_32, %c0_33], %59 {strides = array<i32>} : memref<1x32x256xf32, #tpu.memory_space<vmem>>, vector<1x32x256xf32>,
    return
  }
  func.func @transform_0(%arg0: i32) -> (i32, i32, i32) {
    %c0_i32 = arith.constant 0 : i32
    %c0_i32_0 = arith.constant 0 : i32
    %c0_i32_1 = arith.constant 0 : i32
    return %arg0, %c0_i32, %c0_i32_0 : i32, i32, i32
  }
  func.func @transform_1(%arg0: i32) -> (i32, i32) {
    %c0_i32 = arith.constant 0 : i32
    %c0_i32_0 = arith.constant 0 : i32
    %c0_i32_1 = arith.constant 0 : i32
    return %c0_i32, %c0_i32_0 : i32, i32
  }
  func.func @transform_2(%arg0: i32) -> (i32, i32) {
    %c0_i32 = arith.constant 0 : i32
    %c0_i32_0 = arith.constant 0 : i32
    %c0_i32_1 = arith.constant 0 : i32
    return %c0_i32, %c0_i32_0 : i32, i32
  }
  func.func @transform_3(%arg0: i32) -> (i32, i32) {
    %c0_i32 = arith.constant 0 : i32
    %c0_i32_0 = arith.constant 0 : i32
    %c0_i32_1 = arith.constant 0 : i32
    return %c0_i32, %c0_i32_0 : i32, i32
  }
  func.func @transform_4(%arg0: i32) -> (i32, i32, i32) {
    %c0_i32 = arith.constant 0 : i32
    %c0_i32_0 = arith.constant 0 : i32
    %c0_i32_1 = arith.constant 0 : i32
    return %arg0, %c0_i32, %c0_i32_0 : i32, i32, i32
  }
  func.func @transform_5(%arg0: i32) -> (i32, i32, i32) {
    %c0_i32 = arith.constant 0 : i32
    %c0_i32_0 = arith.constant 0 : i32
    %c0_i32_1 = arith.constant 0 : i32
    return %arg0, %c0_i32, %c0_i32_0 : i32, i32, i32
  }
}

</mosaic_0001>

<llo_original>
// kernel: spade_forward.3
$region0: #{spade_forward.3}
  #allocation0 [shape = 'u32[]', space=smem, size = 0x4, offset = 0x4, fixed_abs, tag = 'smem constant byte address 0x4 - core index']
  #allocation1 [shape = 'u32[144,128]{1,0:T(1,128)}', space=vmem, size = 0x12000, scoped, tag = 'internal scratch']
  %s0 = inlined_call_operand.vmem [shape: f32[32,512], index: 0, kind: input, shape index: {}]
  %s1 = inlined_call_operand.vmem [shape: f32[32,512], index: 1, kind: output, shape index: {}]
  %s2 = sld [smem:[#allocation0]]
  $region37: #{spade_forward.3} parent=0
    _
  %s4 = ssub.s32 1, %s2
  %s5 = scalar_select 0, %s4, %s2
  loop: start=0, step=1, limit=4
  $region2: #{spade_forward.3} parent=0 // loop_pre_header
    _
  $region3: #{spade_forward.3} parent=0 // loop_header
    %s7 = sphi 0, %s11
    %p8 = scmp.ge.s32.totalorder %s7, 4
    %s17 = sphi 0, %s19
    %s20 = sphi 0, %s17
    %s21 = sphi 0, %s20
    %s37 = sphi 0, %s21
    %s43 = sphi 0, %s45
    %s46 = sphi 0, %s43
    %s47 = sphi 0, %s46
    %s63 = sphi 0, %s47
  $region4: #{spade_forward.3} parent=0 // loop_header_branch
    %10 = sbr.rel (%p8) target = $region8
  $region5: #{spade_forward.3} parent=0 // loop_body
    %s12 = ssub.s32 %s7, 1
    %s13 = ssub.s32 %s7, 2
    %s14 = sadd.s32 %s7, 1
    %s15 = ssub.s32 %s7, %s14
    %p16 = scmp.eq.s32.totalorder %s15, 0
    %s18 = sadd.s32 %s17, 1
    %s19 = scalar_select %p16, %s17, %s18
    %p22 = pneg %p16
    %p23 = scmp.eq.s32.totalorder %s7, 1
    %p24 = por %p22, %p23
    %p25 = scmp.ne.s32.totalorder %s17, %s20
    %p26 = scmp.eq.s32.totalorder %s7, 0
    %p27 = por %p25, %p26
    %p28 = scmp.ne.s32.totalorder %s17, %s20
    %p29 = scmp.eq.s32.totalorder %s12, 1
    %p30 = por %p28, %p29
    %p31 = scmp.ne.s32.totalorder %s20, %s21
    %p32 = scmp.eq.s32.totalorder %s12, 0
    %p33 = por %p31, %p32
    %p34 = scmp.ne.s32.totalorder %s20, %s21
    %p35 = scmp.eq.s32.totalorder %s13, 1
    %p36 = por %p34, %p35
    %p38 = scmp.ne.s32.totalorder %s21, %s37
    %p39 = scmp.eq.s32.totalorder %s13, 0
    %p40 = por %p38, %p39
    %s41 = ssub.s32 %s7, %s14
    %p42 = scmp.eq.s32.totalorder %s41, 0
    %s44 = sadd.s32 %s43, 1
    %s45 = scalar_select %p42, %s43, %s44
    %p48 = pneg %p42
    %p49 = scmp.eq.s32.totalorder %s7, 1
    %p50 = por %p48, %p49
    %p51 = scmp.ne.s32.totalorder %s43, %s46
    %p52 = scmp.eq.s32.totalorder %s7, 0
    %p53 = por %p51, %p52
    %p54 = scmp.ne.s32.totalorder %s43, %s46
    %p55 = scmp.eq.s32.totalorder %s12, 1
    %p56 = por %p54, %p55
    %p57 = scmp.ne.s32.totalorder %s46, %s47
    %p58 = scmp.eq.s32.totalorder %s12, 0
    %p59 = por %p57, %p58
    %p60 = scmp.ne.s32.totalorder %s46, %s47
    %p61 = scmp.eq.s32.totalorder %s13, 1
    %p62 = por %p60, %p61
    %p64 = scmp.ne.s32.totalorder %s47, %s63
    %p65 = scmp.eq.s32.totalorder %s13, 0
    %p66 = por %p64, %p65
    %p67 = scmp.le.s32.totalorder 1, %s7
    %p68 = scmp.lt.s32.totalorder %s7, 3
    %p69 = pnand %p67, %p68
    %p70 = pneg %p69
    // Predicated region
    $region9: #{spade_forward.3} parent=5 // pred_check
      _
    $region10: #{spade_forward.3} parent=5 // pred_check_branch
      %72 = sbr.rel (%p69) target = $region12
    $region11: #{spade_forward.3} parent=5 // pred_region
      %s73 = ssub.s32 %s7, 1
    $region12: #{spade_forward.3} parent=5 // pred_fallthru
      _
    %p74 = scmp.lt.s32.totalorder %s7, 2
    // Predicated region
    $region13: #{spade_forward.3} parent=5 // pred_check
      %p75 = pneg %p74
    $region14: #{spade_forward.3} parent=5 // pred_check_branch
      %77 = sbr.rel (%p75) target = $region16
    $region15: #{spade_forward.3} parent=5 // pred_region
      // Predicated region
      $region17: #{spade_forward.3} parent=15 // pred_check
        %p78 = pneg %p27
      $region18: #{spade_forward.3} parent=15 // pred_check_branch
        %80 = sbr.rel (%p78) target = $region20
      $region19: #{spade_forward.3} parent=15 // pred_region
        %s81 = smul.u32 2, %s7
        %p82 = scmp.lt.s32.totalorder %s81, 3
        %s83 = scalar_select %p82, %s81, 3
        %s84 = smul.addr %s83, 4
        %s85 = smul.addr %s84, 8
        %s86 = scalar_lea.vmem %s0, %s85
        %s87 = smul.u32 2, %s7
      $region20: #{spade_forward.3} parent=15 // pred_fallthru
        _
    $region16: #{spade_forward.3} parent=5 // pred_fallthru
      _
    %p88 = scmp.le.s32.totalorder 1, %s7
    %p89 = scmp.lt.s32.totalorder %s7, 3
    %p90 = pnand %p88, %p89
    %p91 = pneg %p90
    // Predicated region
    $region21: #{spade_forward.3} parent=5 // pred_check
      _
    $region22: #{spade_forward.3} parent=5 // pred_check_branch
      %93 = sbr.rel (%p90) target = $region24
    $region23: #{spade_forward.3} parent=5 // pred_region
      %s94 = ssub.s32 %s7, 1
      %s95 = smul.u32 2, %s12
      %p96 = scmp.lt.s32.totalorder %s95, 3
      %s97 = scalar_select %p96, %s95, 3
      %s98 = smul.addr %s97, 4
      %s99 = smul.addr %s98, 8
      %s100 = scalar_lea.vmem %s0, %s99
      %p101 = pneg %p33
      %p102 = pneg %p30
      %p103 = pneg %p59
      %p104 = pneg %p56
      %s105 = smul.u32 2, %s12
      %p106 = scmp.lt.s32.totalorder %s105, 3
      %s107 = scalar_select %p106, %s105, 3
      %s108 = smul.addr %s107, 4
      %s109 = smul.addr %s108, 8
      %s110 = scalar_lea.vmem %s1, %s109
      %s111 = smul.u32 2, %s12
      %p112 = scmp.lt.s32.totalorder %s111, 3
      %s113 = scalar_select %p112, %s111, 3
      %s114 = smul.addr %s113, 4
      %s115 = smul.addr %s114, 8
      %s116 = scalar_lea.vmem %s0, %s115
      %s117 = smul.u32 2, %s12
      %s118 = smul.u32 2, %s12
      %p119 = scmp.lt.s32.totalorder %s118, 3
      %s120 = scalar_select %p119, %s118, 3
      %s121 = smul.addr %s120, 4
      %s122 = smul.addr %s121, 8
      %s123 = scalar_lea.vmem %s1, %s122
      %s124 = smul.u32 2, %s12
      %v125 = vld [vmem:[%s116] sm:$0xff]
      %v126 = vld [vmem:[%s116 + $0x8] sm:$0xff]
      %v127 = vld [vmem:[%s116 + $0x10] sm:$0xff]
      %v128 = vld [vmem:[%s116 + $0x18] sm:$0xff]
      %v129 = vld [vmem:[%s116 + $0x20] sm:$0xff]
      %v130 = vld [vmem:[%s116 + $0x28] sm:$0xff]
      %v131 = vld [vmem:[%s116 + $0x30] sm:$0xff]
      %v132 = vld [vmem:[%s116 + $0x38] sm:$0xff]
      %v133 = vadd.f32 %v125, %v126
      %v134 = vadd.f32 %v133, %v127
      %v135 = vadd.f32 %v134, %v128
      %136 = vadd.xlane.f32.xlu0 %v135
      %v137 = vpop.xlane.xlu0 %136
      %v138 = vadd.f32 %v129, %v130
      %v139 = vadd.f32 %v138, %v131
      %v140 = vadd.f32 %v139, %v132
      %141 = vadd.xlane.f32.xlu0 %v140
      %v142 = vpop.xlane.xlu0 %141
      %v143 = vrcp.pop 512.0
      %v144 = vmul.f32 %v137, %v143
      %v145 = vmul.f32 %v142, %v143
      %v146 = vsub.f32 %v125, %v144
      %v147 = vsub.f32 %v126, %v144
      %v148 = vsub.f32 %v127, %v144
      %v149 = vsub.f32 %v128, %v144
      %v150 = vsub.f32 %v129, %v145
      %v151 = vsub.f32 %v130, %v145
      %v152 = vsub.f32 %v131, %v145
      %v153 = vsub.f32 %v132, %v145
      %v154 = vmul.f32 %v146, %v146
      %v155 = vmul.f32 %v147, %v147
      %v156 = vmul.f32 %v148, %v148
      %v157 = vmul.f32 %v149, %v149
      %v158 = vmul.f32 %v150, %v150
      %v159 = vmul.f32 %v151, %v151
      %v160 = vmul.f32 %v152, %v152
      %v161 = vmul.f32 %v153, %v153
      %v162 = vadd.f32 %v154, %v155
      %v163 = vadd.f32 %v162, %v156
      %v164 = vadd.f32 %v163, %v157
      %165 = vadd.xlane.f32.xlu0 %v164
      %v166 = vpop.xlane.xlu0 %165
      %v167 = vadd.f32 %v158, %v159
      %v168 = vadd.f32 %v167, %v160
      %v169 = vadd.f32 %v168, %v161
      %170 = vadd.xlane.f32.xlu0 %v169
      %v171 = vpop.xlane.xlu0 %170
      %v172 = vmul.f32 %v166, %v143
      %v173 = vmul.f32 %v171, %v143
      %v174 = vadd.f32 %v172, 1e-05
      %v175 = vadd.f32 %v173, 1e-05
      %v176 = vrsqrt.pop %v174
      %v177 = vrsqrt.pop %v175
      %v178 = vmul.f32 %v146, %v176
      %v179 = vmul.f32 %v147, %v176
      %v180 = vmul.f32 %v148, %v176
      %v181 = vmul.f32 %v149, %v176
      %v182 = vmul.f32 %v150, %v177
      %v183 = vmul.f32 %v151, %v177
      %v184 = vmul.f32 %v152, %v177
      %v185 = vmul.f32 %v153, %v177
      %186 = vst [vmem:[%s123] sm:$0xff] %v178
      %187 = vst [vmem:[%s123 + $0x8] sm:$0xff] %v179
      %188 = vst [vmem:[%s123 + $0x10] sm:$0xff] %v180
      %189 = vst [vmem:[%s123 + $0x18] sm:$0xff] %v181
      %190 = vst [vmem:[%s123 + $0x20] sm:$0xff] %v182
      %191 = vst [vmem:[%s123 + $0x28] sm:$0xff] %v183
      %192 = vst [vmem:[%s123 + $0x30] sm:$0xff] %v184
      %193 = vst [vmem:[%s123 + $0x38] sm:$0xff] %v185
      %s194 = smul.u32 2, %s12
      %p195 = scmp.lt.s32.totalorder %s194, 3
      %s196 = scalar_select %p195, %s194, 3
      %s197 = smul.addr %s196, 4
      %s198 = smul.addr %s197, 8
      %s199 = scalar_lea.vmem %s1, %s198
      // Predicated region
      $region25: #{spade_forward.3} parent=23 // pred_check
        %p200 = pneg %p56
      $region26: #{spade_forward.3} parent=23 // pred_check_branch
        %202 = sbr.rel (%p200) target = $region28
      $region27: #{spade_forward.3} parent=23 // pred_region
        %s203 = smul.u32 2, %s12
      $region28: #{spade_forward.3} parent=23 // pred_fallthru
        _
    $region24: #{spade_forward.3} parent=5 // pred_fallthru
      _
    %p204 = scmp.le.s32.totalorder 2, %s7
    // Predicated region
    $region29: #{spade_forward.3} parent=5 // pred_check
      %p205 = pneg %p204
    $region30: #{spade_forward.3} parent=5 // pred_check_branch
      %207 = sbr.rel (%p205) target = $region32
    $region31: #{spade_forward.3} parent=5 // pred_region
      %s208 = ssub.s32 %s7, 2
      // Predicated region
      $region33: #{spade_forward.3} parent=31 // pred_check
        %p209 = pneg %p62
      $region34: #{spade_forward.3} parent=31 // pred_check_branch
        %211 = sbr.rel (%p209) target = $region36
      $region35: #{spade_forward.3} parent=31 // pred_region
        %s212 = smul.u32 2, %s13
        %p213 = scmp.lt.s32.totalorder %s212, 3
        %s214 = scalar_select %p213, %s212, 3
        %s215 = smul.addr %s214, 4
        %s216 = smul.addr %s215, 8
        %s217 = scalar_lea.vmem %s1, %s216
      $region36: #{spade_forward.3} parent=31 // pred_fallthru
        _
    $region32: #{spade_forward.3} parent=5 // pred_fallthru
      _
  $region6: #{spade_forward.3} parent=0 // loop_footer
    %s11 = sadd.s32 1, %s7
  $region7: #{spade_forward.3} parent=0 // loop_footer_branch
    %6 = sbr.rel target = $region3
  $region8: #{spade_forward.3} parent=0 // loop_exit
    _

// kernel: spade_forward.4
$region0: #{spade_forward.4}
  #allocation0 [shape = 'u32[]', space=smem, size = 0x4, offset = 0x4, fixed_abs, tag = 'smem constant byte address 0x4 - core index']
  #allocation1 [shape = 'u32[144,128]{1,0:T(1,128)}', space=vmem, size = 0x12000, scoped, tag = 'internal scratch']
  #allocation2 [shape = 'f32[27,256]{1,0:T(8,128)}', space=vmem, size = 0x8000, scoped, tag = 'scratch operand']
  %s0 = inlined_call_operand.vmem [shape: f32[2,3,64], index: 0, kind: input, shape index: {}]
  %s1 = inlined_call_operand.vmem [shape: f32[64,256], index: 1, kind: input, shape index: {}]
  %s2 = inlined_call_operand.vmem [shape: f32[128,27], index: 2, kind: input, shape index: {}]
  %s3 = inlined_call_operand.vmem [shape: f32[128,1], index: 3, kind: input, shape index: {}]
  %s4 = inlined_call_operand.vmem [shape: f32[9,256], index: 4, kind: input, shape index: {}]
  %s5 = inlined_call_operand.vmem [shape: f32[2,128,256], index: 5, kind: output, shape index: {}]
  %s6 = sld [smem:[#allocation0]]
  $region53: #{spade_forward.4} parent=0
    _
  %s8 = ssub.s32 1, %s6
  %s9 = scalar_select 0, %s8, %s6
  loop: start=0, step=1, limit=4
  $region2: #{spade_forward.4} parent=0 // loop_pre_header
    _
  $region3: #{spade_forward.4} parent=0 // loop_header
    %s11 = sphi 0, %s15
    %p12 = scmp.ge.s32.totalorder %s11, 4
    %s21 = sphi 0, %s23
    %s24 = sphi 0, %s21
    %s25 = sphi 0, %s24
    %s41 = sphi 0, %s25
    %s45 = sphi 0, %s45
    %s47 = sphi 0, %s45
    %s48 = sphi 0, %s47
    %s62 = sphi 0, %s48
    %s66 = sphi 0, %s66
    %s68 = sphi 0, %s66
    %s69 = sphi 0, %s68
    %s83 = sphi 0, %s69
    %s87 = sphi 0, %s87
    %s89 = sphi 0, %s87
    %s90 = sphi 0, %s89
    %s104 = sphi 0, %s90
    %s108 = sphi 0, %s108
    %s110 = sphi 0, %s108
    %s111 = sphi 0, %s110
    %s125 = sphi 0, %s111
    %s131 = sphi 0, %s133
    %s134 = sphi 0, %s131
    %s135 = sphi 0, %s134
    %s151 = sphi 0, %s135
  $region4: #{spade_forward.4} parent=0 // loop_header_branch
    %14 = sbr.rel (%p12) target = $region8
  $region5: #{spade_forward.4} parent=0 // loop_body
    %s16 = ssub.s32 %s11, 1
    %s17 = ssub.s32 %s11, 2
    %s18 = sadd.s32 %s11, 1
    %s19 = ssub.s32 %s11, %s18
    %p20 = scmp.eq.s32.totalorder %s19, 0
    %s22 = sadd.s32 %s21, 1
    %s23 = scalar_select %p20, %s21, %s22
    %p26 = pneg %p20
    %p27 = scmp.eq.s32.totalorder %s11, 1
    %p28 = por %p26, %p27
    %p29 = scmp.ne.s32.totalorder %s21, %s24
    %p30 = scmp.eq.s32.totalorder %s11, 0
    %p31 = por %p29, %p30
    %p32 = scmp.ne.s32.totalorder %s21, %s24
    %p33 = scmp.eq.s32.totalorder %s16, 1
    %p34 = por %p32, %p33
    %p35 = scmp.ne.s32.totalorder %s24, %s25
    %p36 = scmp.eq.s32.totalorder %s16, 0
    %p37 = por %p35, %p36
    %p38 = scmp.ne.s32.totalorder %s24, %s25
    %p39 = scmp.eq.s32.totalorder %s17, 1
    %p40 = por %p38, %p39
    %p42 = scmp.ne.s32.totalorder %s25, %s41
    %p43 = scmp.eq.s32.totalorder %s17, 0
    %p44 = por %p42, %p43
    %s46 = sadd.s32 %s45, 1
    %p49 = scmp.eq.s32.totalorder %s11, 1
    %p50 = scmp.ne.s32.totalorder %s45, %s47
    %p51 = scmp.eq.s32.totalorder %s11, 0
    %p52 = por %p50, %p51
    %p53 = scmp.ne.s32.totalorder %s45, %s47
    %p54 = scmp.eq.s32.totalorder %s16, 1
    %p55 = por %p53, %p54
    %p56 = scmp.ne.s32.totalorder %s47, %s48
    %p57 = scmp.eq.s32.totalorder %s16, 0
    %p58 = por %p56, %p57
    %p59 = scmp.ne.s32.totalorder %s47, %s48
    %p60 = scmp.eq.s32.totalorder %s17, 1
    %p61 = por %p59, %p60
    %p63 = scmp.ne.s32.totalorder %s48, %s62
    %p64 = scmp.eq.s32.totalorder %s17, 0
    %p65 = por %p63, %p64
    %s67 = sadd.s32 %s66, 1
    %p70 = scmp.eq.s32.totalorder %s11, 1
    %p71 = scmp.ne.s32.totalorder %s66, %s68
    %p72 = scmp.eq.s32.totalorder %s11, 0
    %p73 = por %p71, %p72
    %p74 = scmp.ne.s32.totalorder %s66, %s68
    %p75 = scmp.eq.s32.totalorder %s16, 1
    %p76 = por %p74, %p75
    %p77 = scmp.ne.s32.totalorder %s68, %s69
    %p78 = scmp.eq.s32.totalorder %s16, 0
    %p79 = por %p77, %p78
    %p80 = scmp.ne.s32.totalorder %s68, %s69
    %p81 = scmp.eq.s32.totalorder %s17, 1
    %p82 = por %p80, %p81
    %p84 = scmp.ne.s32.totalorder %s69, %s83
    %p85 = scmp.eq.s32.totalorder %s17, 0
    %p86 = por %p84, %p85
    %s88 = sadd.s32 %s87, 1
    %p91 = scmp.eq.s32.totalorder %s11, 1
    %p92 = scmp.ne.s32.totalorder %s87, %s89
    %p93 = scmp.eq.s32.totalorder %s11, 0
    %p94 = por %p92, %p93
    %p95 = scmp.ne.s32.totalorder %s87, %s89
    %p96 = scmp.eq.s32.totalorder %s16, 1
    %p97 = por %p95, %p96
    %p98 = scmp.ne.s32.totalorder %s89, %s90
    %p99 = scmp.eq.s32.totalorder %s16, 0
    %p100 = por %p98, %p99
    %p101 = scmp.ne.s32.totalorder %s89, %s90
    %p102 = scmp.eq.s32.totalorder %s17, 1
    %p103 = por %p101, %p102
    %p105 = scmp.ne.s32.totalorder %s90, %s104
    %p106 = scmp.eq.s32.totalorder %s17, 0
    %p107 = por %p105, %p106
    %s109 = sadd.s32 %s108, 1
    %p112 = scmp.eq.s32.totalorder %s11, 1
    %p113 = scmp.ne.s32.totalorder %s108, %s110
    %p114 = scmp.eq.s32.totalorder %s11, 0
    %p115 = por %p113, %p114
    %p116 = scmp.ne.s32.totalorder %s108, %s110
    %p117 = scmp.eq.s32.totalorder %s16, 1
    %p118 = por %p116, %p117
    %p119 = scmp.ne.s32.totalorder %s110, %s111
    %p120 = scmp.eq.s32.totalorder %s16, 0
    %p121 = por %p119, %p120
    %p122 = scmp.ne.s32.totalorder %s110, %s111
    %p123 = scmp.eq.s32.totalorder %s17, 1
    %p124 = por %p122, %p123
    %p126 = scmp.ne.s32.totalorder %s111, %s125
    %p127 = scmp.eq.s32.totalorder %s17, 0
    %p128 = por %p126, %p127
    %s129 = ssub.s32 %s11, %s18
    %p130 = scmp.eq.s32.totalorder %s129, 0
    %s132 = sadd.s32 %s131, 1
    %s133 = scalar_select %p130, %s131, %s132
    %p136 = pneg %p130
    %p137 = scmp.eq.s32.totalorder %s11, 1
    %p138 = por %p136, %p137
    %p139 = scmp.ne.s32.totalorder %s131, %s134
    %p140 = scmp.eq.s32.totalorder %s11, 0
    %p141 = por %p139, %p140
    %p142 = scmp.ne.s32.totalorder %s131, %s134
    %p143 = scmp.eq.s32.totalorder %s16, 1
    %p144 = por %p142, %p143
    %p145 = scmp.ne.s32.totalorder %s134, %s135
    %p146 = scmp.eq.s32.totalorder %s16, 0
    %p147 = por %p145, %p146
    %p148 = scmp.ne.s32.totalorder %s134, %s135
    %p149 = scmp.eq.s32.totalorder %s17, 1
    %p150 = por %p148, %p149
    %p152 = scmp.ne.s32.totalorder %s135, %s151
    %p153 = scmp.eq.s32.totalorder %s17, 0
    %p154 = por %p152, %p153
    %p155 = scmp.le.s32.totalorder 1, %s11
    %p156 = scmp.lt.s32.totalorder %s11, 3
    %p157 = pnand %p155, %p156
    %p158 = pneg %p157
    // Predicated region
    $region9: #{spade_forward.4} parent=5 // pred_check
      _
    $region10: #{spade_forward.4} parent=5 // pred_check_branch
      %160 = sbr.rel (%p157) target = $region12
    $region11: #{spade_forward.4} parent=5 // pred_region
      %s161 = ssub.s32 %s11, 1
      // Predicated region
      $region13: #{spade_forward.4} parent=11 // pred_check
        %p162 = pneg %p58
      $region14: #{spade_forward.4} parent=11 // pred_check_branch
        %164 = sbr.rel (%p162) target = $region16
      $region15: #{spade_forward.4} parent=11 // pred_region
        _
      $region16: #{spade_forward.4} parent=11 // pred_fallthru
        _
      // Predicated region
      $region17: #{spade_forward.4} parent=11 // pred_check
        %p165 = pneg %p79
      $region18: #{spade_forward.4} parent=11 // pred_check_branch
        %167 = sbr.rel (%p165) target = $region20
      $region19: #{spade_forward.4} parent=11 // pred_region
        _
      $region20: #{spade_forward.4} parent=11 // pred_fallthru
        _
      // Predicated region
      $region21: #{spade_forward.4} parent=11 // pred_check
        %p168 = pneg %p100
      $region22: #{spade_forward.4} parent=11 // pred_check_branch
        %170 = sbr.rel (%p168) target = $region24
      $region23: #{spade_forward.4} parent=11 // pred_region
        _
      $region24: #{spade_forward.4} parent=11 // pred_fallthru
        _
      // Predicated region
      $region25: #{spade_forward.4} parent=11 // pred_check
        %p171 = pneg %p121
      $region26: #{spade_forward.4} parent=11 // pred_check_branch
        %173 = sbr.rel (%p171) target = $region28
      $region27: #{spade_forward.4} parent=11 // pred_region
        _
      $region28: #{spade_forward.4} parent=11 // pred_fallthru
        _
    $region12: #{spade_forward.4} parent=5 // pred_fallthru
      _
    %p174 = scmp.lt.s32.totalorder %s11, 2
    // Predicated region
    $region29: #{spade_forward.4} parent=5 // pred_check
      %p175 = pneg %p174
    $region30: #{spade_forward.4} parent=5 // pred_check_branch
      %177 = sbr.rel (%p175) target = $region32
    $region31: #{spade_forward.4} parent=5 // pred_region
      // Predicated region
      $region33: #{spade_forward.4} parent=31 // pred_check
        %p178 = pneg %p31
      $region34: #{spade_forward.4} parent=31 // pred_check_branch
        %180 = sbr.rel (%p178) target = $region36
      $region35: #{spade_forward.4} parent=31 // pred_region
        %p181 = scmp.lt.s32.totalorder %s11, 1
        %s182 = scalar_select %p181, %s11, 1
        %s183 = smul.addr %s182, 4
        %s184 = scalar_lea.vmem %s0, %s183
      $region36: #{spade_forward.4} parent=31 // pred_fallthru
        _
    $region32: #{spade_forward.4} parent=5 // pred_fallthru
      _
    %p185 = scmp.le.s32.totalorder 1, %s11
    %p186 = scmp.lt.s32.totalorder %s11, 3
    %p187 = pnand %p185, %p186
    %p188 = pneg %p187
    // Predicated region
    $region37: #{spade_forward.4} parent=5 // pred_check
      _
    $region38: #{spade_forward.4} parent=5 // pred_check_branch
      %190 = sbr.rel (%p187) target = $region40
    $region39: #{spade_forward.4} parent=5 // pred_region
      %s191 = ssub.s32 %s11, 1
      %p192 = scmp.lt.s32.totalorder %s16, 1
      %s193 = scalar_select %p192, %s16, 1
      %s194 = smul.addr %s193, 4
      %s195 = scalar_lea.vmem %s0, %s194
      %p196 = pneg %p37
      %p197 = pneg %p34
      %p198 = pneg %p58
      %p199 = pneg %p55
      %p200 = pneg %p79
      %p201 = pneg %p76
      %p202 = pneg %p100
      %p203 = pneg %p97
      %p204 = pneg %p121
      %p205 = pneg %p118
      %p206 = pneg %p147
      %p207 = pneg %p144
      %p208 = scmp.lt.s32.totalorder %s16, 1
      %s209 = scalar_select %p208, %s16, 1
      %s210 = smul.addr %s209, 32
      %s211 = smul.addr %s210, 8
      %s212 = scalar_lea.vmem %s5, %s211
      %p213 = scmp.lt.s32.totalorder %s16, 1
      %s214 = scalar_select %p213, %s16, 1
      %s215 = smul.addr %s214, 4
      %s216 = scalar_lea.vmem %s0, %s215
      %p217 = scmp.lt.s32.totalorder %s16, 1
      %s218 = scalar_select %p217, %s16, 1
      %s219 = smul.addr %s218, 32
      %s220 = smul.addr %s219, 8
      %s221 = scalar_lea.vmem %s5, %s220
      %v222 = vld [vmem:[%s216] sm:$0x7]
      %v223 = vld [vmem:[%s1] sm:$0xff]
      %v224 = vld [vmem:[%s1 + $0x8] sm:$0xff]
      %v225 = vld [vmem:[%s1 + $0x10] sm:$0xff]
      %v226 = vld [vmem:[%s1 + $0x18] sm:$0xff]
      %v227 = vld [vmem:[%s1 + $0x20] sm:$0xff]
      %v228 = vld [vmem:[%s1 + $0x28] sm:$0xff]
      %v229 = vld [vmem:[%s1 + $0x30] sm:$0xff]
      %v230 = vld [vmem:[%s1 + $0x38] sm:$0xff]
      %v231 = vld [vmem:[%s1 + $0x40] sm:$0xff]
      %v232 = vld [vmem:[%s1 + $0x48] sm:$0xff]
      %v233 = vld [vmem:[%s1 + $0x50] sm:$0xff]
      %v234 = vld [vmem:[%s1 + $0x58] sm:$0xff]
      %v235 = vld [vmem:[%s1 + $0x60] sm:$0xff]
      %v236 = vld [vmem:[%s1 + $0x68] sm:$0xff]
      %v237 = vld [vmem:[%s1 + $0x70] sm:$0xff]
      %v238 = vld [vmem:[%s1 + $0x78] sm:$0xff]
      %vm239 = vcmask 523264
      %v241 = vsel %vm239, %v222, 0
      %243 = vmatprep.subr.mxu0 0.0
      %244 = vmatpush1.msra.mxu0 0.0
      %245 = vmatprep.subr.mxu0 0.0
      %246 = vmatpush1.msra.mxu0 0.0
      %247 = vmatprep.subr.mxu0 0.0
      %248 = vmatpush1.msra.mxu0 0.0
      %249 = vmatprep.subr.mxu0 0.0
      %250 = vmatpush1.msra.mxu0 0.0
      %251 = vmatprep.subr.mxu0 0.0
      %252 = vmatpush1.msra.mxu0 0.0
      %253 = vmatprep.subr.mxu0 0.0
      %254 = vmatpush1.msra.mxu0 0.0
      %255 = vmatprep.subr.mxu0 0.0
      %256 = vmatpush1.msra.mxu0 0.0
      %257 = vmatprep.subr.mxu0 0.0
      %258 = vmatpush1.msra.mxu0 0.0
      %259 = vmatprep.subr.mxu0 %v238
      %260 = vmatpush1.msra.mxu0 %v237
      %261 = vmatprep.subr.mxu0 %v236
      %262 = vmatpush1.msra.mxu0 %v235
      %263 = vmatprep.subr.mxu0 %v234
      %264 = vmatpush1.msra.mxu0 %v233
      %265 = vmatprep.subr.mxu0 %v232
      %266 = vmatpush1.msra.mxu0 %v231
      %267 = vmatprep.subr.mxu0 %v230
      %268 = vmatpush1.msra.mxu0 %v229
      %269 = vmatprep.subr.mxu0 %v228
      %270 = vmatpush1.msra.mxu0 %v227
      %271 = vmatprep.subr.mxu0 %v226
      %272 = vmatpush1.msra.mxu0 %v225
      %273 = vmatprep.subr.mxu0 %v224
      %274 = vmatpush1.msra.mxu0 %v223
      %275 = vmatprep.subr.mxu0 0.0
      %276 = vmatpush2.msra.mxu0 0.0
      %277 = vmatprep.subr.mxu0 0.0
      %278 = vmatpush2.msra.mxu0 0.0
      %279 = vmatprep.subr.mxu0 0.0
      %280 = vmatpush2.msra.mxu0 0.0
      %281 = vmatprep.subr.mxu0 0.0
      %282 = vmatpush2.msra.mxu0 0.0
      %283 = vmatprep.subr.mxu0 0.0
      %284 = vmatpush2.msra.mxu0 0.0
      %285 = vmatprep.subr.mxu0 0.0
      %286 = vmatpush2.msra.mxu0 0.0
      %287 = vmatprep.subr.mxu0 0.0
      %288 = vmatpush2.msra.mxu0 0.0
      %289 = vmatprep.subr.mxu0 0.0
      %290 = vmatpush2.msra.mxu0 0.0
      %291 = vmatprep.subr.mxu0 0.0
      %292 = vmatpush2.msra.mxu0 0.0
      %293 = vmatprep.subr.mxu0 0.0
      %294 = vmatpush2.msra.mxu0 0.0
      %295 = vmatprep.subr.mxu0 0.0
      %296 = vmatpush2.msra.mxu0 0.0
      %297 = vmatprep.subr.mxu0 0.0
      %298 = vmatpush2.msra.mxu0 0.0
      %299 = vmatprep.subr.mxu0 0.0
      %300 = vmatpush2.msra.mxu0 0.0
      %301 = vmatprep.subr.mxu0 0.0
      %302 = vmatpush2.msra.mxu0 0.0
      %303 = vmatprep.subr.mxu0 0.0
      %304 = vmatpush2.msra.mxu0 0.0
      %305 = vmatprep.subr.mxu0 0.0
      %306 = vmatpush2.msra.mxu0 0.0
      %307 = vmatprep.mubr.f32.mxu0 0.0
      %308 = vmatmul.mubr.f32.gmra.mxu0 %v241
      %v309 = vpop.f32.mrf.mxu0
      %v310 = vadd.f32 0.0, %v309
      %v311 = vpop.f32.mrf.mxu0
      %v312 = vadd.f32 0.0, %v311
      %313 = vdwg.mxu0
      %314 = vrot.lane.b32.xlu0 %v310, 17
      %v315 = vpop.permute.xlu0 %314
      %316 = vrot.lane.b32.xlu0 %v312, 17
      %v317 = vpop.permute.xlu0 %316
      %v318 = vlaneseq
      %v319 = vand.u32 %v318, 127
      %vm320 = vcmp.lt.s32.totalorder %v319, 17
      %v321 = vsel %vm320, %v315, %v317
      %v322 = vsel %vm320, %v317, %v315
      %v323 = vld [vmem:[%s4] ss:$8 sm:$0x3]
      %v325 = vlaneseq
      %v326 = vshrl.u32 %v325, 7
      %v327 = vsub.s32 0, %v326
      %v328 = vrot.slane %v323, %v327
      %v329 = vlaneseq
      %v330 = vshrl.u32 %v329, 7
      %v331 = vsub.s32 1, %v330
      %v332 = vrot.slane %v323, %v331
      %v335 = vmul.f32 %v322, %v328
      %v336 = vmul.f32 %v321, %v332
      %337 = vst [vmem:[#allocation2] sm:$0x7] %v335
      %338 = vst [vmem:[#allocation2 + $0x8] sm:$0x7] %v336
      %339 = vrot.lane.b32.xlu0 %v310, 16
      %v340 = vpop.permute.xlu0 %339
      %341 = vrot.lane.b32.xlu0 %v312, 16
      %v342 = vpop.permute.xlu0 %341
      %vm343 = vcmp.lt.s32.totalorder %v319, 16
      %v344 = vsel %vm343, %v340, %v342
      %v345 = vsel %vm343, %v342, %v340
      %s346 = scalar_lea.vmem %s4, 1
      %v347 = vld [vmem:[%s346] ss:$8 sm:$0x3]
      %v349 = vlaneseq
      %v350 = vshrl.u32 %v349, 7
      %v351 = vsub.s32 0, %v350
      %v352 = vrot.slane %v347, %v351
      %v353 = vlaneseq
      %v354 = vshrl.u32 %v353, 7
      %v355 = vsub.s32 1, %v354
      %v356 = vrot.slane %v347, %v355
      %v359 = vmul.f32 %v345, %v352
      %v360 = vmul.f32 %v344, %v356
      %v363 = vrot.slane %v359, 5
      %v364 = vrot.slane %v360, 5
      %367 = vst [vmem:[#allocation2] sm:$0x38] %v363
      %368 = vst [vmem:[#allocation2 + $0x8] sm:$0x38] %v364
      %369 = vrot.lane.b32.xlu0 %v310, 15
      %v370 = vpop.permute.xlu0 %369
      %371 = vrot.lane.b32.xlu0 %v312, 15
      %v372 = vpop.permute.xlu0 %371
      %vm373 = vcmp.lt.s32.totalorder %v319, 15
      %v374 = vsel %vm373, %v370, %v372
      %v375 = vsel %vm373, %v372, %v370
      %s376 = scalar_lea.vmem %s4, 2
      %v377 = vld [vmem:[%s376] ss:$8 sm:$0x3]
      %v379 = vlaneseq
      %v380 = vshrl.u32 %v379, 7
      %v381 = vsub.s32 0, %v380
      %v382 = vrot.slane %v377, %v381
      %v383 = vlaneseq
      %v384 = vshrl.u32 %v383, 7
      %v385 = vsub.s32 1, %v384
      %v386 = vrot.slane %v377, %v385
      %v389 = vmul.f32 %v375, %v382
      %v390 = vmul.f32 %v374, %v386
      %v393 = vrot.slane %v389, 2
      %v394 = vrot.slane %v390, 2
      %397 = vst [vmem:[#allocation2] sm:$0xc0] %v393
      %398 = vst [vmem:[#allocation2 + $0x8] sm:$0xc0] %v394
      %399 = vst [vmem:[#allocation2 + $0x10] sm:$0x1] %v393
      %400 = vst [vmem:[#allocation2 + $0x18] sm:$0x1] %v394
      %401 = vrot.lane.b32.xlu0 %v310, 1
      %v402 = vpop.permute.xlu0 %401
      %403 = vrot.lane.b32.xlu0 %v312, 1
      %v404 = vpop.permute.xlu0 %403
      %vm405 = vcmp.lt.s32.totalorder %v319, 1
      %v406 = vsel %vm405, %v402, %v404
      %v407 = vsel %vm405, %v404, %v402
      %s408 = scalar_lea.vmem %s4, 3
      %v409 = vld [vmem:[%s408] ss:$8 sm:$0x3]
      %v411 = vlaneseq
      %v412 = vshrl.u32 %v411, 7
      %v413 = vsub.s32 0, %v412
      %v414 = vrot.slane %v409, %v413
      %v415 = vlaneseq
      %v416 = vshrl.u32 %v415, 7
      %v417 = vsub.s32 1, %v416
      %v418 = vrot.slane %v409, %v417
      %v421 = vmul.f32 %v407, %v414
      %v422 = vmul.f32 %v406, %v418
      %v425 = vrot.slane %v421, 7
      %v426 = vrot.slane %v422, 7
      %429 = vst [vmem:[#allocation2 + $0x10] sm:$0xe] %v425
      %430 = vst [vmem:[#allocation2 + $0x18] sm:$0xe] %v426
      %v433 = vrot.slane %v310, 4
      %v434 = vrot.slane %v312, 4
      %437 = vst [vmem:[#allocation2 + $0x10] sm:$0x70] %v433
      %438 = vst [vmem:[#allocation2 + $0x18] sm:$0x70] %v434
      %439 = vrot.lane.b32.xlu0 %v310, 127
      %v440 = vpop.permute.xlu0 %439
      %441 = vrot.lane.b32.xlu0 %v312, 127
      %v442 = vpop.permute.xlu0 %441
      %vm443 = vcmp.lt.s32.totalorder %v319, 127
      %v444 = vsel %vm443, %v440, %v442
      %v445 = vsel %vm443, %v442, %v440
      %s446 = scalar_lea.vmem %s4, 5
      %v447 = vld [vmem:[%s446] ss:$8 sm:$0x3]
      %v449 = vlaneseq
      %v450 = vshrl.u32 %v449, 7
      %v451 = vsub.s32 0, %v450
      %v452 = vrot.slane %v447, %v451
      %v453 = vlaneseq
      %v454 = vshrl.u32 %v453, 7
      %v455 = vsub.s32 1, %v454
      %v456 = vrot.slane %v447, %v455
      %v459 = vmul.f32 %v444, %v452
      %v460 = vmul.f32 %v445, %v456
      %v463 = vrot.slane %v459, 1
      %v464 = vrot.slane %v460, 1
      %467 = vst [vmem:[#allocation2 + $0x10] sm:$0x80] %v463
      %468 = vst [vmem:[#allocation2 + $0x18] sm:$0x80] %v464
      %469 = vst [vmem:[#allocation2 + $0x20] sm:$0x3] %v463
      %470 = vst [vmem:[#allocation2 + $0x28] sm:$0x3] %v464
      %471 = vrot.lane.b32.xlu0 %v310, 113
      %v472 = vpop.permute.xlu0 %471
      %473 = vrot.lane.b32.xlu0 %v312, 113
      %v474 = vpop.permute.xlu0 %473
      %vm475 = vcmp.lt.s32.totalorder %v319, 113
      %v476 = vsel %vm475, %v472, %v474
      %v477 = vsel %vm475, %v474, %v472
      %s478 = scalar_lea.vmem %s4, 6
      %v479 = vld [vmem:[%s478] ss:$8 sm:$0x3]
      %v481 = vlaneseq
      %v482 = vshrl.u32 %v481, 7
      %v483 = vsub.s32 0, %v482
      %v484 = vrot.slane %v479, %v483
      %v485 = vlaneseq
      %v486 = vshrl.u32 %v485, 7
      %v487 = vsub.s32 1, %v486
      %v488 = vrot.slane %v479, %v487
      %v491 = vmul.f32 %v476, %v484
      %v492 = vmul.f32 %v477, %v488
      %v495 = vrot.slane %v491, 6
      %v496 = vrot.slane %v492, 6
      %499 = vst [vmem:[#allocation2 + $0x20] sm:$0x1c] %v495
      %500 = vst [vmem:[#allocation2 + $0x28] sm:$0x1c] %v496
      %501 = vrot.lane.b32.xlu0 %v310, 112
      %v502 = vpop.permute.xlu0 %501
      %503 = vrot.lane.b32.xlu0 %v312, 112
      %v504 = vpop.permute.xlu0 %503
      %vm505 = vcmp.lt.s32.totalorder %v319, 112
      %v506 = vsel %vm505, %v502, %v504
      %v507 = vsel %vm505, %v504, %v502
      %s508 = scalar_lea.vmem %s4, 7
      %v509 = vld [vmem:[%s508] ss:$8 sm:$0x3]
      %v511 = vlaneseq
      %v512 = vshrl.u32 %v511, 7
      %v513 = vsub.s32 0, %v512
      %v514 = vrot.slane %v509, %v513
      %v515 = vlaneseq
      %v516 = vshrl.u32 %v515, 7
      %v517 = vsub.s32 1, %v516
      %v518 = vrot.slane %v509, %v517
      %v521 = vmul.f32 %v506, %v514
      %v522 = vmul.f32 %v507, %v518
      %v525 = vrot.slane %v521, 3
      %v526 = vrot.slane %v522, 3
      %529 = vst [vmem:[#allocation2 + $0x20] sm:$0xe0] %v525
      %530 = vst [vmem:[#allocation2 + $0x28] sm:$0xe0] %v526
      %531 = vrot.lane.b32.xlu0 %v310, 111
      %v532 = vpop.permute.xlu0 %531
      %533 = vrot.lane.b32.xlu0 %v312, 111
      %v534 = vpop.permute.xlu0 %533
      %vm535 = vcmp.lt.s32.totalorder %v319, 111
      %v536 = vsel %vm535, %v532, %v534
      %v537 = vsel %vm535, %v534, %v532
      %s538 = scalar_lea.vmem %s4, 16
      %v539 = vld [vmem:[%s538] ss:$8 sm:$0x3]
      %v541 = vlaneseq
      %v542 = vshrl.u32 %v541, 7
      %v543 = vsub.s32 0, %v542
      %v544 = vrot.slane %v539, %v543
      %v545 = vlaneseq
      %v546 = vshrl.u32 %v545, 7
      %v547 = vsub.s32 1, %v546
      %v548 = vrot.slane %v539, %v547
      %v551 = vmul.f32 %v536, %v544
      %v552 = vmul.f32 %v537, %v548
      %553 = vst [vmem:[#allocation2 + $0x30] sm:$0x7] %v551
      %554 = vst [vmem:[#allocation2 + $0x38] sm:$0x7] %v552
      %v555 = vld [vmem:[%s2] sm:$0xff]
      %v556 = vld [vmem:[%s2 + $0x8] sm:$0xff]
      %v557 = vld [vmem:[%s2 + $0x10] sm:$0xff]
      %v558 = vld [vmem:[%s2 + $0x18] sm:$0xff]
      %v559 = vld [vmem:[%s2 + $0x20] sm:$0xff]
      %v560 = vld [vmem:[%s2 + $0x28] sm:$0xff]
      %v561 = vld [vmem:[%s2 + $0x30] sm:$0xff]
      %v562 = vld [vmem:[%s2 + $0x38] sm:$0xff]
      %v563 = vld [vmem:[%s2 + $0x40] sm:$0xff]
      %v564 = vld [vmem:[%s2 + $0x48] sm:$0xff]
      %v565 = vld [vmem:[%s2 + $0x50] sm:$0xff]
      %v566 = vld [vmem:[%s2 + $0x58] sm:$0xff]
      %v567 = vld [vmem:[%s2 + $0x60] sm:$0xff]
      %v568 = vld [vmem:[%s2 + $0x68] sm:$0xff]
      %v569 = vld [vmem:[%s2 + $0x70] sm:$0xff]
      %v570 = vld [vmem:[%s2 + $0x78] sm:$0xff]
      %v571 = vld [vmem:[#allocation2] sm:$0xff]
      %v572 = vld [vmem:[#allocation2 + $0x8] sm:$0xff]
      %v573 = vld [vmem:[#allocation2 + $0x10] sm:$0xff]
      %v574 = vld [vmem:[#allocation2 + $0x18] sm:$0xff]
      %v575 = vld [vmem:[#allocation2 + $0x20] sm:$0xff]
      %v576 = vld [vmem:[#allocation2 + $0x28] sm:$0xff]
      %v577 = vld [vmem:[#allocation2 + $0x30] sm:$0x7]
      %v578 = vld [vmem:[#allocation2 + $0x38] sm:$0x7]
      %v579 = vld [vmem:[%s3] sm:$0xff]
      %v580 = vld [vmem:[%s3 + $0x8] sm:$0xff]
      %v581 = vld [vmem:[%s3 + $0x10] sm:$0xff]
      %v582 = vld [vmem:[%s3 + $0x18] sm:$0xff]
      %v583 = vld [vmem:[%s3 + $0x20] sm:$0xff]
      %v584 = vld [vmem:[%s3 + $0x28] sm:$0xff]
      %v585 = vld [vmem:[%s3 + $0x30] sm:$0xff]
      %v586 = vld [vmem:[%s3 + $0x38] sm:$0xff]
      %v587 = vld [vmem:[%s3 + $0x40] sm:$0xff]
      %v588 = vld [vmem:[%s3 + $0x48] sm:$0xff]
      %v589 = vld [vmem:[%s3 + $0x50] sm:$0xff]
      %v590 = vld [vmem:[%s3 + $0x58] sm:$0xff]
      %v591 = vld [vmem:[%s3 + $0x60] sm:$0xff]
      %v592 = vld [vmem:[%s3 + $0x68] sm:$0xff]
      %v593 = vld [vmem:[%s3 + $0x70] sm:$0xff]
      %v594 = vld [vmem:[%s3 + $0x78] sm:$0xff]
      %596 = vset.pattern.permute.xlu0 0
      %597 = vperm.xlu0 %596, %v579
      %v598 = vpop.permute.xlu0 %597
      %601 = vset.pattern.permute.xlu0 0
      %602 = vperm.xlu0 %601, %v580
      %v603 = vpop.permute.xlu0 %602
      %606 = vset.pattern.permute.xlu0 0
      %607 = vperm.xlu0 %606, %v581
      %v608 = vpop.permute.xlu0 %607
      %611 = vset.pattern.permute.xlu0 0
      %612 = vperm.xlu0 %611, %v582
      %v613 = vpop.permute.xlu0 %612
      %616 = vset.pattern.permute.xlu0 0
      %617 = vperm.xlu0 %616, %v583
      %v618 = vpop.permute.xlu0 %617
      %621 = vset.pattern.permute.xlu0 0
      %622 = vperm.xlu0 %621, %v584
      %v623 = vpop.permute.xlu0 %622
      %626 = vset.pattern.permute.xlu0 0
      %627 = vperm.xlu0 %626, %v585
      %v628 = vpop.permute.xlu0 %627
      %631 = vset.pattern.permute.xlu0 0
      %632 = vperm.xlu0 %631, %v586
      %v633 = vpop.permute.xlu0 %632
      %636 = vset.pattern.permute.xlu0 0
      %637 = vperm.xlu0 %636, %v587
      %v638 = vpop.permute.xlu0 %637
      %641 = vset.pattern.permute.xlu0 0
      %642 = vperm.xlu0 %641, %v588
      %v643 = vpop.permute.xlu0 %642
      %646 = vset.pattern.permute.xlu0 0
      %647 = vperm.xlu0 %646, %v589
      %v648 = vpop.permute.xlu0 %647
      %651 = vset.pattern.permute.xlu0 0
      %652 = vperm.xlu0 %651, %v590
      %v653 = vpop.permute.xlu0 %652
      %656 = vset.pattern.permute.xlu0 0
      %657 = vperm.xlu0 %656, %v591
      %v658 = vpop.permute.xlu0 %657
      %661 = vset.pattern.permute.xlu0 0
      %662 = vperm.xlu0 %661, %v592
      %v663 = vpop.permute.xlu0 %662
      %666 = vset.pattern.permute.xlu0 0
      %667 = vperm.xlu0 %666, %v593
      %v668 = vpop.permute.xlu0 %667
      %671 = vset.pattern.permute.xlu0 0
      %672 = vperm.xlu0 %671, %v594
      %v673 = vpop.permute.xlu0 %672
      %vm675 = vcmask 220160
      %v677 = vsel %vm675, %v555, 0
      %v680 = vsel %vm675, %v556, 0
      %v683 = vsel %vm675, %v557, 0
      %v686 = vsel %vm675, %v558, 0
      %v689 = vsel %vm675, %v559, 0
      %v692 = vsel %vm675, %v560, 0
      %v695 = vsel %vm675, %v561, 0
      %v698 = vsel %vm675, %v562, 0
      %v701 = vsel %vm675, %v563, 0
      %v704 = vsel %vm675, %v564, 0
      %v707 = vsel %vm675, %v565, 0
      %v710 = vsel %vm675, %v566, 0
      %v713 = vsel %vm675, %v567, 0
      %v716 = vsel %vm675, %v568, 0
      %v719 = vsel %vm675, %v569, 0
      %v722 = vsel %vm675, %v570, 0
      %vm724 = vcmask 1042432
      %v726 = vsel %vm724, %v577, 0
      %v729 = vsel %vm724, %v578, 0
      %731 = vmatprep.subr.mxu0 0.0
      %732 = vmatpush1.msra.mxu0 0.0
      %733 = vmatprep.subr.mxu0 0.0
      %734 = vmatpush1.msra.mxu0 0.0
      %735 = vmatprep.subr.mxu0 0.0
      %736 = vmatpush1.msra.mxu0 0.0
      %737 = vmatprep.subr.mxu0 0.0
      %738 = vmatpush1.msra.mxu0 0.0
      %739 = vmatprep.subr.mxu0 0.0
      %740 = vmatpush1.msra.mxu0 0.0
      %741 = vmatprep.subr.mxu0 0.0
      %742 = vmatpush1.msra.mxu0 0.0
      %743 = vmatprep.subr.mxu0 0.0
      %744 = vmatpush1.msra.mxu0 0.0
      %745 = vmatprep.subr.mxu0 0.0
      %746 = vmatpush1.msra.mxu0 0.0
      %747 = vmatprep.subr.mxu0 0.0
      %748 = vmatpush1.msra.mxu0 0.0
      %749 = vmatprep.subr.mxu0 0.0
      %750 = vmatpush1.msra.mxu0 0.0
      %751 = vmatprep.subr.mxu0 0.0
      %752 = vmatpush1.msra.mxu0 0.0
      %753 = vmatprep.subr.mxu0 0.0
      %754 = vmatpush1.msra.mxu0 0.0
      %755 = vmatprep.subr.mxu0 %v729
      %756 = vmatpush1.msra.mxu0 %v726
      %757 = vmatprep.subr.mxu0 %v576
      %758 = vmatpush1.msra.mxu0 %v575
      %759 = vmatprep.subr.mxu0 %v574
      %760 = vmatpush1.msra.mxu0 %v573
      %761 = vmatprep.subr.mxu0 %v572
      %762 = vmatpush1.msra.mxu0 %v571
      %763 = vmatprep.subr.mxu0 0.0
      %764 = vmatpush2.msra.mxu0 0.0
      %765 = vmatprep.subr.mxu0 0.0
      %766 = vmatpush2.msra.mxu0 0.0
      %767 = vmatprep.subr.mxu0 0.0
      %768 = vmatpush2.msra.mxu0 0.0
      %769 = vmatprep.subr.mxu0 0.0
      %770 = vmatpush2.msra.mxu0 0.0
      %771 = vmatprep.subr.mxu0 0.0
      %772 = vmatpush2.msra.mxu0 0.0
      %773 = vmatprep.subr.mxu0 0.0
      %774 = vmatpush2.msra.mxu0 0.0
      %775 = vmatprep.subr.mxu0 0.0
      %776 = vmatpush2.msra.mxu0 0.0
      %777 = vmatprep.subr.mxu0 0.0
      %778 = vmatpush2.msra.mxu0 0.0
      %779 = vmatprep.subr.mxu0 0.0
      %780 = vmatpush2.msra.mxu0 0.0
      %781 = vmatprep.subr.mxu0 0.0
      %782 = vmatpush2.msra.mxu0 0.0
      %783 = vmatprep.subr.mxu0 0.0
      %784 = vmatpush2.msra.mxu0 0.0
      %785 = vmatprep.subr.mxu0 0.0
      %786 = vmatpush2.msra.mxu0 0.0
      %787 = vmatprep.subr.mxu0 0.0
      %788 = vmatpush2.msra.mxu0 0.0
      %789 = vmatprep.subr.mxu0 0.0
      %790 = vmatpush2.msra.mxu0 0.0
      %791 = vmatprep.subr.mxu0 0.0
      %792 = vmatpush2.msra.mxu0 0.0
      %793 = vmatprep.subr.mxu0 0.0
      %794 = vmatpush2.msra.mxu0 0.0
      %795 = vmatprep.mubr.f32.mxu0 0.0
      %796 = vmatmul.mubr.f32.gmra.mxu0 %v677
      %v797 = vpop.f32.mrf.mxu0
      %v798 = vadd.f32 %v598, %v797
      %v799 = vpop.f32.mrf.mxu0
      %v800 = vadd.f32 %v598, %v799
      %801 = vmatprep.mubr.f32.mxu0 0.0
      %802 = vmatmul.mubr.f32.gmra.mxu0 %v680
      %v803 = vpop.f32.mrf.mxu0
      %v804 = vadd.f32 %v603, %v803
      %v805 = vpop.f32.mrf.mxu0
      %v806 = vadd.f32 %v603, %v805
      %807 = vmatprep.mubr.f32.mxu0 0.0
      %808 = vmatmul.mubr.f32.gmra.mxu0 %v683
      %v809 = vpop.f32.mrf.mxu0
      %v810 = vadd.f32 %v608, %v809
      %v811 = vpop.f32.mrf.mxu0
      %v812 = vadd.f32 %v608, %v811
      %813 = vmatprep.mubr.f32.mxu0 0.0
      %814 = vmatmul.mubr.f32.gmra.mxu0 %v686
      %v815 = vpop.f32.mrf.mxu0
      %v816 = vadd.f32 %v613, %v815
      %v817 = vpop.f32.mrf.mxu0
      %v818 = vadd.f32 %v613, %v817
      %819 = vmatprep.mubr.f32.mxu0 0.0
      %820 = vmatmul.mubr.f32.gmra.mxu0 %v689
      %v821 = vpop.f32.mrf.mxu0
      %v822 = vadd.f32 %v618, %v821
      %v823 = vpop.f32.mrf.mxu0
      %v824 = vadd.f32 %v618, %v823
      %825 = vmatprep.mubr.f32.mxu0 0.0
      %826 = vmatmul.mubr.f32.gmra.mxu0 %v692
      %v827 = vpop.f32.mrf.mxu0
      %v828 = vadd.f32 %v623, %v827
      %v829 = vpop.f32.mrf.mxu0
      %v830 = vadd.f32 %v623, %v829
      %831 = vmatprep.mubr.f32.mxu0 0.0
      %832 = vmatmul.mubr.f32.gmra.mxu0 %v695
      %v833 = vpop.f32.mrf.mxu0
      %v834 = vadd.f32 %v628, %v833
      %v835 = vpop.f32.mrf.mxu0
      %v836 = vadd.f32 %v628, %v835
      %837 = vmatprep.mubr.f32.mxu0 0.0
      %838 = vmatmul.mubr.f32.gmra.mxu0 %v698
      %v839 = vpop.f32.mrf.mxu0
      %v840 = vadd.f32 %v633, %v839
      %v841 = vpop.f32.mrf.mxu0
      %v842 = vadd.f32 %v633, %v841
      %843 = vmatprep.mubr.f32.mxu0 0.0
      %844 = vmatmul.mubr.f32.gmra.mxu0 %v701
      %v845 = vpop.f32.mrf.mxu0
      %v846 = vadd.f32 %v638, %v845
      %v847 = vpop.f32.mrf.mxu0
      %v848 = vadd.f32 %v638, %v847
      %849 = vmatprep.mubr.f32.mxu0 0.0
      %850 = vmatmul.mubr.f32.gmra.mxu0 %v704
      %v851 = vpop.f32.mrf.mxu0
      %v852 = vadd.f32 %v643, %v851
      %v853 = vpop.f32.mrf.mxu0
      %v854 = vadd.f32 %v643, %v853
      %855 = vmatprep.mubr.f32.mxu0 0.0
      %856 = vmatmul.mubr.f32.gmra.mxu0 %v707
      %v857 = vpop.f32.mrf.mxu0
      %v858 = vadd.f32 %v648, %v857
      %v859 = vpop.f32.mrf.mxu0
      %v860 = vadd.f32 %v648, %v859
      %861 = vmatprep.mubr.f32.mxu0 0.0
      %862 = vmatmul.mubr.f32.gmra.mxu0 %v710
      %v863 = vpop.f32.mrf.mxu0
      %v864 = vadd.f32 %v653, %v863
      %v865 = vpop.f32.mrf.mxu0
      %v866 = vadd.f32 %v653, %v865
      %867 = vmatprep.mubr.f32.mxu0 0.0
      %868 = vmatmul.mubr.f32.gmra.mxu0 %v713
      %v869 = vpop.f32.mrf.mxu0
      %v870 = vadd.f32 %v658, %v869
      %v871 = vpop.f32.mrf.mxu0
      %v872 = vadd.f32 %v658, %v871
      %873 = vmatprep.mubr.f32.mxu0 0.0
      %874 = vmatmul.mubr.f32.gmra.mxu0 %v716
      %v875 = vpop.f32.mrf.mxu0
      %v876 = vadd.f32 %v663, %v875
      %v877 = vpop.f32.mrf.mxu0
      %v878 = vadd.f32 %v663, %v877
      %879 = vmatprep.mubr.f32.mxu0 0.0
      %880 = vmatmul.mubr.f32.gmra.mxu0 %v719
      %v881 = vpop.f32.mrf.mxu0
      %v882 = vadd.f32 %v668, %v881
      %v883 = vpop.f32.mrf.mxu0
      %v884 = vadd.f32 %v668, %v883
      %885 = vmatprep.mubr.f32.mxu0 0.0
      %886 = vmatmul.mubr.f32.gmra.mxu0 %v722
      %v887 = vpop.f32.mrf.mxu0
      %v888 = vadd.f32 %v673, %v887
      %v889 = vpop.f32.mrf.mxu0
      %v890 = vadd.f32 %v673, %v889
      %891 = vdwg.mxu0
      %vm892 = vcmp.ge.f32.partialorder %v798, 0.0
      %vm893 = vcmp.ge.f32.partialorder %v800, 0.0
      %vm894 = vcmp.ge.f32.partialorder %v804, 0.0
      %vm895 = vcmp.ge.f32.partialorder %v806, 0.0
      %vm896 = vcmp.ge.f32.partialorder %v810, 0.0
      %vm897 = vcmp.ge.f32.partialorder %v812, 0.0
      %vm898 = vcmp.ge.f32.partialorder %v816, 0.0
      %vm899 = vcmp.ge.f32.partialorder %v818, 0.0
      %vm900 = vcmp.ge.f32.partialorder %v822, 0.0
      %vm901 = vcmp.ge.f32.partialorder %v824, 0.0
      %vm902 = vcmp.ge.f32.partialorder %v828, 0.0
      %vm903 = vcmp.ge.f32.partialorder %v830, 0.0
      %vm904 = vcmp.ge.f32.partialorder %v834, 0.0
      %vm905 = vcmp.ge.f32.partialorder %v836, 0.0
      %vm906 = vcmp.ge.f32.partialorder %v840, 0.0
      %vm907 = vcmp.ge.f32.partialorder %v842, 0.0
      %vm908 = vcmp.ge.f32.partialorder %v846, 0.0
      %vm909 = vcmp.ge.f32.partialorder %v848, 0.0
      %vm910 = vcmp.ge.f32.partialorder %v852, 0.0
      %vm911 = vcmp.ge.f32.partialorder %v854, 0.0
      %vm912 = vcmp.ge.f32.partialorder %v858, 0.0
      %vm913 = vcmp.ge.f32.partialorder %v860, 0.0
      %vm914 = vcmp.ge.f32.partialorder %v864, 0.0
      %vm915 = vcmp.ge.f32.partialorder %v866, 0.0
      %vm916 = vcmp.ge.f32.partialorder %v870, 0.0
      %vm917 = vcmp.ge.f32.partialorder %v872, 0.0
      %vm918 = vcmp.ge.f32.partialorder %v876, 0.0
      %vm919 = vcmp.ge.f32.partialorder %v878, 0.0
      %vm920 = vcmp.ge.f32.partialorder %v882, 0.0
      %vm921 = vcmp.ge.f32.partialorder %v884, 0.0
      %vm922 = vcmp.ge.f32.partialorder %v888, 0.0
      %vm923 = vcmp.ge.f32.partialorder %v890, 0.0
      %v924 = vmul.f32 %v798, 0.2
      %v925 = vmul.f32 %v800, 0.2
      %v926 = vmul.f32 %v804, 0.2
      %v927 = vmul.f32 %v806, 0.2
      %v928 = vmul.f32 %v810, 0.2
      %v929 = vmul.f32 %v812, 0.2
      %v930 = vmul.f32 %v816, 0.2
      %v931 = vmul.f32 %v818, 0.2
      %v932 = vmul.f32 %v822, 0.2
      %v933 = vmul.f32 %v824, 0.2
      %v934 = vmul.f32 %v828, 0.2
      %v935 = vmul.f32 %v830, 0.2
      %v936 = vmul.f32 %v834, 0.2
      %v937 = vmul.f32 %v836, 0.2
      %v938 = vmul.f32 %v840, 0.2
      %v939 = vmul.f32 %v842, 0.2
      %v940 = vmul.f32 %v846, 0.2
      %v941 = vmul.f32 %v848, 0.2
      %v942 = vmul.f32 %v852, 0.2
      %v943 = vmul.f32 %v854, 0.2
      %v944 = vmul.f32 %v858, 0.2
      %v945 = vmul.f32 %v860, 0.2
      %v946 = vmul.f32 %v864, 0.2
      %v947 = vmul.f32 %v866, 0.2
      %v948 = vmul.f32 %v870, 0.2
      %v949 = vmul.f32 %v872, 0.2
      %v950 = vmul.f32 %v876, 0.2
      %v951 = vmul.f32 %v878, 0.2
      %v952 = vmul.f32 %v882, 0.2
      %v953 = vmul.f32 %v884, 0.2
      %v954 = vmul.f32 %v888, 0.2
      %v955 = vmul.f32 %v890, 0.2
      %v956 = vsel %vm892, %v798, %v924
      %v957 = vsel %vm893, %v800, %v925
      %v958 = vsel %vm894, %v804, %v926
      %v959 = vsel %vm895, %v806, %v927
      %v960 = vsel %vm896, %v810, %v928
      %v961 = vsel %vm897, %v812, %v929
      %v962 = vsel %vm898, %v816, %v930
      %v963 = vsel %vm899, %v818, %v931
      %v964 = vsel %vm900, %v822, %v932
      %v965 = vsel %vm901, %v824, %v933
      %v966 = vsel %vm902, %v828, %v934
      %v967 = vsel %vm903, %v830, %v935
      %v968 = vsel %vm904, %v834, %v936
      %v969 = vsel %vm905, %v836, %v937
      %v970 = vsel %vm906, %v840, %v938
      %v971 = vsel %vm907, %v842, %v939
      %v972 = vsel %vm908, %v846, %v940
      %v973 = vsel %vm909, %v848, %v941
      %v974 = vsel %vm910, %v852, %v942
      %v975 = vsel %vm911, %v854, %v943
      %v976 = vsel %vm912, %v858, %v944
      %v977 = vsel %vm913, %v860, %v945
      %v978 = vsel %vm914, %v864, %v946
      %v979 = vsel %vm915, %v866, %v947
      %v980 = vsel %vm916, %v870, %v948
      %v981 = vsel %vm917, %v872, %v949
      %v982 = vsel %vm918, %v876, %v950
      %v983 = vsel %vm919, %v878, %v951
      %v984 = vsel %vm920, %v882, %v952
      %v985 = vsel %vm921, %v884, %v953
      %v986 = vsel %vm922, %v888, %v954
      %v987 = vsel %vm923, %v890, %v955
      %988 = vst [vmem:[%s221] sm:$0xff] %v956
      %989 = vst [vmem:[%s221 + $0x8] sm:$0xff] %v957
      %990 = vst [vmem:[%s221 + $0x10] sm:$0xff] %v958
      %991 = vst [vmem:[%s221 + $0x18] sm:$0xff] %v959
      %992 = vst [vmem:[%s221 + $0x20] sm:$0xff] %v960
      %993 = vst [vmem:[%s221 + $0x28] sm:$0xff] %v961
      %994 = vst [vmem:[%s221 + $0x30] sm:$0xff] %v962
      %995 = vst [vmem:[%s221 + $0x38] sm:$0xff] %v963
      %996 = vst [vmem:[%s221 + $0x40] sm:$0xff] %v964
      %997 = vst [vmem:[%s221 + $0x48] sm:$0xff] %v965
      %998 = vst [vmem:[%s221 + $0x50] sm:$0xff] %v966
      %999 = vst [vmem:[%s221 + $0x58] sm:$0xff] %v967
      %1000 = vst [vmem:[%s221 + $0x60] sm:$0xff] %v968
      %1001 = vst [vmem:[%s221 + $0x68] sm:$0xff] %v969
      %1002 = vst [vmem:[%s221 + $0x70] sm:$0xff] %v970
      %1003 = vst [vmem:[%s221 + $0x78] sm:$0xff] %v971
      %1004 = vst [vmem:[%s221 + $0x80] sm:$0xff] %v972
      %1005 = vst [vmem:[%s221 + $0x88] sm:$0xff] %v973
      %1006 = vst [vmem:[%s221 + $0x90] sm:$0xff] %v974
      %1007 = vst [vmem:[%s221 + $0x98] sm:$0xff] %v975
      %1008 = vst [vmem:[%s221 + $0xa0] sm:$0xff] %v976
      %1009 = vst [vmem:[%s221 + $0xa8] sm:$0xff] %v977
      %1010 = vst [vmem:[%s221 + $0xb0] sm:$0xff] %v978
      %1011 = vst [vmem:[%s221 + $0xb8] sm:$0xff] %v979
      %1012 = vst [vmem:[%s221 + $0xc0] sm:$0xff] %v980
      %1013 = vst [vmem:[%s221 + $0xc8] sm:$0xff] %v981
      %1014 = vst [vmem:[%s221 + $0xd0] sm:$0xff] %v982
      %1015 = vst [vmem:[%s221 + $0xd8] sm:$0xff] %v983
      %1016 = vst [vmem:[%s221 + $0xe0] sm:$0xff] %v984
      %1017 = vst [vmem:[%s221 + $0xe8] sm:$0xff] %v985
      %1018 = vst [vmem:[%s221 + $0xf0] sm:$0xff] %v986
      %1019 = vst [vmem:[%s221 + $0xf8] sm:$0xff] %v987
      %p1020 = scmp.lt.s32.totalorder %s16, 1
      %s1021 = scalar_select %p1020, %s16, 1
      %s1022 = smul.addr %s1021, 32
      %s1023 = smul.addr %s1022, 8
      %s1024 = scalar_lea.vmem %s5, %s1023
      // Predicated region
      $region41: #{spade_forward.4} parent=39 // pred_check
        %p1025 = pneg %p144
      $region42: #{spade_forward.4} parent=39 // pred_check_branch
        %1027 = sbr.rel (%p1025) target = $region44
      $region43: #{spade_forward.4} parent=39 // pred_region
        _
      $region44: #{spade_forward.4} parent=39 // pred_fallthru
        _
    $region40: #{spade_forward.4} parent=5 // pred_fallthru
      _
    %p1028 = scmp.le.s32.totalorder 2, %s11
    // Predicated region
    $region45: #{spade_forward.4} parent=5 // pred_check
      %p1029 = pneg %p1028
    $region46: #{spade_forward.4} parent=5 // pred_check_branch
      %1031 = sbr.rel (%p1029) target = $region48
    $region47: #{spade_forward.4} parent=5 // pred_region
      %s1032 = ssub.s32 %s11, 2
      // Predicated region
      $region49: #{spade_forward.4} parent=47 // pred_check
        %p1033 = pneg %p150
      $region50: #{spade_forward.4} parent=47 // pred_check_branch
        %1035 = sbr.rel (%p1033) target = $region52
      $region51: #{spade_forward.4} parent=47 // pred_region
        %p1036 = scmp.lt.s32.totalorder %s17, 1
        %s1037 = scalar_select %p1036, %s17, 1
        %s1038 = smul.addr %s1037, 32
        %s1039 = smul.addr %s1038, 8
        %s1040 = scalar_lea.vmem %s5, %s1039
      $region52: #{spade_forward.4} parent=47 // pred_fallthru
        _
    $region48: #{spade_forward.4} parent=5 // pred_fallthru
      _
  $region6: #{spade_forward.4} parent=0 // loop_footer
    %s15 = sadd.s32 1, %s11
  $region7: #{spade_forward.4} parent=0 // loop_footer_branch
    %10 = sbr.rel target = $region3
  $region8: #{spade_forward.4} parent=0 // loop_exit
    _

// kernel: spade_forward.5
$region0: #{spade_forward.5}
  #allocation0 [shape = 'u32[]', space=smem, size = 0x4, offset = 0x4, fixed_abs, tag = 'smem constant byte address 0x4 - core index']
  #allocation1 [shape = 'u32[144,128]{1,0:T(1,128)}', space=vmem, size = 0x12000, scoped, tag = 'internal scratch']
  #allocation2 [shape = 'f32[1152,256]{1,0:T(8,128)}', space=vmem, size = 0x120000, scoped, tag = 'scratch operand']
  %s0 = inlined_call_operand.vmem [shape: f32[2,128,256], index: 0, kind: input, shape index: {}]
  %s1 = inlined_call_operand.vmem [shape: f32[64,1152], index: 1, kind: input, shape index: {}]
  %s2 = inlined_call_operand.vmem [shape: f32[64,1], index: 2, kind: input, shape index: {}]
  %s3 = inlined_call_operand.vmem [shape: f32[9,256], index: 3, kind: input, shape index: {}]
  %s4 = inlined_call_operand.vmem [shape: f32[2,32,256], index: 4, kind: input, shape index: {}]
  %s5 = inlined_call_operand.vmem [shape: f32[2,32,256], index: 5, kind: output, shape index: {}]
  %s6 = sld [smem:[#allocation0]]
  $region53: #{spade_forward.5} parent=0
    _
  %s8 = ssub.s32 1, %s6
  %s9 = scalar_select 0, %s8, %s6
  loop: start=0, step=1, limit=4
  $region2: #{spade_forward.5} parent=0 // loop_pre_header
    _
  $region3: #{spade_forward.5} parent=0 // loop_header
    %s11 = sphi 0, %s15
    %p12 = scmp.ge.s32.totalorder %s11, 4
    %s21 = sphi 0, %s23
    %s24 = sphi 0, %s21
    %s25 = sphi 0, %s24
    %s41 = sphi 0, %s25
    %s45 = sphi 0, %s45
    %s47 = sphi 0, %s45
    %s48 = sphi 0, %s47
    %s62 = sphi 0, %s48
    %s66 = sphi 0, %s66
    %s68 = sphi 0, %s66
    %s69 = sphi 0, %s68
    %s83 = sphi 0, %s69
    %s87 = sphi 0, %s87
    %s89 = sphi 0, %s87
    %s90 = sphi 0, %s89
    %s104 = sphi 0, %s90
    %s110 = sphi 0, %s112
    %s113 = sphi 0, %s110
    %s114 = sphi 0, %s113
    %s130 = sphi 0, %s114
    %s136 = sphi 0, %s138
    %s139 = sphi 0, %s136
    %s140 = sphi 0, %s139
    %s156 = sphi 0, %s140
  $region4: #{spade_forward.5} parent=0 // loop_header_branch
    %14 = sbr.rel (%p12) target = $region8
  $region5: #{spade_forward.5} parent=0 // loop_body
    %s16 = ssub.s32 %s11, 1
    %s17 = ssub.s32 %s11, 2
    %s18 = sadd.s32 %s11, 1
    %s19 = ssub.s32 %s11, %s18
    %p20 = scmp.eq.s32.totalorder %s19, 0
    %s22 = sadd.s32 %s21, 1
    %s23 = scalar_select %p20, %s21, %s22
    %p26 = pneg %p20
    %p27 = scmp.eq.s32.totalorder %s11, 1
    %p28 = por %p26, %p27
    %p29 = scmp.ne.s32.totalorder %s21, %s24
    %p30 = scmp.eq.s32.totalorder %s11, 0
    %p31 = por %p29, %p30
    %p32 = scmp.ne.s32.totalorder %s21, %s24
    %p33 = scmp.eq.s32.totalorder %s16, 1
    %p34 = por %p32, %p33
    %p35 = scmp.ne.s32.totalorder %s24, %s25
    %p36 = scmp.eq.s32.totalorder %s16, 0
    %p37 = por %p35, %p36
    %p38 = scmp.ne.s32.totalorder %s24, %s25
    %p39 = scmp.eq.s32.totalorder %s17, 1
    %p40 = por %p38, %p39
    %p42 = scmp.ne.s32.totalorder %s25, %s41
    %p43 = scmp.eq.s32.totalorder %s17, 0
    %p44 = por %p42, %p43
    %s46 = sadd.s32 %s45, 1
    %p49 = scmp.eq.s32.totalorder %s11, 1
    %p50 = scmp.ne.s32.totalorder %s45, %s47
    %p51 = scmp.eq.s32.totalorder %s11, 0
    %p52 = por %p50, %p51
    %p53 = scmp.ne.s32.totalorder %s45, %s47
    %p54 = scmp.eq.s32.totalorder %s16, 1
    %p55 = por %p53, %p54
    %p56 = scmp.ne.s32.totalorder %s47, %s48
    %p57 = scmp.eq.s32.totalorder %s16, 0
    %p58 = por %p56, %p57
    %p59 = scmp.ne.s32.totalorder %s47, %s48
    %p60 = scmp.eq.s32.totalorder %s17, 1
    %p61 = por %p59, %p60
    %p63 = scmp.ne.s32.totalorder %s48, %s62
    %p64 = scmp.eq.s32.totalorder %s17, 0
    %p65 = por %p63, %p64
    %s67 = sadd.s32 %s66, 1
    %p70 = scmp.eq.s32.totalorder %s11, 1
    %p71 = scmp.ne.s32.totalorder %s66, %s68
    %p72 = scmp.eq.s32.totalorder %s11, 0
    %p73 = por %p71, %p72
    %p74 = scmp.ne.s32.totalorder %s66, %s68
    %p75 = scmp.eq.s32.totalorder %s16, 1
    %p76 = por %p74, %p75
    %p77 = scmp.ne.s32.totalorder %s68, %s69
    %p78 = scmp.eq.s32.totalorder %s16, 0
    %p79 = por %p77, %p78
    %p80 = scmp.ne.s32.totalorder %s68, %s69
    %p81 = scmp.eq.s32.totalorder %s17, 1
    %p82 = por %p80, %p81
    %p84 = scmp.ne.s32.totalorder %s69, %s83
    %p85 = scmp.eq.s32.totalorder %s17, 0
    %p86 = por %p84, %p85
    %s88 = sadd.s32 %s87, 1
    %p91 = scmp.eq.s32.totalorder %s11, 1
    %p92 = scmp.ne.s32.totalorder %s87, %s89
    %p93 = scmp.eq.s32.totalorder %s11, 0
    %p94 = por %p92, %p93
    %p95 = scmp.ne.s32.totalorder %s87, %s89
    %p96 = scmp.eq.s32.totalorder %s16, 1
    %p97 = por %p95, %p96
    %p98 = scmp.ne.s32.totalorder %s89, %s90
    %p99 = scmp.eq.s32.totalorder %s16, 0
    %p100 = por %p98, %p99
    %p101 = scmp.ne.s32.totalorder %s89, %s90
    %p102 = scmp.eq.s32.totalorder %s17, 1
    %p103 = por %p101, %p102
    %p105 = scmp.ne.s32.totalorder %s90, %s104
    %p106 = scmp.eq.s32.totalorder %s17, 0
    %p107 = por %p105, %p106
    %s108 = ssub.s32 %s11, %s18
    %p109 = scmp.eq.s32.totalorder %s108, 0
    %s111 = sadd.s32 %s110, 1
    %s112 = scalar_select %p109, %s110, %s111
    %p115 = pneg %p109
    %p116 = scmp.eq.s32.totalorder %s11, 1
    %p117 = por %p115, %p116
    %p118 = scmp.ne.s32.totalorder %s110, %s113
    %p119 = scmp.eq.s32.totalorder %s11, 0
    %p120 = por %p118, %p119
    %p121 = scmp.ne.s32.totalorder %s110, %s113
    %p122 = scmp.eq.s32.totalorder %s16, 1
    %p123 = por %p121, %p122
    %p124 = scmp.ne.s32.totalorder %s113, %s114
    %p125 = scmp.eq.s32.totalorder %s16, 0
    %p126 = por %p124, %p125
    %p127 = scmp.ne.s32.totalorder %s113, %s114
    %p128 = scmp.eq.s32.totalorder %s17, 1
    %p129 = por %p127, %p128
    %p131 = scmp.ne.s32.totalorder %s114, %s130
    %p132 = scmp.eq.s32.totalorder %s17, 0
    %p133 = por %p131, %p132
    %s134 = ssub.s32 %s11, %s18
    %p135 = scmp.eq.s32.totalorder %s134, 0
    %s137 = sadd.s32 %s136, 1
    %s138 = scalar_select %p135, %s136, %s137
    %p141 = pneg %p135
    %p142 = scmp.eq.s32.totalorder %s11, 1
    %p143 = por %p141, %p142
    %p144 = scmp.ne.s32.totalorder %s136, %s139
    %p145 = scmp.eq.s32.totalorder %s11, 0
    %p146 = por %p144, %p145
    %p147 = scmp.ne.s32.totalorder %s136, %s139
    %p148 = scmp.eq.s32.totalorder %s16, 1
    %p149 = por %p147, %p148
    %p150 = scmp.ne.s32.totalorder %s139, %s140
    %p151 = scmp.eq.s32.totalorder %s16, 0
    %p152 = por %p150, %p151
    %p153 = scmp.ne.s32.totalorder %s139, %s140
    %p154 = scmp.eq.s32.totalorder %s17, 1
    %p155 = por %p153, %p154
    %p157 = scmp.ne.s32.totalorder %s140, %s156
    %p158 = scmp.eq.s32.totalorder %s17, 0
    %p159 = por %p157, %p158
    %p160 = scmp.le.s32.totalorder 1, %s11
    %p161 = scmp.lt.s32.totalorder %s11, 3
    %p162 = pnand %p160, %p161
    %p163 = pneg %p162
    // Predicated region
    $region9: #{spade_forward.5} parent=5 // pred_check
      _
    $region10: #{spade_forward.5} parent=5 // pred_check_branch
      %165 = sbr.rel (%p162) target = $region12
    $region11: #{spade_forward.5} parent=5 // pred_region
      %s166 = ssub.s32 %s11, 1
      // Predicated region
      $region13: #{spade_forward.5} parent=11 // pred_check
        %p167 = pneg %p58
      $region14: #{spade_forward.5} parent=11 // pred_check_branch
        %169 = sbr.rel (%p167) target = $region16
      $region15: #{spade_forward.5} parent=11 // pred_region
        _
      $region16: #{spade_forward.5} parent=11 // pred_fallthru
        _
      // Predicated region
      $region17: #{spade_forward.5} parent=11 // pred_check
        %p170 = pneg %p79
      $region18: #{spade_forward.5} parent=11 // pred_check_branch
        %172 = sbr.rel (%p170) target = $region20
      $region19: #{spade_forward.5} parent=11 // pred_region
        _
      $region20: #{spade_forward.5} parent=11 // pred_fallthru
        _
      // Predicated region
      $region21: #{spade_forward.5} parent=11 // pred_check
        %p173 = pneg %p100
      $region22: #{spade_forward.5} parent=11 // pred_check_branch
        %175 = sbr.rel (%p173) target = $region24
      $region23: #{spade_forward.5} parent=11 // pred_region
        _
      $region24: #{spade_forward.5} parent=11 // pred_fallthru
        _
    $region12: #{spade_forward.5} parent=5 // pred_fallthru
      _
    %p176 = scmp.lt.s32.totalorder %s11, 2
    // Predicated region
    $region25: #{spade_forward.5} parent=5 // pred_check
      %p177 = pneg %p176
    $region26: #{spade_forward.5} parent=5 // pred_check_branch
      %179 = sbr.rel (%p177) target = $region28
    $region27: #{spade_forward.5} parent=5 // pred_region
      // Predicated region
      $region29: #{spade_forward.5} parent=27 // pred_check
        %p180 = pneg %p31
      $region30: #{spade_forward.5} parent=27 // pred_check_branch
        %182 = sbr.rel (%p180) target = $region32
      $region31: #{spade_forward.5} parent=27 // pred_region
        %p183 = scmp.lt.s32.totalorder %s11, 1
        %s184 = scalar_select %p183, %s11, 1
        %s185 = smul.addr %s184, 32
        %s186 = smul.addr %s185, 8
        %s187 = scalar_lea.vmem %s0, %s186
      $region32: #{spade_forward.5} parent=27 // pred_fallthru
        _
      // Predicated region
      $region33: #{spade_forward.5} parent=27 // pred_check
        %p188 = pneg %p120
      $region34: #{spade_forward.5} parent=27 // pred_check_branch
        %190 = sbr.rel (%p188) target = $region36
      $region35: #{spade_forward.5} parent=27 // pred_region
        %p191 = scmp.lt.s32.totalorder %s11, 1
        %s192 = scalar_select %p191, %s11, 1
        %s193 = smul.addr %s192, 8
        %s194 = smul.addr %s193, 8
        %s195 = scalar_lea.vmem %s4, %s194
      $region36: #{spade_forward.5} parent=27 // pred_fallthru
        _
    $region28: #{spade_forward.5} parent=5 // pred_fallthru
      _
    %p196 = scmp.le.s32.totalorder 1, %s11
    %p197 = scmp.lt.s32.totalorder %s11, 3
    %p198 = pnand %p196, %p197
    %p199 = pneg %p198
    // Predicated region
    $region37: #{spade_forward.5} parent=5 // pred_check
      _
    $region38: #{spade_forward.5} parent=5 // pred_check_branch
      %201 = sbr.rel (%p198) target = $region40
    $region39: #{spade_forward.5} parent=5 // pred_region
      %s202 = ssub.s32 %s11, 1
      %p203 = scmp.lt.s32.totalorder %s16, 1
      %s204 = scalar_select %p203, %s16, 1
      %s205 = smul.addr %s204, 32
      %s206 = smul.addr %s205, 8
      %s207 = scalar_lea.vmem %s0, %s206
      %p208 = pneg %p37
      %p209 = pneg %p34
      %p210 = pneg %p58
      %p211 = pneg %p55
      %p212 = pneg %p79
      %p213 = pneg %p76
      %p214 = pneg %p100
      %p215 = pneg %p97
      %p216 = scmp.lt.s32.totalorder %s16, 1
      %s217 = scalar_select %p216, %s16, 1
      %s218 = smul.addr %s217, 8
      %s219 = smul.addr %s218, 8
      %s220 = scalar_lea.vmem %s4, %s219
      %p221 = pneg %p126
      %p222 = pneg %p123
      %p223 = pneg %p152
      %p224 = pneg %p149
      %p225 = scmp.lt.s32.totalorder %s16, 1
      %s226 = scalar_select %p225, %s16, 1
      %s227 = smul.addr %s226, 8
      %s228 = smul.addr %s227, 8
      %s229 = scalar_lea.vmem %s5, %s228
      %p230 = scmp.lt.s32.totalorder %s16, 1
      %s231 = scalar_select %p230, %s16, 1
      %s232 = smul.addr %s231, 32
      %s233 = smul.addr %s232, 8
      %s234 = scalar_lea.vmem %s0, %s233
      %p235 = scmp.lt.s32.totalorder %s16, 1
      %s236 = scalar_select %p235, %s16, 1
      %s237 = smul.addr %s236, 8
      %s238 = smul.addr %s237, 8
      %s239 = scalar_lea.vmem %s4, %s238
      %p240 = scmp.lt.s32.totalorder %s16, 1
      %s241 = scalar_select %p240, %s16, 1
      %s242 = smul.addr %s241, 8
      %s243 = smul.addr %s242, 8
      %s244 = scalar_lea.vmem %s5, %s243
      %v245 = vld [vmem:[%s234] sm:$0xff]
      %v246 = vld [vmem:[%s234 + $0x8] sm:$0xff]
      %v247 = vld [vmem:[%s234 + $0x10] sm:$0xff]
      %v248 = vld [vmem:[%s234 + $0x18] sm:$0xff]
      %v249 = vld [vmem:[%s234 + $0x20] sm:$0xff]
      %v250 = vld [vmem:[%s234 + $0x28] sm:$0xff]
      %v251 = vld [vmem:[%s234 + $0x30] sm:$0xff]
      %v252 = vld [vmem:[%s234 + $0x38] sm:$0xff]
      %v253 = vld [vmem:[%s234 + $0x40] sm:$0xff]
      %v254 = vld [vmem:[%s234 + $0x48] sm:$0xff]
      %v255 = vld [vmem:[%s234 + $0x50] sm:$0xff]
      %v256 = vld [vmem:[%s234 + $0x58] sm:$0xff]
      %v257 = vld [vmem:[%s234 + $0x60] sm:$0xff]
      %v258 = vld [vmem:[%s234 + $0x68] sm:$0xff]
      %v259 = vld [vmem:[%s234 + $0x70] sm:$0xff]
      %v260 = vld [vmem:[%s234 + $0x78] sm:$0xff]
      %v261 = vld [vmem:[%s234 + $0x80] sm:$0xff]
      %v262 = vld [vmem:[%s234 + $0x88] sm:$0xff]
      %v263 = vld [vmem:[%s234 + $0x90] sm:$0xff]
      %v264 = vld [vmem:[%s234 + $0x98] sm:$0xff]
      %v265 = vld [vmem:[%s234 + $0xa0] sm:$0xff]
      %v266 = vld [vmem:[%s234 + $0xa8] sm:$0xff]
      %v267 = vld [vmem:[%s234 + $0xb0] sm:$0xff]
      %v268 = vld [vmem:[%s234 + $0xb8] sm:$0xff]
      %v269 = vld [vmem:[%s234 + $0xc0] sm:$0xff]
      %v270 = vld [vmem:[%s234 + $0xc8] sm:$0xff]
      %v271 = vld [vmem:[%s234 + $0xd0] sm:$0xff]
      %v272 = vld [vmem:[%s234 + $0xd8] sm:$0xff]
      %v273 = vld [vmem:[%s234 + $0xe0] sm:$0xff]
      %v274 = vld [vmem:[%s234 + $0xe8] sm:$0xff]
      %v275 = vld [vmem:[%s234 + $0xf0] sm:$0xff]
      %v276 = vld [vmem:[%s234 + $0xf8] sm:$0xff]
      %277 = vrot.lane.b32.xlu0 %v245, 17
      %v278 = vpop.permute.xlu0 %277
      %279 = vrot.lane.b32.xlu0 %v247, 17
      %v280 = vpop.permute.xlu0 %279
      %281 = vrot.lane.b32.xlu0 %v249, 17
      %v282 = vpop.permute.xlu0 %281
      %283 = vrot.lane.b32.xlu0 %v251, 17
      %v284 = vpop.permute.xlu0 %283
      %285 = vrot.lane.b32.xlu0 %v253, 17
      %v286 = vpop.permute.xlu0 %285
      %287 = vrot.lane.b32.xlu0 %v255, 17
      %v288 = vpop.permute.xlu0 %287
      %289 = vrot.lane.b32.xlu0 %v257, 17
      %v290 = vpop.permute.xlu0 %289
      %291 = vrot.lane.b32.xlu0 %v259, 17
      %v292 = vpop.permute.xlu0 %291
      %293 = vrot.lane.b32.xlu0 %v261, 17
      %v294 = vpop.permute.xlu0 %293
      %295 = vrot.lane.b32.xlu0 %v263, 17
      %v296 = vpop.permute.xlu0 %295
      %297 = vrot.lane.b32.xlu0 %v265, 17
      %v298 = vpop.permute.xlu0 %297
      %299 = vrot.lane.b32.xlu0 %v267, 17
      %v300 = vpop.permute.xlu0 %299
      %301 = vrot.lane.b32.xlu0 %v269, 17
      %v302 = vpop.permute.xlu0 %301
      %303 = vrot.lane.b32.xlu0 %v271, 17
      %v304 = vpop.permute.xlu0 %303
      %305 = vrot.lane.b32.xlu0 %v273, 17
      %v306 = vpop.permute.xlu0 %305
      %307 = vrot.lane.b32.xlu0 %v275, 17
      %v308 = vpop.permute.xlu0 %307
      %309 = vrot.lane.b32.xlu0 %v246, 17
      %v310 = vpop.permute.xlu0 %309
      %311 = vrot.lane.b32.xlu0 %v248, 17
      %v312 = vpop.permute.xlu0 %311
      %313 = vrot.lane.b32.xlu0 %v250, 17
      %v314 = vpop.permute.xlu0 %313
      %315 = vrot.lane.b32.xlu0 %v252, 17
      %v316 = vpop.permute.xlu0 %315
      %317 = vrot.lane.b32.xlu0 %v254, 17
      %v318 = vpop.permute.xlu0 %317
      %319 = vrot.lane.b32.xlu0 %v256, 17
      %v320 = vpop.permute.xlu0 %319
      %321 = vrot.lane.b32.xlu0 %v258, 17
      %v322 = vpop.permute.xlu0 %321
      %323 = vrot.lane.b32.xlu0 %v260, 17
      %v324 = vpop.permute.xlu0 %323
      %325 = vrot.lane.b32.xlu0 %v262, 17
      %v326 = vpop.permute.xlu0 %325
      %327 = vrot.lane.b32.xlu0 %v264, 17
      %v328 = vpop.permute.xlu0 %327
      %329 = vrot.lane.b32.xlu0 %v266, 17
      %v330 = vpop.permute.xlu0 %329
      %331 = vrot.lane.b32.xlu0 %v268, 17
      %v332 = vpop.permute.xlu0 %331
      %333 = vrot.lane.b32.xlu0 %v270, 17
      %v334 = vpop.permute.xlu0 %333
      %335 = vrot.lane.b32.xlu0 %v272, 17
      %v336 = vpop.permute.xlu0 %335
      %337 = vrot.lane.b32.xlu0 %v274, 17
      %v338 = vpop.permute.xlu0 %337
      %339 = vrot.lane.b32.xlu0 %v276, 17
      %v340 = vpop.permute.xlu0 %339
      %v341 = vlaneseq
      %v342 = vand.u32 %v341, 127
      %vm343 = vcmp.lt.s32.totalorder %v342, 17
      %v344 = vsel %vm343, %v278, %v310
      %v345 = vsel %vm343, %v280, %v312
      %v346 = vsel %vm343, %v282, %v314
      %v347 = vsel %vm343, %v284, %v316
      %v348 = vsel %vm343, %v286, %v318
      %v349 = vsel %vm343, %v288, %v320
      %v350 = vsel %vm343, %v290, %v322
      %v351 = vsel %vm343, %v292, %v324
      %v352 = vsel %vm343, %v294, %v326
      %v353 = vsel %vm343, %v296, %v328
      %v354 = vsel %vm343, %v298, %v330
      %v355 = vsel %vm343, %v300, %v332
      %v356 = vsel %vm343, %v302, %v334
      %v357 = vsel %vm343, %v304, %v336
      %v358 = vsel %vm343, %v306, %v338
      %v359 = vsel %vm343, %v308, %v340
      %v360 = vsel %vm343, %v310, %v278
      %v361 = vsel %vm343, %v312, %v280
      %v362 = vsel %vm343, %v314, %v282
      %v363 = vsel %vm343, %v316, %v284
      %v364 = vsel %vm343, %v318, %v286
      %v365 = vsel %vm343, %v320, %v288
      %v366 = vsel %vm343, %v322, %v290
      %v367 = vsel %vm343, %v324, %v292
      %v368 = vsel %vm343, %v326, %v294
      %v369 = vsel %vm343, %v328, %v296
      %v370 = vsel %vm343, %v330, %v298
      %v371 = vsel %vm343, %v332, %v300
      %v372 = vsel %vm343, %v334, %v302
      %v373 = vsel %vm343, %v336, %v304
      %v374 = vsel %vm343, %v338, %v306
      %v375 = vsel %vm343, %v340, %v308
      %v376 = vld [vmem:[%s3] ss:$8 sm:$0x3]
      %v378 = vlaneseq
      %v379 = vshrl.u32 %v378, 7
      %v380 = vsub.s32 0, %v379
      %v381 = vrot.slane %v376, %v380
      %v382 = vlaneseq
      %v383 = vshrl.u32 %v382, 7
      %v384 = vsub.s32 1, %v383
      %v385 = vrot.slane %v376, %v384
      %v388 = vmul.f32 %v360, %v381
      %v389 = vmul.f32 %v344, %v385
      %v390 = vmul.f32 %v361, %v381
      %v391 = vmul.f32 %v345, %v385
      %v392 = vmul.f32 %v362, %v381
      %v393 = vmul.f32 %v346, %v385
      %v394 = vmul.f32 %v363, %v381
      %v395 = vmul.f32 %v347, %v385
      %v396 = vmul.f32 %v364, %v381
      %v397 = vmul.f32 %v348, %v385
      %v398 = vmul.f32 %v365, %v381
      %v399 = vmul.f32 %v349, %v385
      %v400 = vmul.f32 %v366, %v381
      %v401 = vmul.f32 %v350, %v385
      %v402 = vmul.f32 %v367, %v381
      %v403 = vmul.f32 %v351, %v385
      %v404 = vmul.f32 %v368, %v381
      %v405 = vmul.f32 %v352, %v385
      %v406 = vmul.f32 %v369, %v381
      %v407 = vmul.f32 %v353, %v385
      %v408 = vmul.f32 %v370, %v381
      %v409 = vmul.f32 %v354, %v385
      %v410 = vmul.f32 %v371, %v381
      %v411 = vmul.f32 %v355, %v385
      %v412 = vmul.f32 %v372, %v381
      %v413 = vmul.f32 %v356, %v385
      %v414 = vmul.f32 %v373, %v381
      %v415 = vmul.f32 %v357, %v385
      %v416 = vmul.f32 %v374, %v381
      %v417 = vmul.f32 %v358, %v385
      %v418 = vmul.f32 %v375, %v381
      %v419 = vmul.f32 %v359, %v385
      %420 = vst [vmem:[#allocation2] sm:$0xff] %v388
      %421 = vst [vmem:[#allocation2 + $0x8] sm:$0xff] %v389
      %422 = vst [vmem:[#allocation2 + $0x10] sm:$0xff] %v390
      %423 = vst [vmem:[#allocation2 + $0x18] sm:$0xff] %v391
      %424 = vst [vmem:[#allocation2 + $0x20] sm:$0xff] %v392
      %425 = vst [vmem:[#allocation2 + $0x28] sm:$0xff] %v393
      %426 = vst [vmem:[#allocation2 + $0x30] sm:$0xff] %v394
      %427 = vst [vmem:[#allocation2 + $0x38] sm:$0xff] %v395
      %428 = vst [vmem:[#allocation2 + $0x40] sm:$0xff] %v396
      %429 = vst [vmem:[#allocation2 + $0x48] sm:$0xff] %v397
      %430 = vst [vmem:[#allocation2 + $0x50] sm:$0xff] %v398
      %431 = vst [vmem:[#allocation2 + $0x58] sm:$0xff] %v399
      %432 = vst [vmem:[#allocation2 + $0x60] sm:$0xff] %v400
      %433 = vst [vmem:[#allocation2 + $0x68] sm:$0xff] %v401
      %434 = vst [vmem:[#allocation2 + $0x70] sm:$0xff] %v402
      %435 = vst [vmem:[#allocation2 + $0x78] sm:$0xff] %v403
      %436 = vst [vmem:[#allocation2 + $0x80] sm:$0xff] %v404
      %437 = vst [vmem:[#allocation2 + $0x88] sm:$0xff] %v405
      %438 = vst [vmem:[#allocation2 + $0x90] sm:$0xff] %v406
      %439 = vst [vmem:[#allocation2 + $0x98] sm:$0xff] %v407
      %440 = vst [vmem:[#allocation2 + $0xa0] sm:$0xff] %v408
      %441 = vst [vmem:[#allocation2 + $0xa8] sm:$0xff] %v409
      %442 = vst [vmem:[#allocation2 + $0xb0] sm:$0xff] %v410
      %443 = vst [vmem:[#allocation2 + $0xb8] sm:$0xff] %v411
      %444 = vst [vmem:[#allocation2 + $0xc0] sm:$0xff] %v412
      %445 = vst [vmem:[#allocation2 + $0xc8] sm:$0xff] %v413
      %446 = vst [vmem:[#allocation2 + $0xd0] sm:$0xff] %v414
      %447 = vst [vmem:[#allocation2 + $0xd8] sm:$0xff] %v415
      %448 = vst [vmem:[#allocation2 + $0xe0] sm:$0xff] %v416
      %449 = vst [vmem:[#allocation2 + $0xe8] sm:$0xff] %v417
      %450 = vst [vmem:[#allocation2 + $0xf0] sm:$0xff] %v418
      %451 = vst [vmem:[#allocation2 + $0xf8] sm:$0xff] %v419
      %452 = vrot.lane.b32.xlu0 %v245, 16
      %v453 = vpop.permute.xlu0 %452
      %454 = vrot.lane.b32.xlu0 %v247, 16
      %v455 = vpop.permute.xlu0 %454
      %456 = vrot.lane.b32.xlu0 %v249, 16
      %v457 = vpop.permute.xlu0 %456
      %458 = vrot.lane.b32.xlu0 %v251, 16
      %v459 = vpop.permute.xlu0 %458
      %460 = vrot.lane.b32.xlu0 %v253, 16
      %v461 = vpop.permute.xlu0 %460
      %462 = vrot.lane.b32.xlu0 %v255, 16
      %v463 = vpop.permute.xlu0 %462
      %464 = vrot.lane.b32.xlu0 %v257, 16
      %v465 = vpop.permute.xlu0 %464
      %466 = vrot.lane.b32.xlu0 %v259, 16
      %v467 = vpop.permute.xlu0 %466
      %468 = vrot.lane.b32.xlu0 %v261, 16
      %v469 = vpop.permute.xlu0 %468
      %470 = vrot.lane.b32.xlu0 %v263, 16
      %v471 = vpop.permute.xlu0 %470
      %472 = vrot.lane.b32.xlu0 %v265, 16
      %v473 = vpop.permute.xlu0 %472
      %474 = vrot.lane.b32.xlu0 %v267, 16
      %v475 = vpop.permute.xlu0 %474
      %476 = vrot.lane.b32.xlu0 %v269, 16
      %v477 = vpop.permute.xlu0 %476
      %478 = vrot.lane.b32.xlu0 %v271, 16
      %v479 = vpop.permute.xlu0 %478
      %480 = vrot.lane.b32.xlu0 %v273, 16
      %v481 = vpop.permute.xlu0 %480
      %482 = vrot.lane.b32.xlu0 %v275, 16
      %v483 = vpop.permute.xlu0 %482
      %484 = vrot.lane.b32.xlu0 %v246, 16
      %v485 = vpop.permute.xlu0 %484
      %486 = vrot.lane.b32.xlu0 %v248, 16
      %v487 = vpop.permute.xlu0 %486
      %488 = vrot.lane.b32.xlu0 %v250, 16
      %v489 = vpop.permute.xlu0 %488
      %490 = vrot.lane.b32.xlu0 %v252, 16
      %v491 = vpop.permute.xlu0 %490
      %492 = vrot.lane.b32.xlu0 %v254, 16
      %v493 = vpop.permute.xlu0 %492
      %494 = vrot.lane.b32.xlu0 %v256, 16
      %v495 = vpop.permute.xlu0 %494
      %496 = vrot.lane.b32.xlu0 %v258, 16
      %v497 = vpop.permute.xlu0 %496
      %498 = vrot.lane.b32.xlu0 %v260, 16
      %v499 = vpop.permute.xlu0 %498
      %500 = vrot.lane.b32.xlu0 %v262, 16
      %v501 = vpop.permute.xlu0 %500
      %502 = vrot.lane.b32.xlu0 %v264, 16
      %v503 = vpop.permute.xlu0 %502
      %504 = vrot.lane.b32.xlu0 %v266, 16
      %v505 = vpop.permute.xlu0 %504
      %506 = vrot.lane.b32.xlu0 %v268, 16
      %v507 = vpop.permute.xlu0 %506
      %508 = vrot.lane.b32.xlu0 %v270, 16
      %v509 = vpop.permute.xlu0 %508
      %510 = vrot.lane.b32.xlu0 %v272, 16
      %v511 = vpop.permute.xlu0 %510
      %512 = vrot.lane.b32.xlu0 %v274, 16
      %v513 = vpop.permute.xlu0 %512
      %514 = vrot.lane.b32.xlu0 %v276, 16
      %v515 = vpop.permute.xlu0 %514
      %vm516 = vcmp.lt.s32.totalorder %v342, 16
      %v517 = vsel %vm516, %v453, %v485
      %v518 = vsel %vm516, %v455, %v487
      %v519 = vsel %vm516, %v457, %v489
      %v520 = vsel %vm516, %v459, %v491
      %v521 = vsel %vm516, %v461, %v493
      %v522 = vsel %vm516, %v463, %v495
      %v523 = vsel %vm516, %v465, %v497
      %v524 = vsel %vm516, %v467, %v499
      %v525 = vsel %vm516, %v469, %v501
      %v526 = vsel %vm516, %v471, %v503
      %v527 = vsel %vm516, %v473, %v505
      %v528 = vsel %vm516, %v475, %v507
      %v529 = vsel %vm516, %v477, %v509
      %v530 = vsel %vm516, %v479, %v511
      %v531 = vsel %vm516, %v481, %v513
      %v532 = vsel %vm516, %v483, %v515
      %v533 = vsel %vm516, %v485, %v453
      %v534 = vsel %vm516, %v487, %v455
      %v535 = vsel %vm516, %v489, %v457
      %v536 = vsel %vm516, %v491, %v459
      %v537 = vsel %vm516, %v493, %v461
      %v538 = vsel %vm516, %v495, %v463
      %v539 = vsel %vm516, %v497, %v465
      %v540 = vsel %vm516, %v499, %v467
      %v541 = vsel %vm516, %v501, %v469
      %v542 = vsel %vm516, %v503, %v471
      %v543 = vsel %vm516, %v505, %v473
      %v544 = vsel %vm516, %v507, %v475
      %v545 = vsel %vm516, %v509, %v477
      %v546 = vsel %vm516, %v511, %v479
      %v547 = vsel %vm516, %v513, %v481
      %v548 = vsel %vm516, %v515, %v483
      %s549 = scalar_lea.vmem %s3, 1
      %v550 = vld [vmem:[%s549] ss:$8 sm:$0x3]
      %v552 = vlaneseq
      %v553 = vshrl.u32 %v552, 7
      %v554 = vsub.s32 0, %v553
      %v555 = vrot.slane %v550, %v554
      %v556 = vlaneseq
      %v557 = vshrl.u32 %v556, 7
      %v558 = vsub.s32 1, %v557
      %v559 = vrot.slane %v550, %v558
      %v562 = vmul.f32 %v533, %v555
      %v563 = vmul.f32 %v517, %v559
      %v564 = vmul.f32 %v534, %v555
      %v565 = vmul.f32 %v518, %v559
      %v566 = vmul.f32 %v535, %v555
      %v567 = vmul.f32 %v519, %v559
      %v568 = vmul.f32 %v536, %v555
      %v569 = vmul.f32 %v520, %v559
      %v570 = vmul.f32 %v537, %v555
      %v571 = vmul.f32 %v521, %v559
      %v572 = vmul.f32 %v538, %v555
      %v573 = vmul.f32 %v522, %v559
      %v574 = vmul.f32 %v539, %v555
      %v575 = vmul.f32 %v523, %v559
      %v576 = vmul.f32 %v540, %v555
      %v577 = vmul.f32 %v524, %v559
      %v578 = vmul.f32 %v541, %v555
      %v579 = vmul.f32 %v525, %v559
      %v580 = vmul.f32 %v542, %v555
      %v581 = vmul.f32 %v526, %v559
      %v582 = vmul.f32 %v543, %v555
      %v583 = vmul.f32 %v527, %v559
      %v584 = vmul.f32 %v544, %v555
      %v585 = vmul.f32 %v528, %v559
      %v586 = vmul.f32 %v545, %v555
      %v587 = vmul.f32 %v529, %v559
      %v588 = vmul.f32 %v546, %v555
      %v589 = vmul.f32 %v530, %v559
      %v590 = vmul.f32 %v547, %v555
      %v591 = vmul.f32 %v531, %v559
      %v592 = vmul.f32 %v548, %v555
      %v593 = vmul.f32 %v532, %v559
      %594 = vst [vmem:[#allocation2 + $0x100] sm:$0xff] %v562
      %595 = vst [vmem:[#allocation2 + $0x108] sm:$0xff] %v563
      %596 = vst [vmem:[#allocation2 + $0x110] sm:$0xff] %v564
      %597 = vst [vmem:[#allocation2 + $0x118] sm:$0xff] %v565
      %598 = vst [vmem:[#allocation2 + $0x120] sm:$0xff] %v566
      %599 = vst [vmem:[#allocation2 + $0x128] sm:$0xff] %v567
      %600 = vst [vmem:[#allocation2 + $0x130] sm:$0xff] %v568
      %601 = vst [vmem:[#allocation2 + $0x138] sm:$0xff] %v569
      %602 = vst [vmem:[#allocation2 + $0x140] sm:$0xff] %v570
      %603 = vst [vmem:[#allocation2 + $0x148] sm:$0xff] %v571
      %604 = vst [vmem:[#allocation2 + $0x150] sm:$0xff] %v572
      %605 = vst [vmem:[#allocation2 + $0x158] sm:$0xff] %v573
      %606 = vst [vmem:[#allocation2 + $0x160] sm:$0xff] %v574
      %607 = vst [vmem:[#allocation2 + $0x168] sm:$0xff] %v575
      %608 = vst [vmem:[#allocation2 + $0x170] sm:$0xff] %v576
      %609 = vst [vmem:[#allocation2 + $0x178] sm:$0xff] %v577
      %610 = vst [vmem:[#allocation2 + $0x180] sm:$0xff] %v578
      %611 = vst [vmem:[#allocation2 + $0x188] sm:$0xff] %v579
      %612 = vst [vmem:[#allocation2 + $0x190] sm:$0xff] %v580
      %613 = vst [vmem:[#allocation2 + $0x198] sm:$0xff] %v581
      %614 = vst [vmem:[#allocation2 + $0x1a0] sm:$0xff] %v582
      %615 = vst [vmem:[#allocation2 + $0x1a8] sm:$0xff] %v583
      %616 = vst [vmem:[#allocation2 + $0x1b0] sm:$0xff] %v584
      %617 = vst [vmem:[#allocation2 + $0x1b8] sm:$0xff] %v585
      %618 = vst [vmem:[#allocation2 + $0x1c0] sm:$0xff] %v586
      %619 = vst [vmem:[#allocation2 + $0x1c8] sm:$0xff] %v587
      %620 = vst [vmem:[#allocation2 + $0x1d0] sm:$0xff] %v588
      %621 = vst [vmem:[#allocation2 + $0x1d8] sm:$0xff] %v589
      %622 = vst [vmem:[#allocation2 + $0x1e0] sm:$0xff] %v590
      %623 = vst [vmem:[#allocation2 + $0x1e8] sm:$0xff] %v591
      %624 = vst [vmem:[#allocation2 + $0x1f0] sm:$0xff] %v592
      %625 = vst [vmem:[#allocation2 + $0x1f8] sm:$0xff] %v593
      %626 = vrot.lane.b32.xlu0 %v245, 15
      %v627 = vpop.permute.xlu0 %626
      %628 = vrot.lane.b32.xlu0 %v247, 15
      %v629 = vpop.permute.xlu0 %628
      %630 = vrot.lane.b32.xlu0 %v249, 15
      %v631 = vpop.permute.xlu0 %630
      %632 = vrot.lane.b32.xlu0 %v251, 15
      %v633 = vpop.permute.xlu0 %632
      %634 = vrot.lane.b32.xlu0 %v253, 15
      %v635 = vpop.permute.xlu0 %634
      %636 = vrot.lane.b32.xlu0 %v255, 15
      %v637 = vpop.permute.xlu0 %636
      %638 = vrot.lane.b32.xlu0 %v257, 15
      %v639 = vpop.permute.xlu0 %638
      %640 = vrot.lane.b32.xlu0 %v259, 15
      %v641 = vpop.permute.xlu0 %640
      %642 = vrot.lane.b32.xlu0 %v261, 15
      %v643 = vpop.permute.xlu0 %642
      %644 = vrot.lane.b32.xlu0 %v263, 15
      %v645 = vpop.permute.xlu0 %644
      %646 = vrot.lane.b32.xlu0 %v265, 15
      %v647 = vpop.permute.xlu0 %646
      %648 = vrot.lane.b32.xlu0 %v267, 15
      %v649 = vpop.permute.xlu0 %648
      %650 = vrot.lane.b32.xlu0 %v269, 15
      %v651 = vpop.permute.xlu0 %650
      %652 = vrot.lane.b32.xlu0 %v271, 15
      %v653 = vpop.permute.xlu0 %652
      %654 = vrot.lane.b32.xlu0 %v273, 15
      %v655 = vpop.permute.xlu0 %654
      %656 = vrot.lane.b32.xlu0 %v275, 15
      %v657 = vpop.permute.xlu0 %656
      %658 = vrot.lane.b32.xlu0 %v246, 15
      %v659 = vpop.permute.xlu0 %658
      %660 = vrot.lane.b32.xlu0 %v248, 15
      %v661 = vpop.permute.xlu0 %660
      %662 = vrot.lane.b32.xlu0 %v250, 15
      %v663 = vpop.permute.xlu0 %662
      %664 = vrot.lane.b32.xlu0 %v252, 15
      %v665 = vpop.permute.xlu0 %664
      %666 = vrot.lane.b32.xlu0 %v254, 15
      %v667 = vpop.permute.xlu0 %666
      %668 = vrot.lane.b32.xlu0 %v256, 15
      %v669 = vpop.permute.xlu0 %668
      %670 = vrot.lane.b32.xlu0 %v258, 15
      %v671 = vpop.permute.xlu0 %670
      %672 = vrot.lane.b32.xlu0 %v260, 15
      %v673 = vpop.permute.xlu0 %672
      %674 = vrot.lane.b32.xlu0 %v262, 15
      %v675 = vpop.permute.xlu0 %674
      %676 = vrot.lane.b32.xlu0 %v264, 15
      %v677 = vpop.permute.xlu0 %676
      %678 = vrot.lane.b32.xlu0 %v266, 15
      %v679 = vpop.permute.xlu0 %678
      %680 = vrot.lane.b32.xlu0 %v268, 15
      %v681 = vpop.permute.xlu0 %680
      %682 = vrot.lane.b32.xlu0 %v270, 15
      %v683 = vpop.permute.xlu0 %682
      %684 = vrot.lane.b32.xlu0 %v272, 15
      %v685 = vpop.permute.xlu0 %684
      %686 = vrot.lane.b32.xlu0 %v274, 15
      %v687 = vpop.permute.xlu0 %686
      %688 = vrot.lane.b32.xlu0 %v276, 15
      %v689 = vpop.permute.xlu0 %688
      %vm690 = vcmp.lt.s32.totalorder %v342, 15
      %v691 = vsel %vm690, %v627, %v659
      %v692 = vsel %vm690, %v629, %v661
      %v693 = vsel %vm690, %v631, %v663
      %v694 = vsel %vm690, %v633, %v665
      %v695 = vsel %vm690, %v635, %v667
      %v696 = vsel %vm690, %v637, %v669
      %v697 = vsel %vm690, %v639, %v671
      %v698 = vsel %vm690, %v641, %v673
      %v699 = vsel %vm690, %v643, %v675
      %v700 = vsel %vm690, %v645, %v677
      %v701 = vsel %vm690, %v647, %v679
      %v702 = vsel %vm690, %v649, %v681
      %v703 = vsel %vm690, %v651, %v683
      %v704 = vsel %vm690, %v653, %v685
      %v705 = vsel %vm690, %v655, %v687
      %v706 = vsel %vm690, %v657, %v689
      %v707 = vsel %vm690, %v659, %v627
      %v708 = vsel %vm690, %v661, %v629
      %v709 = vsel %vm690, %v663, %v631
      %v710 = vsel %vm690, %v665, %v633
      %v711 = vsel %vm690, %v667, %v635
      %v712 = vsel %vm690, %v669, %v637
      %v713 = vsel %vm690, %v671, %v639
      %v714 = vsel %vm690, %v673, %v641
      %v715 = vsel %vm690, %v675, %v643
      %v716 = vsel %vm690, %v677, %v645
      %v717 = vsel %vm690, %v679, %v647
      %v718 = vsel %vm690, %v681, %v649
      %v719 = vsel %vm690, %v683, %v651
      %v720 = vsel %vm690, %v685, %v653
      %v721 = vsel %vm690, %v687, %v655
      %v722 = vsel %vm690, %v689, %v657
      %s723 = scalar_lea.vmem %s3, 2
      %v724 = vld [vmem:[%s723] ss:$8 sm:$0x3]
      %v726 = vlaneseq
      %v727 = vshrl.u32 %v726, 7
      %v728 = vsub.s32 0, %v727
      %v729 = vrot.slane %v724, %v728
      %v730 = vlaneseq
      %v731 = vshrl.u32 %v730, 7
      %v732 = vsub.s32 1, %v731
      %v733 = vrot.slane %v724, %v732
      %v736 = vmul.f32 %v707, %v729
      %v737 = vmul.f32 %v691, %v733
      %v738 = vmul.f32 %v708, %v729
      %v739 = vmul.f32 %v692, %v733
      %v740 = vmul.f32 %v709, %v729
      %v741 = vmul.f32 %v693, %v733
      %v742 = vmul.f32 %v710, %v729
      %v743 = vmul.f32 %v694, %v733
      %v744 = vmul.f32 %v711, %v729
      %v745 = vmul.f32 %v695, %v733
      %v746 = vmul.f32 %v712, %v729
      %v747 = vmul.f32 %v696, %v733
      %v748 = vmul.f32 %v713, %v729
      %v749 = vmul.f32 %v697, %v733
      %v750 = vmul.f32 %v714, %v729
      %v751 = vmul.f32 %v698, %v733
      %v752 = vmul.f32 %v715, %v729
      %v753 = vmul.f32 %v699, %v733
      %v754 = vmul.f32 %v716, %v729
      %v755 = vmul.f32 %v700, %v733
      %v756 = vmul.f32 %v717, %v729
      %v757 = vmul.f32 %v701, %v733
      %v758 = vmul.f32 %v718, %v729
      %v759 = vmul.f32 %v702, %v733
      %v760 = vmul.f32 %v719, %v729
      %v761 = vmul.f32 %v703, %v733
      %v762 = vmul.f32 %v720, %v729
      %v763 = vmul.f32 %v704, %v733
      %v764 = vmul.f32 %v721, %v729
      %v765 = vmul.f32 %v705, %v733
      %v766 = vmul.f32 %v722, %v729
      %v767 = vmul.f32 %v706, %v733
      %768 = vst [vmem:[#allocation2 + $0x200] sm:$0xff] %v736
      %769 = vst [vmem:[#allocation2 + $0x208] sm:$0xff] %v737
      %770 = vst [vmem:[#allocation2 + $0x210] sm:$0xff] %v738
      %771 = vst [vmem:[#allocation2 + $0x218] sm:$0xff] %v739
      %772 = vst [vmem:[#allocation2 + $0x220] sm:$0xff] %v740
      %773 = vst [vmem:[#allocation2 + $0x228] sm:$0xff] %v741
      %774 = vst [vmem:[#allocation2 + $0x230] sm:$0xff] %v742
      %775 = vst [vmem:[#allocation2 + $0x238] sm:$0xff] %v743
      %776 = vst [vmem:[#allocation2 + $0x240] sm:$0xff] %v744
      %777 = vst [vmem:[#allocation2 + $0x248] sm:$0xff] %v745
      %778 = vst [vmem:[#allocation2 + $0x250] sm:$0xff] %v746
      %779 = vst [vmem:[#allocation2 + $0x258] sm:$0xff] %v747
      %780 = vst [vmem:[#allocation2 + $0x260] sm:$0xff] %v748
      %781 = vst [vmem:[#allocation2 + $0x268] sm:$0xff] %v749
      %782 = vst [vmem:[#allocation2 + $0x270] sm:$0xff] %v750
      %783 = vst [vmem:[#allocation2 + $0x278] sm:$0xff] %v751
      %784 = vst [vmem:[#allocation2 + $0x280] sm:$0xff] %v752
      %785 = vst [vmem:[#allocation2 + $0x288] sm:$0xff] %v753
      %786 = vst [vmem:[#allocation2 + $0x290] sm:$0xff] %v754
      %787 = vst [vmem:[#allocation2 + $0x298] sm:$0xff] %v755
      %788 = vst [vmem:[#allocation2 + $0x2a0] sm:$0xff] %v756
      %789 = vst [vmem:[#allocation2 + $0x2a8] sm:$0xff] %v757
      %790 = vst [vmem:[#allocation2 + $0x2b0] sm:$0xff] %v758
      %791 = vst [vmem:[#allocation2 + $0x2b8] sm:$0xff] %v759
      %792 = vst [vmem:[#allocation2 + $0x2c0] sm:$0xff] %v760
      %793 = vst [vmem:[#allocation2 + $0x2c8] sm:$0xff] %v761
      %794 = vst [vmem:[#allocation2 + $0x2d0] sm:$0xff] %v762
      %795 = vst [vmem:[#allocation2 + $0x2d8] sm:$0xff] %v763
      %796 = vst [vmem:[#allocation2 + $0x2e0] sm:$0xff] %v764
      %797 = vst [vmem:[#allocation2 + $0x2e8] sm:$0xff] %v765
      %798 = vst [vmem:[#allocation2 + $0x2f0] sm:$0xff] %v766
      %799 = vst [vmem:[#allocation2 + $0x2f8] sm:$0xff] %v767
      %800 = vrot.lane.b32.xlu0 %v245, 1
      %v801 = vpop.permute.xlu0 %800
      %802 = vrot.lane.b32.xlu0 %v247, 1
      %v803 = vpop.permute.xlu0 %802
      %804 = vrot.lane.b32.xlu0 %v249, 1
      %v805 = vpop.permute.xlu0 %804
      %806 = vrot.lane.b32.xlu0 %v251, 1
      %v807 = vpop.permute.xlu0 %806
      %808 = vrot.lane.b32.xlu0 %v253, 1
      %v809 = vpop.permute.xlu0 %808
      %810 = vrot.lane.b32.xlu0 %v255, 1
      %v811 = vpop.permute.xlu0 %810
      %812 = vrot.lane.b32.xlu0 %v257, 1
      %v813 = vpop.permute.xlu0 %812
      %814 = vrot.lane.b32.xlu0 %v259, 1
      %v815 = vpop.permute.xlu0 %814
      %816 = vrot.lane.b32.xlu0 %v261, 1
      %v817 = vpop.permute.xlu0 %816
      %818 = vrot.lane.b32.xlu0 %v263, 1
      %v819 = vpop.permute.xlu0 %818
      %820 = vrot.lane.b32.xlu0 %v265, 1
      %v821 = vpop.permute.xlu0 %820
      %822 = vrot.lane.b32.xlu0 %v267, 1
      %v823 = vpop.permute.xlu0 %822
      %824 = vrot.lane.b32.xlu0 %v269, 1
      %v825 = vpop.permute.xlu0 %824
      %826 = vrot.lane.b32.xlu0 %v271, 1
      %v827 = vpop.permute.xlu0 %826
      %828 = vrot.lane.b32.xlu0 %v273, 1
      %v829 = vpop.permute.xlu0 %828
      %830 = vrot.lane.b32.xlu0 %v275, 1
      %v831 = vpop.permute.xlu0 %830
      %832 = vrot.lane.b32.xlu0 %v246, 1
      %v833 = vpop.permute.xlu0 %832
      %834 = vrot.lane.b32.xlu0 %v248, 1
      %v835 = vpop.permute.xlu0 %834
      %836 = vrot.lane.b32.xlu0 %v250, 1
      %v837 = vpop.permute.xlu0 %836
      %838 = vrot.lane.b32.xlu0 %v252, 1
      %v839 = vpop.permute.xlu0 %838
      %840 = vrot.lane.b32.xlu0 %v254, 1
      %v841 = vpop.permute.xlu0 %840
      %842 = vrot.lane.b32.xlu0 %v256, 1
      %v843 = vpop.permute.xlu0 %842
      %844 = vrot.lane.b32.xlu0 %v258, 1
      %v845 = vpop.permute.xlu0 %844
      %846 = vrot.lane.b32.xlu0 %v260, 1
      %v847 = vpop.permute.xlu0 %846
      %848 = vrot.lane.b32.xlu0 %v262, 1
      %v849 = vpop.permute.xlu0 %848
      %850 = vrot.lane.b32.xlu0 %v264, 1
      %v851 = vpop.permute.xlu0 %850
      %852 = vrot.lane.b32.xlu0 %v266, 1
      %v853 = vpop.permute.xlu0 %852
      %854 = vrot.lane.b32.xlu0 %v268, 1
      %v855 = vpop.permute.xlu0 %854
      %856 = vrot.lane.b32.xlu0 %v270, 1
      %v857 = vpop.permute.xlu0 %856
      %858 = vrot.lane.b32.xlu0 %v272, 1
      %v859 = vpop.permute.xlu0 %858
      %860 = vrot.lane.b32.xlu0 %v274, 1
      %v861 = vpop.permute.xlu0 %860
      %862 = vrot.lane.b32.xlu0 %v276, 1
      %v863 = vpop.permute.xlu0 %862
      %vm864 = vcmp.lt.s32.totalorder %v342, 1
      %v865 = vsel %vm864, %v801, %v833
      %v866 = vsel %vm864, %v803, %v835
      %v867 = vsel %vm864, %v805, %v837
      %v868 = vsel %vm864, %v807, %v839
      %v869 = vsel %vm864, %v809, %v841
      %v870 = vsel %vm864, %v811, %v843
      %v871 = vsel %vm864, %v813, %v845
      %v872 = vsel %vm864, %v815, %v847
      %v873 = vsel %vm864, %v817, %v849
      %v874 = vsel %vm864, %v819, %v851
      %v875 = vsel %vm864, %v821, %v853
      %v876 = vsel %vm864, %v823, %v855
      %v877 = vsel %vm864, %v825, %v857
      %v878 = vsel %vm864, %v827, %v859
      %v879 = vsel %vm864, %v829, %v861
      %v880 = vsel %vm864, %v831, %v863
      %v881 = vsel %vm864, %v833, %v801
      %v882 = vsel %vm864, %v835, %v803
      %v883 = vsel %vm864, %v837, %v805
      %v884 = vsel %vm864, %v839, %v807
      %v885 = vsel %vm864, %v841, %v809
      %v886 = vsel %vm864, %v843, %v811
      %v887 = vsel %vm864, %v845, %v813
      %v888 = vsel %vm864, %v847, %v815
      %v889 = vsel %vm864, %v849, %v817
      %v890 = vsel %vm864, %v851, %v819
      %v891 = vsel %vm864, %v853, %v821
      %v892 = vsel %vm864, %v855, %v823
      %v893 = vsel %vm864, %v857, %v825
      %v894 = vsel %vm864, %v859, %v827
      %v895 = vsel %vm864, %v861, %v829
      %v896 = vsel %vm864, %v863, %v831
      %s897 = scalar_lea.vmem %s3, 3
      %v898 = vld [vmem:[%s897] ss:$8 sm:$0x3]
      %v900 = vlaneseq
      %v901 = vshrl.u32 %v900, 7
      %v902 = vsub.s32 0, %v901
      %v903 = vrot.slane %v898, %v902
      %v904 = vlaneseq
      %v905 = vshrl.u32 %v904, 7
      %v906 = vsub.s32 1, %v905
      %v907 = vrot.slane %v898, %v906
      %v910 = vmul.f32 %v881, %v903
      %v911 = vmul.f32 %v865, %v907
      %v912 = vmul.f32 %v882, %v903
      %v913 = vmul.f32 %v866, %v907
      %v914 = vmul.f32 %v883, %v903
      %v915 = vmul.f32 %v867, %v907
      %v916 = vmul.f32 %v884, %v903
      %v917 = vmul.f32 %v868, %v907
      %v918 = vmul.f32 %v885, %v903
      %v919 = vmul.f32 %v869, %v907
      %v920 = vmul.f32 %v886, %v903
      %v921 = vmul.f32 %v870, %v907
      %v922 = vmul.f32 %v887, %v903
      %v923 = vmul.f32 %v871, %v907
      %v924 = vmul.f32 %v888, %v903
      %v925 = vmul.f32 %v872, %v907
      %v926 = vmul.f32 %v889, %v903
      %v927 = vmul.f32 %v873, %v907
      %v928 = vmul.f32 %v890, %v903
      %v929 = vmul.f32 %v874, %v907
      %v930 = vmul.f32 %v891, %v903
      %v931 = vmul.f32 %v875, %v907
      %v932 = vmul.f32 %v892, %v903
      %v933 = vmul.f32 %v876, %v907
      %v934 = vmul.f32 %v893, %v903
      %v935 = vmul.f32 %v877, %v907
      %v936 = vmul.f32 %v894, %v903
      %v937 = vmul.f32 %v878, %v907
      %v938 = vmul.f32 %v895, %v903
      %v939 = vmul.f32 %v879, %v907
      %v940 = vmul.f32 %v896, %v903
      %v941 = vmul.f32 %v880, %v907
      %942 = vst [vmem:[#allocation2 + $0x300] sm:$0xff] %v910
      %943 = vst [vmem:[#allocation2 + $0x308] sm:$0xff] %v911
      %944 = vst [vmem:[#allocation2 + $0x310] sm:$0xff] %v912
      %945 = vst [vmem:[#allocation2 + $0x318] sm:$0xff] %v913
      %946 = vst [vmem:[#allocation2 + $0x320] sm:$0xff] %v914
      %947 = vst [vmem:[#allocation2 + $0x328] sm:$0xff] %v915
      %948 = vst [vmem:[#allocation2 + $0x330] sm:$0xff] %v916
      %949 = vst [vmem:[#allocation2 + $0x338] sm:$0xff] %v917
      %950 = vst [vmem:[#allocation2 + $0x340] sm:$0xff] %v918
      %951 = vst [vmem:[#allocation2 + $0x348] sm:$0xff] %v919
      %952 = vst [vmem:[#allocation2 + $0x350] sm:$0xff] %v920
      %953 = vst [vmem:[#allocation2 + $0x358] sm:$0xff] %v921
      %954 = vst [vmem:[#allocation2 + $0x360] sm:$0xff] %v922
      %955 = vst [vmem:[#allocation2 + $0x368] sm:$0xff] %v923
      %956 = vst [vmem:[#allocation2 + $0x370] sm:$0xff] %v924
      %957 = vst [vmem:[#allocation2 + $0x378] sm:$0xff] %v925
      %958 = vst [vmem:[#allocation2 + $0x380] sm:$0xff] %v926
      %959 = vst [vmem:[#allocation2 + $0x388] sm:$0xff] %v927
      %960 = vst [vmem:[#allocation2 + $0x390] sm:$0xff] %v928
      %961 = vst [vmem:[#allocation2 + $0x398] sm:$0xff] %v929
      %962 = vst [vmem:[#allocation2 + $0x3a0] sm:$0xff] %v930
      %963 = vst [vmem:[#allocation2 + $0x3a8] sm:$0xff] %v931
      %964 = vst [vmem:[#allocation2 + $0x3b0] sm:$0xff] %v932
      %965 = vst [vmem:[#allocation2 + $0x3b8] sm:$0xff] %v933
      %966 = vst [vmem:[#allocation2 + $0x3c0] sm:$0xff] %v934
      %967 = vst [vmem:[#allocation2 + $0x3c8] sm:$0xff] %v935
      %968 = vst [vmem:[#allocation2 + $0x3d0] sm:$0xff] %v936
      %969 = vst [vmem:[#allocation2 + $0x3d8] sm:$0xff] %v937
      %970 = vst [vmem:[#allocation2 + $0x3e0] sm:$0xff] %v938
      %971 = vst [vmem:[#allocation2 + $0x3e8] sm:$0xff] %v939
      %972 = vst [vmem:[#allocation2 + $0x3f0] sm:$0xff] %v940
      %973 = vst [vmem:[#allocation2 + $0x3f8] sm:$0xff] %v941
      %974 = vst [vmem:[#allocation2 + $0x400] sm:$0xff] %v245
      %975 = vst [vmem:[#allocation2 + $0x408] sm:$0xff] %v246
      %976 = vst [vmem:[#allocation2 + $0x410] sm:$0xff] %v247
      %977 = vst [vmem:[#allocation2 + $0x418] sm:$0xff] %v248
      %978 = vst [vmem:[#allocation2 + $0x420] sm:$0xff] %v249
      %979 = vst [vmem:[#allocation2 + $0x428] sm:$0xff] %v250
      %980 = vst [vmem:[#allocation2 + $0x430] sm:$0xff] %v251
      %981 = vst [vmem:[#allocation2 + $0x438] sm:$0xff] %v252
      %982 = vst [vmem:[#allocation2 + $0x440] sm:$0xff] %v253
      %983 = vst [vmem:[#allocation2 + $0x448] sm:$0xff] %v254
      %984 = vst [vmem:[#allocation2 + $0x450] sm:$0xff] %v255
      %985 = vst [vmem:[#allocation2 + $0x458] sm:$0xff] %v256
      %986 = vst [vmem:[#allocation2 + $0x460] sm:$0xff] %v257
      %987 = vst [vmem:[#allocation2 + $0x468] sm:$0xff] %v258
      %988 = vst [vmem:[#allocation2 + $0x470] sm:$0xff] %v259
      %989 = vst [vmem:[#allocation2 + $0x478] sm:$0xff] %v260
      %990 = vst [vmem:[#allocation2 + $0x480] sm:$0xff] %v261
      %991 = vst [vmem:[#allocation2 + $0x488] sm:$0xff] %v262
      %992 = vst [vmem:[#allocation2 + $0x490] sm:$0xff] %v263
      %993 = vst [vmem:[#allocation2 + $0x498] sm:$0xff] %v264
      %994 = vst [vmem:[#allocation2 + $0x4a0] sm:$0xff] %v265
      %995 = vst [vmem:[#allocation2 + $0x4a8] sm:$0xff] %v266
      %996 = vst [vmem:[#allocation2 + $0x4b0] sm:$0xff] %v267
      %997 = vst [vmem:[#allocation2 + $0x4b8] sm:$0xff] %v268
      %998 = vst [vmem:[#allocation2 + $0x4c0] sm:$0xff] %v269
      %999 = vst [vmem:[#allocation2 + $0x4c8] sm:$0xff] %v270
      %1000 = vst [vmem:[#allocation2 + $0x4d0] sm:$0xff] %v271
      %1001 = vst [vmem:[#allocation2 + $0x4d8] sm:$0xff] %v272
      %1002 = vst [vmem:[#allocation2 + $0x4e0] sm:$0xff] %v273
      %1003 = vst [vmem:[#allocation2 + $0x4e8] sm:$0xff] %v274
      %1004 = vst [vmem:[#allocation2 + $0x4f0] sm:$0xff] %v275
      %1005 = vst [vmem:[#allocation2 + $0x4f8] sm:$0xff] %v276
      %1006 = vrot.lane.b32.xlu0 %v245, 127
      %v1007 = vpop.permute.xlu0 %1006
      %1008 = vrot.lane.b32.xlu0 %v247, 127
      %v1009 = vpop.permute.xlu0 %1008
      %1010 = vrot.lane.b32.xlu0 %v249, 127
      %v1011 = vpop.permute.xlu0 %1010
      %1012 = vrot.lane.b32.xlu0 %v251, 127
      %v1013 = vpop.permute.xlu0 %1012
      %1014 = vrot.lane.b32.xlu0 %v253, 127
      %v1015 = vpop.permute.xlu0 %1014
      %1016 = vrot.lane.b32.xlu0 %v255, 127
      %v1017 = vpop.permute.xlu0 %1016
      %1018 = vrot.lane.b32.xlu0 %v257, 127
      %v1019 = vpop.permute.xlu0 %1018
      %1020 = vrot.lane.b32.xlu0 %v259, 127
      %v1021 = vpop.permute.xlu0 %1020
      %1022 = vrot.lane.b32.xlu0 %v261, 127
      %v1023 = vpop.permute.xlu0 %1022
      %1024 = vrot.lane.b32.xlu0 %v263, 127
      %v1025 = vpop.permute.xlu0 %1024
      %1026 = vrot.lane.b32.xlu0 %v265, 127
      %v1027 = vpop.permute.xlu0 %1026
      %1028 = vrot.lane.b32.xlu0 %v267, 127
      %v1029 = vpop.permute.xlu0 %1028
      %1030 = vrot.lane.b32.xlu0 %v269, 127
      %v1031 = vpop.permute.xlu0 %1030
      %1032 = vrot.lane.b32.xlu0 %v271, 127
      %v1033 = vpop.permute.xlu0 %1032
      %1034 = vrot.lane.b32.xlu0 %v273, 127
      %v1035 = vpop.permute.xlu0 %1034
      %1036 = vrot.lane.b32.xlu0 %v275, 127
      %v1037 = vpop.permute.xlu0 %1036
      %1038 = vrot.lane.b32.xlu0 %v246, 127
      %v1039 = vpop.permute.xlu0 %1038
      %1040 = vrot.lane.b32.xlu0 %v248, 127
      %v1041 = vpop.permute.xlu0 %1040
      %1042 = vrot.lane.b32.xlu0 %v250, 127
      %v1043 = vpop.permute.xlu0 %1042
      %1044 = vrot.lane.b32.xlu0 %v252, 127
      %v1045 = vpop.permute.xlu0 %1044
      %1046 = vrot.lane.b32.xlu0 %v254, 127
      %v1047 = vpop.permute.xlu0 %1046
      %1048 = vrot.lane.b32.xlu0 %v256, 127
      %v1049 = vpop.permute.xlu0 %1048
      %1050 = vrot.lane.b32.xlu0 %v258, 127
      %v1051 = vpop.permute.xlu0 %1050
      %1052 = vrot.lane.b32.xlu0 %v260, 127
      %v1053 = vpop.permute.xlu0 %1052
      %1054 = vrot.lane.b32.xlu0 %v262, 127
      %v1055 = vpop.permute.xlu0 %1054
      %1056 = vrot.lane.b32.xlu0 %v264, 127
      %v1057 = vpop.permute.xlu0 %1056
      %1058 = vrot.lane.b32.xlu0 %v266, 127
      %v1059 = vpop.permute.xlu0 %1058
      %1060 = vrot.lane.b32.xlu0 %v268, 127
      %v1061 = vpop.permute.xlu0 %1060
      %1062 = vrot.lane.b32.xlu0 %v270, 127
      %v1063 = vpop.permute.xlu0 %1062
      %1064 = vrot.lane.b32.xlu0 %v272, 127
      %v1065 = vpop.permute.xlu0 %1064
      %1066 = vrot.lane.b32.xlu0 %v274, 127
      %v1067 = vpop.permute.xlu0 %1066
      %1068 = vrot.lane.b32.xlu0 %v276, 127
      %v1069 = vpop.permute.xlu0 %1068
      %vm1070 = vcmp.lt.s32.totalorder %v342, 127
      %v1071 = vsel %vm1070, %v1007, %v1039
      %v1072 = vsel %vm1070, %v1009, %v1041
      %v1073 = vsel %vm1070, %v1011, %v1043
      %v1074 = vsel %vm1070, %v1013, %v1045
      %v1075 = vsel %vm1070, %v1015, %v1047
      %v1076 = vsel %vm1070, %v1017, %v1049
      %v1077 = vsel %vm1070, %v1019, %v1051
      %v1078 = vsel %vm1070, %v1021, %v1053
      %v1079 = vsel %vm1070, %v1023, %v1055
      %v1080 = vsel %vm1070, %v1025, %v1057
      %v1081 = vsel %vm1070, %v1027, %v1059
      %v1082 = vsel %vm1070, %v1029, %v1061
      %v1083 = vsel %vm1070, %v1031, %v1063
      %v1084 = vsel %vm1070, %v1033, %v1065
      %v1085 = vsel %vm1070, %v1035, %v1067
      %v1086 = vsel %vm1070, %v1037, %v1069
      %v1087 = vsel %vm1070, %v1039, %v1007
      %v1088 = vsel %vm1070, %v1041, %v1009
      %v1089 = vsel %vm1070, %v1043, %v1011
      %v1090 = vsel %vm1070, %v1045, %v1013
      %v1091 = vsel %vm1070, %v1047, %v1015
      %v1092 = vsel %vm1070, %v1049, %v1017
      %v1093 = vsel %vm1070, %v1051, %v1019
      %v1094 = vsel %vm1070, %v1053, %v1021
      %v1095 = vsel %vm1070, %v1055, %v1023
      %v1096 = vsel %vm1070, %v1057, %v1025
      %v1097 = vsel %vm1070, %v1059, %v1027
      %v1098 = vsel %vm1070, %v1061, %v1029
      %v1099 = vsel %vm1070, %v1063, %v1031
      %v1100 = vsel %vm1070, %v1065, %v1033
      %v1101 = vsel %vm1070, %v1067, %v1035
      %v1102 = vsel %vm1070, %v1069, %v1037
      %s1103 = scalar_lea.vmem %s3, 5
      %v1104 = vld [vmem:[%s1103] ss:$8 sm:$0x3]
      %v1106 = vlaneseq
      %v1107 = vshrl.u32 %v1106, 7
      %v1108 = vsub.s32 0, %v1107
      %v1109 = vrot.slane %v1104, %v1108
      %v1110 = vlaneseq
      %v1111 = vshrl.u32 %v1110, 7
      %v1112 = vsub.s32 1, %v1111
      %v1113 = vrot.slane %v1104, %v1112
      %v1116 = vmul.f32 %v1071, %v1109
      %v1117 = vmul.f32 %v1087, %v1113
      %v1118 = vmul.f32 %v1072, %v1109
      %v1119 = vmul.f32 %v1088, %v1113
      %v1120 = vmul.f32 %v1073, %v1109
      %v1121 = vmul.f32 %v1089, %v1113
      %v1122 = vmul.f32 %v1074, %v1109
      %v1123 = vmul.f32 %v1090, %v1113
      %v1124 = vmul.f32 %v1075, %v1109
      %v1125 = vmul.f32 %v1091, %v1113
      %v1126 = vmul.f32 %v1076, %v1109
      %v1127 = vmul.f32 %v1092, %v1113
      %v1128 = vmul.f32 %v1077, %v1109
      %v1129 = vmul.f32 %v1093, %v1113
      %v1130 = vmul.f32 %v1078, %v1109
      %v1131 = vmul.f32 %v1094, %v1113
      %v1132 = vmul.f32 %v1079, %v1109
      %v1133 = vmul.f32 %v1095, %v1113
      %v1134 = vmul.f32 %v1080, %v1109
      %v1135 = vmul.f32 %v1096, %v1113
      %v1136 = vmul.f32 %v1081, %v1109
      %v1137 = vmul.f32 %v1097, %v1113
      %v1138 = vmul.f32 %v1082, %v1109
      %v1139 = vmul.f32 %v1098, %v1113
      %v1140 = vmul.f32 %v1083, %v1109
      %v1141 = vmul.f32 %v1099, %v1113
      %v1142 = vmul.f32 %v1084, %v1109
      %v1143 = vmul.f32 %v1100, %v1113
      %v1144 = vmul.f32 %v1085, %v1109
      %v1145 = vmul.f32 %v1101, %v1113
      %v1146 = vmul.f32 %v1086, %v1109
      %v1147 = vmul.f32 %v1102, %v1113
      %1148 = vst [vmem:[#allocation2 + $0x500] sm:$0xff] %v1116
      %1149 = vst [vmem:[#allocation2 + $0x508] sm:$0xff] %v1117
      %1150 = vst [vmem:[#allocation2 + $0x510] sm:$0xff] %v1118
      %1151 = vst [vmem:[#allocation2 + $0x518] sm:$0xff] %v1119
      %1152 = vst [vmem:[#allocation2 + $0x520] sm:$0xff] %v1120
      %1153 = vst [vmem:[#allocation2 + $0x528] sm:$0xff] %v1121
      %1154 = vst [vmem:[#allocation2 + $0x530] sm:$0xff] %v1122
      %1155 = vst [vmem:[#allocation2 + $0x538] sm:$0xff] %v1123
      %1156 = vst [vmem:[#allocation2 + $0x540] sm:$0xff] %v1124
      %1157 = vst [vmem:[#allocation2 + $0x548] sm:$0xff] %v1125
      %1158 = vst [vmem:[#allocation2 + $0x550] sm:$0xff] %v1126
      %1159 = vst [vmem:[#allocation2 + $0x558] sm:$0xff] %v1127
      %1160 = vst [vmem:[#allocation2 + $0x560] sm:$0xff] %v1128
      %1161 = vst [vmem:[#allocation2 + $0x568] sm:$0xff] %v1129
      %1162 = vst [vmem:[#allocation2 + $0x570] sm:$0xff] %v1130
      %1163 = vst [vmem:[#allocation2 + $0x578] sm:$0xff] %v1131
      %1164 = vst [vmem:[#allocation2 + $0x580] sm:$0xff] %v1132
      %1165 = vst [vmem:[#allocation2 + $0x588] sm:$0xff] %v1133
      %1166 = vst [vmem:[#allocation2 + $0x590] sm:$0xff] %v1134
      %1167 = vst [vmem:[#allocation2 + $0x598] sm:$0xff] %v1135
      %1168 = vst [vmem:[#allocation2 + $0x5a0] sm:$0xff] %v1136
      %1169 = vst [vmem:[#allocation2 + $0x5a8] sm:$0xff] %v1137
      %1170 = vst [vmem:[#allocation2 + $0x5b0] sm:$0xff] %v1138
      %1171 = vst [vmem:[#allocation2 + $0x5b8] sm:$0xff] %v1139
      %1172 = vst [vmem:[#allocation2 + $0x5c0] sm:$0xff] %v1140
      %1173 = vst [vmem:[#allocation2 + $0x5c8] sm:$0xff] %v1141
      %1174 = vst [vmem:[#allocation2 + $0x5d0] sm:$0xff] %v1142
      %1175 = vst [vmem:[#allocation2 + $0x5d8] sm:$0xff] %v1143
      %1176 = vst [vmem:[#allocation2 + $0x5e0] sm:$0xff] %v1144
      %1177 = vst [vmem:[#allocation2 + $0x5e8] sm:$0xff] %v1145
      %1178 = vst [vmem:[#allocation2 + $0x5f0] sm:$0xff] %v1146
      %1179 = vst [vmem:[#allocation2 + $0x5f8] sm:$0xff] %v1147
      %1180 = vrot.lane.b32.xlu0 %v245, 113
      %v1181 = vpop.permute.xlu0 %1180
      %1182 = vrot.lane.b32.xlu0 %v247, 113
      %v1183 = vpop.permute.xlu0 %1182
      %1184 = vrot.lane.b32.xlu0 %v249, 113
      %v1185 = vpop.permute.xlu0 %1184
      %1186 = vrot.lane.b32.xlu0 %v251, 113
      %v1187 = vpop.permute.xlu0 %1186
      %1188 = vrot.lane.b32.xlu0 %v253, 113
      %v1189 = vpop.permute.xlu0 %1188
      %1190 = vrot.lane.b32.xlu0 %v255, 113
      %v1191 = vpop.permute.xlu0 %1190
      %1192 = vrot.lane.b32.xlu0 %v257, 113
      %v1193 = vpop.permute.xlu0 %1192
      %1194 = vrot.lane.b32.xlu0 %v259, 113
      %v1195 = vpop.permute.xlu0 %1194
      %1196 = vrot.lane.b32.xlu0 %v261, 113
      %v1197 = vpop.permute.xlu0 %1196
      %1198 = vrot.lane.b32.xlu0 %v263, 113
      %v1199 = vpop.permute.xlu0 %1198
      %1200 = vrot.lane.b32.xlu0 %v265, 113
      %v1201 = vpop.permute.xlu0 %1200
      %1202 = vrot.lane.b32.xlu0 %v267, 113
      %v1203 = vpop.permute.xlu0 %1202
      %1204 = vrot.lane.b32.xlu0 %v269, 113
      %v1205 = vpop.permute.xlu0 %1204
      %1206 = vrot.lane.b32.xlu0 %v271, 113
      %v1207 = vpop.permute.xlu0 %1206
      %1208 = vrot.lane.b32.xlu0 %v273, 113
      %v1209 = vpop.permute.xlu0 %1208
      %1210 = vrot.lane.b32.xlu0 %v275, 113
      %v1211 = vpop.permute.xlu0 %1210
      %1212 = vrot.lane.b32.xlu0 %v246, 113
      %v1213 = vpop.permute.xlu0 %1212
      %1214 = vrot.lane.b32.xlu0 %v248, 113
      %v1215 = vpop.permute.xlu0 %1214
      %1216 = vrot.lane.b32.xlu0 %v250, 113
      %v1217 = vpop.permute.xlu0 %1216
      %1218 = vrot.lane.b32.xlu0 %v252, 113
      %v1219 = vpop.permute.xlu0 %1218
      %1220 = vrot.lane.b32.xlu0 %v254, 113
      %v1221 = vpop.permute.xlu0 %1220
      %1222 = vrot.lane.b32.xlu0 %v256, 113
      %v1223 = vpop.permute.xlu0 %1222
      %1224 = vrot.lane.b32.xlu0 %v258, 113
      %v1225 = vpop.permute.xlu0 %1224
      %1226 = vrot.lane.b32.xlu0 %v260, 113
      %v1227 = vpop.permute.xlu0 %1226
      %1228 = vrot.lane.b32.xlu0 %v262, 113
      %v1229 = vpop.permute.xlu0 %1228
      %1230 = vrot.lane.b32.xlu0 %v264, 113
      %v1231 = vpop.permute.xlu0 %1230
      %1232 = vrot.lane.b32.xlu0 %v266, 113
      %v1233 = vpop.permute.xlu0 %1232
      %1234 = vrot.lane.b32.xlu0 %v268, 113
      %v1235 = vpop.permute.xlu0 %1234
      %1236 = vrot.lane.b32.xlu0 %v270, 113
      %v1237 = vpop.permute.xlu0 %1236
      %1238 = vrot.lane.b32.xlu0 %v272, 113
      %v1239 = vpop.permute.xlu0 %1238
      %1240 = vrot.lane.b32.xlu0 %v274, 113
      %v1241 = vpop.permute.xlu0 %1240
      %1242 = vrot.lane.b32.xlu0 %v276, 113
      %v1243 = vpop.permute.xlu0 %1242
      %vm1244 = vcmp.lt.s32.totalorder %v342, 113
      %v1245 = vsel %vm1244, %v1181, %v1213
      %v1246 = vsel %vm1244, %v1183, %v1215
      %v1247 = vsel %vm1244, %v1185, %v1217
      %v1248 = vsel %vm1244, %v1187, %v1219
      %v1249 = vsel %vm1244, %v1189, %v1221
      %v1250 = vsel %vm1244, %v1191, %v1223
      %v1251 = vsel %vm1244, %v1193, %v1225
      %v1252 = vsel %vm1244, %v1195, %v1227
      %v1253 = vsel %vm1244, %v1197, %v1229
      %v1254 = vsel %vm1244, %v1199, %v1231
      %v1255 = vsel %vm1244, %v1201, %v1233
      %v1256 = vsel %vm1244, %v1203, %v1235
      %v1257 = vsel %vm1244, %v1205, %v1237
      %v1258 = vsel %vm1244, %v1207, %v1239
      %v1259 = vsel %vm1244, %v1209, %v1241
      %v1260 = vsel %vm1244, %v1211, %v1243
      %v1261 = vsel %vm1244, %v1213, %v1181
      %v1262 = vsel %vm1244, %v1215, %v1183
      %v1263 = vsel %vm1244, %v1217, %v1185
      %v1264 = vsel %vm1244, %v1219, %v1187
      %v1265 = vsel %vm1244, %v1221, %v1189
      %v1266 = vsel %vm1244, %v1223, %v1191
      %v1267 = vsel %vm1244, %v1225, %v1193
      %v1268 = vsel %vm1244, %v1227, %v1195
      %v1269 = vsel %vm1244, %v1229, %v1197
      %v1270 = vsel %vm1244, %v1231, %v1199
      %v1271 = vsel %vm1244, %v1233, %v1201
      %v1272 = vsel %vm1244, %v1235, %v1203
      %v1273 = vsel %vm1244, %v1237, %v1205
      %v1274 = vsel %vm1244, %v1239, %v1207
      %v1275 = vsel %vm1244, %v1241, %v1209
      %v1276 = vsel %vm1244, %v1243, %v1211
      %s1277 = scalar_lea.vmem %s3, 6
      %v1278 = vld [vmem:[%s1277] ss:$8 sm:$0x3]
      %v1280 = vlaneseq
      %v1281 = vshrl.u32 %v1280, 7
      %v1282 = vsub.s32 0, %v1281
      %v1283 = vrot.slane %v1278, %v1282
      %v1284 = vlaneseq
      %v1285 = vshrl.u32 %v1284, 7
      %v1286 = vsub.s32 1, %v1285
      %v1287 = vrot.slane %v1278, %v1286
      %v1290 = vmul.f32 %v1245, %v1283
      %v1291 = vmul.f32 %v1261, %v1287
      %v1292 = vmul.f32 %v1246, %v1283
      %v1293 = vmul.f32 %v1262, %v1287
      %v1294 = vmul.f32 %v1247, %v1283
      %v1295 = vmul.f32 %v1263, %v1287
      %v1296 = vmul.f32 %v1248, %v1283
      %v1297 = vmul.f32 %v1264, %v1287
      %v1298 = vmul.f32 %v1249, %v1283
      %v1299 = vmul.f32 %v1265, %v1287
      %v1300 = vmul.f32 %v1250, %v1283
      %v1301 = vmul.f32 %v1266, %v1287
      %v1302 = vmul.f32 %v1251, %v1283
      %v1303 = vmul.f32 %v1267, %v1287
      %v1304 = vmul.f32 %v1252, %v1283
      %v1305 = vmul.f32 %v1268, %v1287
      %v1306 = vmul.f32 %v1253, %v1283
      %v1307 = vmul.f32 %v1269, %v1287
      %v1308 = vmul.f32 %v1254, %v1283
      %v1309 = vmul.f32 %v1270, %v1287
      %v1310 = vmul.f32 %v1255, %v1283
      %v1311 = vmul.f32 %v1271, %v1287
      %v1312 = vmul.f32 %v1256, %v1283
      %v1313 = vmul.f32 %v1272, %v1287
      %v1314 = vmul.f32 %v1257, %v1283
      %v1315 = vmul.f32 %v1273, %v1287
      %v1316 = vmul.f32 %v1258, %v1283
      %v1317 = vmul.f32 %v1274, %v1287
      %v1318 = vmul.f32 %v1259, %v1283
      %v1319 = vmul.f32 %v1275, %v1287
      %v1320 = vmul.f32 %v1260, %v1283
      %v1321 = vmul.f32 %v1276, %v1287
      %1322 = vst [vmem:[#allocation2 + $0x600] sm:$0xff] %v1290
      %1323 = vst [vmem:[#allocation2 + $0x608] sm:$0xff] %v1291
      %1324 = vst [vmem:[#allocation2 + $0x610] sm:$0xff] %v1292
      %1325 = vst [vmem:[#allocation2 + $0x618] sm:$0xff] %v1293
      %1326 = vst [vmem:[#allocation2 + $0x620] sm:$0xff] %v1294
      %1327 = vst [vmem:[#allocation2 + $0x628] sm:$0xff] %v1295
      %1328 = vst [vmem:[#allocation2 + $0x630] sm:$0xff] %v1296
      %1329 = vst [vmem:[#allocation2 + $0x638] sm:$0xff] %v1297
      %1330 = vst [vmem:[#allocation2 + $0x640] sm:$0xff] %v1298
      %1331 = vst [vmem:[#allocation2 + $0x648] sm:$0xff] %v1299
      %1332 = vst [vmem:[#allocation2 + $0x650] sm:$0xff] %v1300
      %1333 = vst [vmem:[#allocation2 + $0x658] sm:$0xff] %v1301
      %1334 = vst [vmem:[#allocation2 + $0x660] sm:$0xff] %v1302
      %1335 = vst [vmem:[#allocation2 + $0x668] sm:$0xff] %v1303
      %1336 = vst [vmem:[#allocation2 + $0x670] sm:$0xff] %v1304
      %1337 = vst [vmem:[#allocation2 + $0x678] sm:$0xff] %v1305
      %1338 = vst [vmem:[#allocation2 + $0x680] sm:$0xff] %v1306
      %1339 = vst [vmem:[#allocation2 + $0x688] sm:$0xff] %v1307
      %1340 = vst [vmem:[#allocation2 + $0x690] sm:$0xff] %v1308
      %1341 = vst [vmem:[#allocation2 + $0x698] sm:$0xff] %v1309
      %1342 = vst [vmem:[#allocation2 + $0x6a0] sm:$0xff] %v1310
      %1343 = vst [vmem:[#allocation2 + $0x6a8] sm:$0xff] %v1311
      %1344 = vst [vmem:[#allocation2 + $0x6b0] sm:$0xff] %v1312
      %1345 = vst [vmem:[#allocation2 + $0x6b8] sm:$0xff] %v1313
      %1346 = vst [vmem:[#allocation2 + $0x6c0] sm:$0xff] %v1314
      %1347 = vst [vmem:[#allocation2 + $0x6c8] sm:$0xff] %v1315
      %1348 = vst [vmem:[#allocation2 + $0x6d0] sm:$0xff] %v1316
      %1349 = vst [vmem:[#allocation2 + $0x6d8] sm:$0xff] %v1317
      %1350 = vst [vmem:[#allocation2 + $0x6e0] sm:$0xff] %v1318
      %1351 = vst [vmem:[#allocation2 + $0x6e8] sm:$0xff] %v1319
      %1352 = vst [vmem:[#allocation2 + $0x6f0] sm:$0xff] %v1320
      %1353 = vst [vmem:[#allocation2 + $0x6f8] sm:$0xff] %v1321
      %1354 = vrot.lane.b32.xlu0 %v245, 112
      %v1355 = vpop.permute.xlu0 %1354
      %1356 = vrot.lane.b32.xlu0 %v247, 112
      %v1357 = vpop.permute.xlu0 %1356
      %1358 = vrot.lane.b32.xlu0 %v249, 112
      %v1359 = vpop.permute.xlu0 %1358
      %1360 = vrot.lane.b32.xlu0 %v251, 112
      %v1361 = vpop.permute.xlu0 %1360
      %1362 = vrot.lane.b32.xlu0 %v253, 112
      %v1363 = vpop.permute.xlu0 %1362
      %1364 = vrot.lane.b32.xlu0 %v255, 112
      %v1365 = vpop.permute.xlu0 %1364
      %1366 = vrot.lane.b32.xlu0 %v257, 112
      %v1367 = vpop.permute.xlu0 %1366
      %1368 = vrot.lane.b32.xlu0 %v259, 112
      %v1369 = vpop.permute.xlu0 %1368
      %1370 = vrot.lane.b32.xlu0 %v261, 112
      %v1371 = vpop.permute.xlu0 %1370
      %1372 = vrot.lane.b32.xlu0 %v263, 112
      %v1373 = vpop.permute.xlu0 %1372
      %1374 = vrot.lane.b32.xlu0 %v265, 112
      %v1375 = vpop.permute.xlu0 %1374
      %1376 = vrot.lane.b32.xlu0 %v267, 112
      %v1377 = vpop.permute.xlu0 %1376
      %1378 = vrot.lane.b32.xlu0 %v269, 112
      %v1379 = vpop.permute.xlu0 %1378
      %1380 = vrot.lane.b32.xlu0 %v271, 112
      %v1381 = vpop.permute.xlu0 %1380
      %1382 = vrot.lane.b32.xlu0 %v273, 112
      %v1383 = vpop.permute.xlu0 %1382
      %1384 = vrot.lane.b32.xlu0 %v275, 112
      %v1385 = vpop.permute.xlu0 %1384
      %1386 = vrot.lane.b32.xlu0 %v246, 112
      %v1387 = vpop.permute.xlu0 %1386
      %1388 = vrot.lane.b32.xlu0 %v248, 112
      %v1389 = vpop.permute.xlu0 %1388
      %1390 = vrot.lane.b32.xlu0 %v250, 112
      %v1391 = vpop.permute.xlu0 %1390
      %1392 = vrot.lane.b32.xlu0 %v252, 112
      %v1393 = vpop.permute.xlu0 %1392
      %1394 = vrot.lane.b32.xlu0 %v254, 112
      %v1395 = vpop.permute.xlu0 %1394
      %1396 = vrot.lane.b32.xlu0 %v256, 112
      %v1397 = vpop.permute.xlu0 %1396
      %1398 = vrot.lane.b32.xlu0 %v258, 112
      %v1399 = vpop.permute.xlu0 %1398
      %1400 = vrot.lane.b32.xlu0 %v260, 112
      %v1401 = vpop.permute.xlu0 %1400
      %1402 = vrot.lane.b32.xlu0 %v262, 112
      %v1403 = vpop.permute.xlu0 %1402
      %1404 = vrot.lane.b32.xlu0 %v264, 112
      %v1405 = vpop.permute.xlu0 %1404
      %1406 = vrot.lane.b32.xlu0 %v266, 112
      %v1407 = vpop.permute.xlu0 %1406
      %1408 = vrot.lane.b32.xlu0 %v268, 112
      %v1409 = vpop.permute.xlu0 %1408
      %1410 = vrot.lane.b32.xlu0 %v270, 112
      %v1411 = vpop.permute.xlu0 %1410
      %1412 = vrot.lane.b32.xlu0 %v272, 112
      %v1413 = vpop.permute.xlu0 %1412
      %1414 = vrot.lane.b32.xlu0 %v274, 112
      %v1415 = vpop.permute.xlu0 %1414
      %1416 = vrot.lane.b32.xlu0 %v276, 112
      %v1417 = vpop.permute.xlu0 %1416
      %vm1418 = vcmp.lt.s32.totalorder %v342, 112
      %v1419 = vsel %vm1418, %v1355, %v1387
      %v1420 = vsel %vm1418, %v1357, %v1389
      %v1421 = vsel %vm1418, %v1359, %v1391
      %v1422 = vsel %vm1418, %v1361, %v1393
      %v1423 = vsel %vm1418, %v1363, %v1395
      %v1424 = vsel %vm1418, %v1365, %v1397
      %v1425 = vsel %vm1418, %v1367, %v1399
      %v1426 = vsel %vm1418, %v1369, %v1401
      %v1427 = vsel %vm1418, %v1371, %v1403
      %v1428 = vsel %vm1418, %v1373, %v1405
      %v1429 = vsel %vm1418, %v1375, %v1407
      %v1430 = vsel %vm1418, %v1377, %v1409
      %v1431 = vsel %vm1418, %v1379, %v1411
      %v1432 = vsel %vm1418, %v1381, %v1413
      %v1433 = vsel %vm1418, %v1383, %v1415
      %v1434 = vsel %vm1418, %v1385, %v1417
      %v1435 = vsel %vm1418, %v1387, %v1355
      %v1436 = vsel %vm1418, %v1389, %v1357
      %v1437 = vsel %vm1418, %v1391, %v1359
      %v1438 = vsel %vm1418, %v1393, %v1361
      %v1439 = vsel %vm1418, %v1395, %v1363
      %v1440 = vsel %vm1418, %v1397, %v1365
      %v1441 = vsel %vm1418, %v1399, %v1367
      %v1442 = vsel %vm1418, %v1401, %v1369
      %v1443 = vsel %vm1418, %v1403, %v1371
      %v1444 = vsel %vm1418, %v1405, %v1373
      %v1445 = vsel %vm1418, %v1407, %v1375
      %v1446 = vsel %vm1418, %v1409, %v1377
      %v1447 = vsel %vm1418, %v1411, %v1379
      %v1448 = vsel %vm1418, %v1413, %v1381
      %v1449 = vsel %vm1418, %v1415, %v1383
      %v1450 = vsel %vm1418, %v1417, %v1385
      %s1451 = scalar_lea.vmem %s3, 7
      %v1452 = vld [vmem:[%s1451] ss:$8 sm:$0x3]
      %v1454 = vlaneseq
      %v1455 = vshrl.u32 %v1454, 7
      %v1456 = vsub.s32 0, %v1455
      %v1457 = vrot.slane %v1452, %v1456
      %v1458 = vlaneseq
      %v1459 = vshrl.u32 %v1458, 7
      %v1460 = vsub.s32 1, %v1459
      %v1461 = vrot.slane %v1452, %v1460
      %v1464 = vmul.f32 %v1419, %v1457
      %v1465 = vmul.f32 %v1435, %v1461
      %v1466 = vmul.f32 %v1420, %v1457
      %v1467 = vmul.f32 %v1436, %v1461
      %v1468 = vmul.f32 %v1421, %v1457
      %v1469 = vmul.f32 %v1437, %v1461
      %v1470 = vmul.f32 %v1422, %v1457
      %v1471 = vmul.f32 %v1438, %v1461
      %v1472 = vmul.f32 %v1423, %v1457
      %v1473 = vmul.f32 %v1439, %v1461
      %v1474 = vmul.f32 %v1424, %v1457
      %v1475 = vmul.f32 %v1440, %v1461
      %v1476 = vmul.f32 %v1425, %v1457
      %v1477 = vmul.f32 %v1441, %v1461
      %v1478 = vmul.f32 %v1426, %v1457
      %v1479 = vmul.f32 %v1442, %v1461
      %v1480 = vmul.f32 %v1427, %v1457
      %v1481 = vmul.f32 %v1443, %v1461
      %v1482 = vmul.f32 %v1428, %v1457
      %v1483 = vmul.f32 %v1444, %v1461
      %v1484 = vmul.f32 %v1429, %v1457
      %v1485 = vmul.f32 %v1445, %v1461
      %v1486 = vmul.f32 %v1430, %v1457
      %v1487 = vmul.f32 %v1446, %v1461
      %v1488 = vmul.f32 %v1431, %v1457
      %v1489 = vmul.f32 %v1447, %v1461
      %v1490 = vmul.f32 %v1432, %v1457
      %v1491 = vmul.f32 %v1448, %v1461
      %v1492 = vmul.f32 %v1433, %v1457
      %v1493 = vmul.f32 %v1449, %v1461
      %v1494 = vmul.f32 %v1434, %v1457
      %v1495 = vmul.f32 %v1450, %v1461
      %1496 = vst [vmem:[#allocation2 + $0x700] sm:$0xff] %v1464
      %1497 = vst [vmem:[#allocation2 + $0x708] sm:$0xff] %v1465
      %1498 = vst [vmem:[#allocation2 + $0x710] sm:$0xff] %v1466
      %1499 = vst [vmem:[#allocation2 + $0x718] sm:$0xff] %v1467
      %1500 = vst [vmem:[#allocation2 + $0x720] sm:$0xff] %v1468
      %1501 = vst [vmem:[#allocation2 + $0x728] sm:$0xff] %v1469
      %1502 = vst [vmem:[#allocation2 + $0x730] sm:$0xff] %v1470
      %1503 = vst [vmem:[#allocation2 + $0x738] sm:$0xff] %v1471
      %1504 = vst [vmem:[#allocation2 + $0x740] sm:$0xff] %v1472
      %1505 = vst [vmem:[#allocation2 + $0x748] sm:$0xff] %v1473
      %1506 = vst [vmem:[#allocation2 + $0x750] sm:$0xff] %v1474
      %1507 = vst [vmem:[#allocation2 + $0x758] sm:$0xff] %v1475
      %1508 = vst [vmem:[#allocation2 + $0x760] sm:$0xff] %v1476
      %1509 = vst [vmem:[#allocation2 + $0x768] sm:$0xff] %v1477
      %1510 = vst [vmem:[#allocation2 + $0x770] sm:$0xff] %v1478
      %1511 = vst [vmem:[#allocation2 + $0x778] sm:$0xff] %v1479
      %1512 = vst [vmem:[#allocation2 + $0x780] sm:$0xff] %v1480
      %1513 = vst [vmem:[#allocation2 + $0x788] sm:$0xff] %v1481
      %1514 = vst [vmem:[#allocation2 + $0x790] sm:$0xff] %v1482
      %1515 = vst [vmem:[#allocation2 + $0x798] sm:$0xff] %v1483
      %1516 = vst [vmem:[#allocation2 + $0x7a0] sm:$0xff] %v1484
      %1517 = vst [vmem:[#allocation2 + $0x7a8] sm:$0xff] %v1485
      %1518 = vst [vmem:[#allocation2 + $0x7b0] sm:$0xff] %v1486
      %1519 = vst [vmem:[#allocation2 + $0x7b8] sm:$0xff] %v1487
      %1520 = vst [vmem:[#allocation2 + $0x7c0] sm:$0xff] %v1488
      %1521 = vst [vmem:[#allocation2 + $0x7c8] sm:$0xff] %v1489
      %1522 = vst [vmem:[#allocation2 + $0x7d0] sm:$0xff] %v1490
      %1523 = vst [vmem:[#allocation2 + $0x7d8] sm:$0xff] %v1491
      %1524 = vst [vmem:[#allocation2 + $0x7e0] sm:$0xff] %v1492
      %1525 = vst [vmem:[#allocation2 + $0x7e8] sm:$0xff] %v1493
      %1526 = vst [vmem:[#allocation2 + $0x7f0] sm:$0xff] %v1494
      %1527 = vst [vmem:[#allocation2 + $0x7f8] sm:$0xff] %v1495
      %1528 = vrot.lane.b32.xlu0 %v245, 111
      %v1529 = vpop.permute.xlu0 %1528
      %1530 = vrot.lane.b32.xlu0 %v247, 111
      %v1531 = vpop.permute.xlu0 %1530
      %1532 = vrot.lane.b32.xlu0 %v249, 111
      %v1533 = vpop.permute.xlu0 %1532
      %1534 = vrot.lane.b32.xlu0 %v251, 111
      %v1535 = vpop.permute.xlu0 %1534
      %1536 = vrot.lane.b32.xlu0 %v253, 111
      %v1537 = vpop.permute.xlu0 %1536
      %1538 = vrot.lane.b32.xlu0 %v255, 111
      %v1539 = vpop.permute.xlu0 %1538
      %1540 = vrot.lane.b32.xlu0 %v257, 111
      %v1541 = vpop.permute.xlu0 %1540
      %1542 = vrot.lane.b32.xlu0 %v259, 111
      %v1543 = vpop.permute.xlu0 %1542
      %1544 = vrot.lane.b32.xlu0 %v261, 111
      %v1545 = vpop.permute.xlu0 %1544
      %1546 = vrot.lane.b32.xlu0 %v263, 111
      %v1547 = vpop.permute.xlu0 %1546
      %1548 = vrot.lane.b32.xlu0 %v265, 111
      %v1549 = vpop.permute.xlu0 %1548
      %1550 = vrot.lane.b32.xlu0 %v267, 111
      %v1551 = vpop.permute.xlu0 %1550
      %1552 = vrot.lane.b32.xlu0 %v269, 111
      %v1553 = vpop.permute.xlu0 %1552
      %1554 = vrot.lane.b32.xlu0 %v271, 111
      %v1555 = vpop.permute.xlu0 %1554
      %1556 = vrot.lane.b32.xlu0 %v273, 111
      %v1557 = vpop.permute.xlu0 %1556
      %1558 = vrot.lane.b32.xlu0 %v275, 111
      %v1559 = vpop.permute.xlu0 %1558
      %1560 = vrot.lane.b32.xlu0 %v246, 111
      %v1561 = vpop.permute.xlu0 %1560
      %1562 = vrot.lane.b32.xlu0 %v248, 111
      %v1563 = vpop.permute.xlu0 %1562
      %1564 = vrot.lane.b32.xlu0 %v250, 111
      %v1565 = vpop.permute.xlu0 %1564
      %1566 = vrot.lane.b32.xlu0 %v252, 111
      %v1567 = vpop.permute.xlu0 %1566
      %1568 = vrot.lane.b32.xlu0 %v254, 111
      %v1569 = vpop.permute.xlu0 %1568
      %1570 = vrot.lane.b32.xlu0 %v256, 111
      %v1571 = vpop.permute.xlu0 %1570
      %1572 = vrot.lane.b32.xlu0 %v258, 111
      %v1573 = vpop.permute.xlu0 %1572
      %1574 = vrot.lane.b32.xlu0 %v260, 111
      %v1575 = vpop.permute.xlu0 %1574
      %1576 = vrot.lane.b32.xlu0 %v262, 111
      %v1577 = vpop.permute.xlu0 %1576
      %1578 = vrot.lane.b32.xlu0 %v264, 111
      %v1579 = vpop.permute.xlu0 %1578
      %1580 = vrot.lane.b32.xlu0 %v266, 111
      %v1581 = vpop.permute.xlu0 %1580
      %1582 = vrot.lane.b32.xlu0 %v268, 111
      %v1583 = vpop.permute.xlu0 %1582
      %1584 = vrot.lane.b32.xlu0 %v270, 111
      %v1585 = vpop.permute.xlu0 %1584
      %1586 = vrot.lane.b32.xlu0 %v272, 111
      %v1587 = vpop.permute.xlu0 %1586
      %1588 = vrot.lane.b32.xlu0 %v274, 111
      %v1589 = vpop.permute.xlu0 %1588
      %1590 = vrot.lane.b32.xlu0 %v276, 111
      %v1591 = vpop.permute.xlu0 %1590
      %vm1592 = vcmp.lt.s32.totalorder %v342, 111
      %v1593 = vsel %vm1592, %v1529, %v1561
      %v1594 = vsel %vm1592, %v1531, %v1563
      %v1595 = vsel %vm1592, %v1533, %v1565
      %v1596 = vsel %vm1592, %v1535, %v1567
      %v1597 = vsel %vm1592, %v1537, %v1569
      %v1598 = vsel %vm1592, %v1539, %v1571
      %v1599 = vsel %vm1592, %v1541, %v1573
      %v1600 = vsel %vm1592, %v1543, %v1575
      %v1601 = vsel %vm1592, %v1545, %v1577
      %v1602 = vsel %vm1592, %v1547, %v1579
      %v1603 = vsel %vm1592, %v1549, %v1581
      %v1604 = vsel %vm1592, %v1551, %v1583
      %v1605 = vsel %vm1592, %v1553, %v1585
      %v1606 = vsel %vm1592, %v1555, %v1587
      %v1607 = vsel %vm1592, %v1557, %v1589
      %v1608 = vsel %vm1592, %v1559, %v1591
      %v1609 = vsel %vm1592, %v1561, %v1529
      %v1610 = vsel %vm1592, %v1563, %v1531
      %v1611 = vsel %vm1592, %v1565, %v1533
      %v1612 = vsel %vm1592, %v1567, %v1535
      %v1613 = vsel %vm1592, %v1569, %v1537
      %v1614 = vsel %vm1592, %v1571, %v1539
      %v1615 = vsel %vm1592, %v1573, %v1541
      %v1616 = vsel %vm1592, %v1575, %v1543
      %v1617 = vsel %vm1592, %v1577, %v1545
      %v1618 = vsel %vm1592, %v1579, %v1547
      %v1619 = vsel %vm1592, %v1581, %v1549
      %v1620 = vsel %vm1592, %v1583, %v1551
      %v1621 = vsel %vm1592, %v1585, %v1553
      %v1622 = vsel %vm1592, %v1587, %v1555
      %v1623 = vsel %vm1592, %v1589, %v1557
      %v1624 = vsel %vm1592, %v1591, %v1559
      %s1625 = scalar_lea.vmem %s3, 16
      %v1626 = vld [vmem:[%s1625] ss:$8 sm:$0x3]
      %v1628 = vlaneseq
      %v1629 = vshrl.u32 %v1628, 7
      %v1630 = vsub.s32 0, %v1629
      %v1631 = vrot.slane %v1626, %v1630
      %v1632 = vlaneseq
      %v1633 = vshrl.u32 %v1632, 7
      %v1634 = vsub.s32 1, %v1633
      %v1635 = vrot.slane %v1626, %v1634
      %v1638 = vmul.f32 %v1593, %v1631
      %v1639 = vmul.f32 %v1609, %v1635
      %v1640 = vmul.f32 %v1594, %v1631
      %v1641 = vmul.f32 %v1610, %v1635
      %v1642 = vmul.f32 %v1595, %v1631
      %v1643 = vmul.f32 %v1611, %v1635
      %v1644 = vmul.f32 %v1596, %v1631
      %v1645 = vmul.f32 %v1612, %v1635
      %v1646 = vmul.f32 %v1597, %v1631
      %v1647 = vmul.f32 %v1613, %v1635
      %v1648 = vmul.f32 %v1598, %v1631
      %v1649 = vmul.f32 %v1614, %v1635
      %v1650 = vmul.f32 %v1599, %v1631
      %v1651 = vmul.f32 %v1615, %v1635
      %v1652 = vmul.f32 %v1600, %v1631
      %v1653 = vmul.f32 %v1616, %v1635
      %v1654 = vmul.f32 %v1601, %v1631
      %v1655 = vmul.f32 %v1617, %v1635
      %v1656 = vmul.f32 %v1602, %v1631
      %v1657 = vmul.f32 %v1618, %v1635
      %v1658 = vmul.f32 %v1603, %v1631
      %v1659 = vmul.f32 %v1619, %v1635
      %v1660 = vmul.f32 %v1604, %v1631
      %v1661 = vmul.f32 %v1620, %v1635
      %v1662 = vmul.f32 %v1605, %v1631
      %v1663 = vmul.f32 %v1621, %v1635
      %v1664 = vmul.f32 %v1606, %v1631
      %v1665 = vmul.f32 %v1622, %v1635
      %v1666 = vmul.f32 %v1607, %v1631
      %v1667 = vmul.f32 %v1623, %v1635
      %v1668 = vmul.f32 %v1608, %v1631
      %v1669 = vmul.f32 %v1624, %v1635
      %1670 = vst [vmem:[#allocation2 + $0x800] sm:$0xff] %v1638
      %1671 = vst [vmem:[#allocation2 + $0x808] sm:$0xff] %v1639
      %1672 = vst [vmem:[#allocation2 + $0x810] sm:$0xff] %v1640
      %1673 = vst [vmem:[#allocation2 + $0x818] sm:$0xff] %v1641
      %1674 = vst [vmem:[#allocation2 + $0x820] sm:$0xff] %v1642
      %1675 = vst [vmem:[#allocation2 + $0x828] sm:$0xff] %v1643
      %1676 = vst [vmem:[#allocation2 + $0x830] sm:$0xff] %v1644
      %1677 = vst [vmem:[#allocation2 + $0x838] sm:$0xff] %v1645
      %1678 = vst [vmem:[#allocation2 + $0x840] sm:$0xff] %v1646
      %1679 = vst [vmem:[#allocation2 + $0x848] sm:$0xff] %v1647
      %1680 = vst [vmem:[#allocation2 + $0x850] sm:$0xff] %v1648
      %1681 = vst [vmem:[#allocation2 + $0x858] sm:$0xff] %v1649
      %1682 = vst [vmem:[#allocation2 + $0x860] sm:$0xff] %v1650
      %1683 = vst [vmem:[#allocation2 + $0x868] sm:$0xff] %v1651
      %1684 = vst [vmem:[#allocation2 + $0x870] sm:$0xff] %v1652
      %1685 = vst [vmem:[#allocation2 + $0x878] sm:$0xff] %v1653
      %1686 = vst [vmem:[#allocation2 + $0x880] sm:$0xff] %v1654
      %1687 = vst [vmem:[#allocation2 + $0x888] sm:$0xff] %v1655
      %1688 = vst [vmem:[#allocation2 + $0x890] sm:$0xff] %v1656
      %1689 = vst [vmem:[#allocation2 + $0x898] sm:$0xff] %v1657
      %1690 = vst [vmem:[#allocation2 + $0x8a0] sm:$0xff] %v1658
      %1691 = vst [vmem:[#allocation2 + $0x8a8] sm:$0xff] %v1659
      %1692 = vst [vmem:[#allocation2 + $0x8b0] sm:$0xff] %v1660
      %1693 = vst [vmem:[#allocation2 + $0x8b8] sm:$0xff] %v1661
      %1694 = vst [vmem:[#allocation2 + $0x8c0] sm:$0xff] %v1662
      %1695 = vst [vmem:[#allocation2 + $0x8c8] sm:$0xff] %v1663
      %1696 = vst [vmem:[#allocation2 + $0x8d0] sm:$0xff] %v1664
      %1697 = vst [vmem:[#allocation2 + $0x8d8] sm:$0xff] %v1665
      %1698 = vst [vmem:[#allocation2 + $0x8e0] sm:$0xff] %v1666
      %1699 = vst [vmem:[#allocation2 + $0x8e8] sm:$0xff] %v1667
      %1700 = vst [vmem:[#allocation2 + $0x8f0] sm:$0xff] %v1668
      %1701 = vst [vmem:[#allocation2 + $0x8f8] sm:$0xff] %v1669
      %v1702 = vld [vmem:[%s1] sm:$0xff]
      %v1703 = vld [vmem:[%s1 + $0x8] sm:$0xff]
      %v1704 = vld [vmem:[%s1 + $0x10] sm:$0xff]
      %v1705 = vld [vmem:[%s1 + $0x18] sm:$0xff]
      %v1706 = vld [vmem:[%s1 + $0x20] sm:$0xff]
      %v1707 = vld [vmem:[%s1 + $0x28] sm:$0xff]
      %v1708 = vld [vmem:[%s1 + $0x30] sm:$0xff]
      %v1709 = vld [vmem:[%s1 + $0x38] sm:$0xff]
      %v1710 = vld [vmem:[%s1 + $0x40] sm:$0xff]
      %v1711 = vld [vmem:[%s1 + $0x48] sm:$0xff]
      %v1712 = vld [vmem:[%s1 + $0x50] sm:$0xff]
      %v1713 = vld [vmem:[%s1 + $0x58] sm:$0xff]
      %v1714 = vld [vmem:[%s1 + $0x60] sm:$0xff]
      %v1715 = vld [vmem:[%s1 + $0x68] sm:$0xff]
      %v1716 = vld [vmem:[%s1 + $0x70] sm:$0xff]
      %v1717 = vld [vmem:[%s1 + $0x78] sm:$0xff]
      %v1718 = vld [vmem:[%s1 + $0x80] sm:$0xff]
      %v1719 = vld [vmem:[%s1 + $0x88] sm:$0xff]
      %v1720 = vld [vmem:[%s1 + $0x90] sm:$0xff]
      %v1721 = vld [vmem:[%s1 + $0x98] sm:$0xff]
      %v1722 = vld [vmem:[%s1 + $0xa0] sm:$0xff]
      %v1723 = vld [vmem:[%s1 + $0xa8] sm:$0xff]
      %v1724 = vld [vmem:[%s1 + $0xb0] sm:$0xff]
      %v1725 = vld [vmem:[%s1 + $0xb8] sm:$0xff]
      %v1726 = vld [vmem:[%s1 + $0xc0] sm:$0xff]
      %v1727 = vld [vmem:[%s1 + $0xc8] sm:$0xff]
      %v1728 = vld [vmem:[%s1 + $0xd0] sm:$0xff]
      %v1729 = vld [vmem:[%s1 + $0xd8] sm:$0xff]
      %v1730 = vld [vmem:[%s1 + $0xe0] sm:$0xff]
      %v1731 = vld [vmem:[%s1 + $0xe8] sm:$0xff]
      %v1732 = vld [vmem:[%s1 + $0xf0] sm:$0xff]
      %v1733 = vld [vmem:[%s1 + $0xf8] sm:$0xff]
      %v1734 = vld [vmem:[%s1 + $0x100] sm:$0xff]
      %v1735 = vld [vmem:[%s1 + $0x108] sm:$0xff]
      %v1736 = vld [vmem:[%s1 + $0x110] sm:$0xff]
      %v1737 = vld [vmem:[%s1 + $0x118] sm:$0xff]
      %v1738 = vld [vmem:[%s1 + $0x120] sm:$0xff]
      %v1739 = vld [vmem:[%s1 + $0x128] sm:$0xff]
      %v1740 = vld [vmem:[%s1 + $0x130] sm:$0xff]
      %v1741 = vld [vmem:[%s1 + $0x138] sm:$0xff]
      %v1742 = vld [vmem:[%s1 + $0x140] sm:$0xff]
      %v1743 = vld [vmem:[%s1 + $0x148] sm:$0xff]
      %v1744 = vld [vmem:[%s1 + $0x150] sm:$0xff]
      %v1745 = vld [vmem:[%s1 + $0x158] sm:$0xff]
      %v1746 = vld [vmem:[%s1 + $0x160] sm:$0xff]
      %v1747 = vld [vmem:[%s1 + $0x168] sm:$0xff]
      %v1748 = vld [vmem:[%s1 + $0x170] sm:$0xff]
      %v1749 = vld [vmem:[%s1 + $0x178] sm:$0xff]
      %v1750 = vld [vmem:[%s1 + $0x180] sm:$0xff]
      %v1751 = vld [vmem:[%s1 + $0x188] sm:$0xff]
      %v1752 = vld [vmem:[%s1 + $0x190] sm:$0xff]
      %v1753 = vld [vmem:[%s1 + $0x198] sm:$0xff]
      %v1754 = vld [vmem:[%s1 + $0x1a0] sm:$0xff]
      %v1755 = vld [vmem:[%s1 + $0x1a8] sm:$0xff]
      %v1756 = vld [vmem:[%s1 + $0x1b0] sm:$0xff]
      %v1757 = vld [vmem:[%s1 + $0x1b8] sm:$0xff]
      %v1758 = vld [vmem:[%s1 + $0x1c0] sm:$0xff]
      %v1759 = vld [vmem:[%s1 + $0x1c8] sm:$0xff]
      %v1760 = vld [vmem:[%s1 + $0x1d0] sm:$0xff]
      %v1761 = vld [vmem:[%s1 + $0x1d8] sm:$0xff]
      %v1762 = vld [vmem:[%s1 + $0x1e0] sm:$0xff]
      %v1763 = vld [vmem:[%s1 + $0x1e8] sm:$0xff]
      %v1764 = vld [vmem:[%s1 + $0x1f0] sm:$0xff]
      %v1765 = vld [vmem:[%s1 + $0x1f8] sm:$0xff]
      %v1766 = vld [vmem:[%s1 + $0x200] sm:$0xff]
      %v1767 = vld [vmem:[%s1 + $0x208] sm:$0xff]
      %v1768 = vld [vmem:[%s1 + $0x210] sm:$0xff]
      %v1769 = vld [vmem:[%s1 + $0x218] sm:$0xff]
      %v1770 = vld [vmem:[%s1 + $0x220] sm:$0xff]
      %v1771 = vld [vmem:[%s1 + $0x228] sm:$0xff]
      %v1772 = vld [vmem:[%s1 + $0x230] sm:$0xff]
      %v1773 = vld [vmem:[%s1 + $0x238] sm:$0xff]
      %v1774 = vld [vmem:[#allocation2] sm:$0xff]
      %v1775 = vld [vmem:[#allocation2 + $0x8] sm:$0xff]
      %v1776 = vld [vmem:[#allocation2 + $0x10] sm:$0xff]
      %v1777 = vld [vmem:[#allocation2 + $0x18] sm:$0xff]
      %v1778 = vld [vmem:[#allocation2 + $0x20] sm:$0xff]
      %v1779 = vld [vmem:[#allocation2 + $0x28] sm:$0xff]
      %v1780 = vld [vmem:[#allocation2 + $0x30] sm:$0xff]
      %v1781 = vld [vmem:[#allocation2 + $0x38] sm:$0xff]
      %v1782 = vld [vmem:[#allocation2 + $0x40] sm:$0xff]
      %v1783 = vld [vmem:[#allocation2 + $0x48] sm:$0xff]
      %v1784 = vld [vmem:[#allocation2 + $0x50] sm:$0xff]
      %v1785 = vld [vmem:[#allocation2 + $0x58] sm:$0xff]
      %v1786 = vld [vmem:[#allocation2 + $0x60] sm:$0xff]
      %v1787 = vld [vmem:[#allocation2 + $0x68] sm:$0xff]
      %v1788 = vld [vmem:[#allocation2 + $0x70] sm:$0xff]
      %v1789 = vld [vmem:[#allocation2 + $0x78] sm:$0xff]
      %v1790 = vld [vmem:[#allocation2 + $0x80] sm:$0xff]
      %v1791 = vld [vmem:[#allocation2 + $0x88] sm:$0xff]
      %v1792 = vld [vmem:[#allocation2 + $0x90] sm:$0xff]
      %v1793 = vld [vmem:[#allocation2 + $0x98] sm:$0xff]
      %v1794 = vld [vmem:[#allocation2 + $0xa0] sm:$0xff]
      %v1795 = vld [vmem:[#allocation2 + $0xa8] sm:$0xff]
      %v1796 = vld [vmem:[#allocation2 + $0xb0] sm:$0xff]
      %v1797 = vld [vmem:[#allocation2 + $0xb8] sm:$0xff]
      %v1798 = vld [vmem:[#allocation2 + $0xc0] sm:$0xff]
      %v1799 = vld [vmem:[#allocation2 + $0xc8] sm:$0xff]
      %v1800 = vld [vmem:[#allocation2 + $0xd0] sm:$0xff]
      %v1801 = vld [vmem:[#allocation2 + $0xd8] sm:$0xff]
      %v1802 = vld [vmem:[#allocation2 + $0xe0] sm:$0xff]
      %v1803 = vld [vmem:[#allocation2 + $0xe8] sm:$0xff]
      %v1804 = vld [vmem:[#allocation2 + $0xf0] sm:$0xff]
      %v1805 = vld [vmem:[#allocation2 + $0xf8] sm:$0xff]
      %v1806 = vld [vmem:[#allocation2 + $0x100] sm:$0xff]
      %v1807 = vld [vmem:[#allocation2 + $0x108] sm:$0xff]
      %v1808 = vld [vmem:[#allocation2 + $0x110] sm:$0xff]
      %v1809 = vld [vmem:[#allocation2 + $0x118] sm:$0xff]
      %v1810 = vld [vmem:[#allocation2 + $0x120] sm:$0xff]
      %v1811 = vld [vmem:[#allocation2 + $0x128] sm:$0xff]
      %v1812 = vld [vmem:[#allocation2 + $0x130] sm:$0xff]
      %v1813 = vld [vmem:[#allocation2 + $0x138] sm:$0xff]
      %v1814 = vld [vmem:[#allocation2 + $0x140] sm:$0xff]
      %v1815 = vld [vmem:[#allocation2 + $0x148] sm:$0xff]
      %v1816 = vld [vmem:[#allocation2 + $0x150] sm:$0xff]
      %v1817 = vld [vmem:[#allocation2 + $0x158] sm:$0xff]
      %v1818 = vld [vmem:[#allocation2 + $0x160] sm:$0xff]
      %v1819 = vld [vmem:[#allocation2 + $0x168] sm:$0xff]
      %v1820 = vld [vmem:[#allocation2 + $0x170] sm:$0xff]
      %v1821 = vld [vmem:[#allocation2 + $0x178] sm:$0xff]
      %v1822 = vld [vmem:[#allocation2 + $0x180] sm:$0xff]
      %v1823 = vld [vmem:[#allocation2 + $0x188] sm:$0xff]
      %v1824 = vld [vmem:[#allocation2 + $0x190] sm:$0xff]
      %v1825 = vld [vmem:[#allocation2 + $0x198] sm:$0xff]
      %v1826 = vld [vmem:[#allocation2 + $0x1a0] sm:$0xff]
      %v1827 = vld [vmem:[#allocation2 + $0x1a8] sm:$0xff]
      %v1828 = vld [vmem:[#allocation2 + $0x1b0] sm:$0xff]
      %v1829 = vld [vmem:[#allocation2 + $0x1b8] sm:$0xff]
      %v1830 = vld [vmem:[#allocation2 + $0x1c0] sm:$0xff]
      %v1831 = vld [vmem:[#allocation2 + $0x1c8] sm:$0xff]
      %v1832 = vld [vmem:[#allocation2 + $0x1d0] sm:$0xff]
      %v1833 = vld [vmem:[#allocation2 + $0x1d8] sm:$0xff]
      %v1834 = vld [vmem:[#allocation2 + $0x1e0] sm:$0xff]
      %v1835 = vld [vmem:[#allocation2 + $0x1e8] sm:$0xff]
      %v1836 = vld [vmem:[#allocation2 + $0x1f0] sm:$0xff]
      %v1837 = vld [vmem:[#allocation2 + $0x1f8] sm:$0xff]
      %v1838 = vld [vmem:[#allocation2 + $0x200] sm:$0xff]
      %v1839 = vld [vmem:[#allocation2 + $0x208] sm:$0xff]
      %v1840 = vld [vmem:[#allocation2 + $0x210] sm:$0xff]
      %v1841 = vld [vmem:[#allocation2 + $0x218] sm:$0xff]
      %v1842 = vld [vmem:[#allocation2 + $0x220] sm:$0xff]
      %v1843 = vld [vmem:[#allocation2 + $0x228] sm:$0xff]
      %v1844 = vld [vmem:[#allocation2 + $0x230] sm:$0xff]
      %v1845 = vld [vmem:[#allocation2 + $0x238] sm:$0xff]
      %v1846 = vld [vmem:[#allocation2 + $0x240] sm:$0xff]
      %v1847 = vld [vmem:[#allocation2 + $0x248] sm:$0xff]
      %v1848 = vld [vmem:[#allocation2 + $0x250] sm:$0xff]
      %v1849 = vld [vmem:[#allocation2 + $0x258] sm:$0xff]
      %v1850 = vld [vmem:[#allocation2 + $0x260] sm:$0xff]
      %v1851 = vld [vmem:[#allocation2 + $0x268] sm:$0xff]
      %v1852 = vld [vmem:[#allocation2 + $0x270] sm:$0xff]
      %v1853 = vld [vmem:[#allocation2 + $0x278] sm:$0xff]
      %v1854 = vld [vmem:[#allocation2 + $0x280] sm:$0xff]
      %v1855 = vld [vmem:[#allocation2 + $0x288] sm:$0xff]
      %v1856 = vld [vmem:[#allocation2 + $0x290] sm:$0xff]
      %v1857 = vld [vmem:[#allocation2 + $0x298] sm:$0xff]
      %v1858 = vld [vmem:[#allocation2 + $0x2a0] sm:$0xff]
      %v1859 = vld [vmem:[#allocation2 + $0x2a8] sm:$0xff]
      %v1860 = vld [vmem:[#allocation2 + $0x2b0] sm:$0xff]
      %v1861 = vld [vmem:[#allocation2 + $0x2b8] sm:$0xff]
      %v1862 = vld [vmem:[#allocation2 + $0x2c0] sm:$0xff]
      %v1863 = vld [vmem:[#allocation2 + $0x2c8] sm:$0xff]
      %v1864 = vld [vmem:[#allocation2 + $0x2d0] sm:$0xff]
      %v1865 = vld [vmem:[#allocation2 + $0x2d8] sm:$0xff]
      %v1866 = vld [vmem:[#allocation2 + $0x2e0] sm:$0xff]
      %v1867 = vld [vmem:[#allocation2 + $0x2e8] sm:$0xff]
      %v1868 = vld [vmem:[#allocation2 + $0x2f0] sm:$0xff]
      %v1869 = vld [vmem:[#allocation2 + $0x2f8] sm:$0xff]
      %v1870 = vld [vmem:[#allocation2 + $0x300] sm:$0xff]
      %v1871 = vld [vmem:[#allocation2 + $0x308] sm:$0xff]
      %v1872 = vld [vmem:[#allocation2 + $0x310] sm:$0xff]
      %v1873 = vld [vmem:[#allocation2 + $0x318] sm:$0xff]
      %v1874 = vld [vmem:[#allocation2 + $0x320] sm:$0xff]
      %v1875 = vld [vmem:[#allocation2 + $0x328] sm:$0xff]
      %v1876 = vld [vmem:[#allocation2 + $0x330] sm:$0xff]
      %v1877 = vld [vmem:[#allocation2 + $0x338] sm:$0xff]
      %v1878 = vld [vmem:[#allocation2 + $0x340] sm:$0xff]
      %v1879 = vld [vmem:[#allocation2 + $0x348] sm:$0xff]
      %v1880 = vld [vmem:[#allocation2 + $0x350] sm:$0xff]
      %v1881 = vld [vmem:[#allocation2 + $0x358] sm:$0xff]
      %v1882 = vld [vmem:[#allocation2 + $0x360] sm:$0xff]
      %v1883 = vld [vmem:[#allocation2 + $0x368] sm:$0xff]
      %v1884 = vld [vmem:[#allocation2 + $0x370] sm:$0xff]
      %v1885 = vld [vmem:[#allocation2 + $0x378] sm:$0xff]
      %v1886 = vld [vmem:[#allocation2 + $0x380] sm:$0xff]
      %v1887 = vld [vmem:[#allocation2 + $0x388] sm:$0xff]
      %v1888 = vld [vmem:[#allocation2 + $0x390] sm:$0xff]
      %v1889 = vld [vmem:[#allocation2 + $0x398] sm:$0xff]
      %v1890 = vld [vmem:[#allocation2 + $0x3a0] sm:$0xff]
      %v1891 = vld [vmem:[#allocation2 + $0x3a8] sm:$0xff]
      %v1892 = vld [vmem:[#allocation2 + $0x3b0] sm:$0xff]
      %v1893 = vld [vmem:[#allocation2 + $0x3b8] sm:$0xff]
      %v1894 = vld [vmem:[#allocation2 + $0x3c0] sm:$0xff]
      %v1895 = vld [vmem:[#allocation2 + $0x3c8] sm:$0xff]
      %v1896 = vld [vmem:[#allocation2 + $0x3d0] sm:$0xff]
      %v1897 = vld [vmem:[#allocation2 + $0x3d8] sm:$0xff]
      %v1898 = vld [vmem:[#allocation2 + $0x3e0] sm:$0xff]
      %v1899 = vld [vmem:[#allocation2 + $0x3e8] sm:$0xff]
      %v1900 = vld [vmem:[#allocation2 + $0x3f0] sm:$0xff]
      %v1901 = vld [vmem:[#allocation2 + $0x3f8] sm:$0xff]
      %v1902 = vld [vmem:[#allocation2 + $0x400] sm:$0xff]
      %v1903 = vld [vmem:[#allocation2 + $0x408] sm:$0xff]
      %v1904 = vld [vmem:[#allocation2 + $0x410] sm:$0xff]
      %v1905 = vld [vmem:[#allocation2 + $0x418] sm:$0xff]
      %v1906 = vld [vmem:[#allocation2 + $0x420] sm:$0xff]
      %v1907 = vld [vmem:[#allocation2 + $0x428] sm:$0xff]
      %v1908 = vld [vmem:[#allocation2 + $0x430] sm:$0xff]
      %v1909 = vld [vmem:[#allocation2 + $0x438] sm:$0xff]
      %v1910 = vld [vmem:[#allocation2 + $0x440] sm:$0xff]
      %v1911 = vld [vmem:[#allocation2 + $0x448] sm:$0xff]
      %v1912 = vld [vmem:[#allocation2 + $0x450] sm:$0xff]
      %v1913 = vld [vmem:[#allocation2 + $0x458] sm:$0xff]
      %v1914 = vld [vmem:[#allocation2 + $0x460] sm:$0xff]
      %v1915 = vld [vmem:[#allocation2 + $0x468] sm:$0xff]
      %v1916 = vld [vmem:[#allocation2 + $0x470] sm:$0xff]
      %v1917 = vld [vmem:[#allocation2 + $0x478] sm:$0xff]
      %v1918 = vld [vmem:[#allocation2 + $0x480] sm:$0xff]
      %v1919 = vld [vmem:[#allocation2 + $0x488] sm:$0xff]
      %v1920 = vld [vmem:[#allocation2 + $0x490] sm:$0xff]
      %v1921 = vld [vmem:[#allocation2 + $0x498] sm:$0xff]
      %v1922 = vld [vmem:[#allocation2 + $0x4a0] sm:$0xff]
      %v1923 = vld [vmem:[#allocation2 + $0x4a8] sm:$0xff]
      %v1924 = vld [vmem:[#allocation2 + $0x4b0] sm:$0xff]
      %v1925 = vld [vmem:[#allocation2 + $0x4b8] sm:$0xff]
      %v1926 = vld [vmem:[#allocation2 + $0x4c0] sm:$0xff]
      %v1927 = vld [vmem:[#allocation2 + $0x4c8] sm:$0xff]
      %v1928 = vld [vmem:[#allocation2 + $0x4d0] sm:$0xff]
      %v1929 = vld [vmem:[#allocation2 + $0x4d8] sm:$0xff]
      %v1930 = vld [vmem:[#allocation2 + $0x4e0] sm:$0xff]
      %v1931 = vld [vmem:[#allocation2 + $0x4e8] sm:$0xff]
      %v1932 = vld [vmem:[#allocation2 + $0x4f0] sm:$0xff]
      %v1933 = vld [vmem:[#allocation2 + $0x4f8] sm:$0xff]
      %v1934 = vld [vmem:[#allocation2 + $0x500] sm:$0xff]
      %v1935 = vld [vmem:[#allocation2 + $0x508] sm:$0xff]
      %v1936 = vld [vmem:[#allocation2 + $0x510] sm:$0xff]
      %v1937 = vld [vmem:[#allocation2 + $0x518] sm:$0xff]
      %v1938 = vld [vmem:[#allocation2 + $0x520] sm:$0xff]
      %v1939 = vld [vmem:[#allocation2 + $0x528] sm:$0xff]
      %v1940 = vld [vmem:[#allocation2 + $0x530] sm:$0xff]
      %v1941 = vld [vmem:[#allocation2 + $0x538] sm:$0xff]
      %v1942 = vld [vmem:[#allocation2 + $0x540] sm:$0xff]
      %v1943 = vld [vmem:[#allocation2 + $0x548] sm:$0xff]
      %v1944 = vld [vmem:[#allocation2 + $0x550] sm:$0xff]
      %v1945 = vld [vmem:[#allocation2 + $0x558] sm:$0xff]
      %v1946 = vld [vmem:[#allocation2 + $0x560] sm:$0xff]
      %v1947 = vld [vmem:[#allocation2 + $0x568] sm:$0xff]
      %v1948 = vld [vmem:[#allocation2 + $0x570] sm:$0xff]
      %v1949 = vld [vmem:[#allocation2 + $0x578] sm:$0xff]
      %v1950 = vld [vmem:[#allocation2 + $0x580] sm:$0xff]
      %v1951 = vld [vmem:[#allocation2 + $0x588] sm:$0xff]
      %v1952 = vld [vmem:[#allocation2 + $0x590] sm:$0xff]
      %v1953 = vld [vmem:[#allocation2 + $0x598] sm:$0xff]
      %v1954 = vld [vmem:[#allocation2 + $0x5a0] sm:$0xff]
      %v1955 = vld [vmem:[#allocation2 + $0x5a8] sm:$0xff]
      %v1956 = vld [vmem:[#allocation2 + $0x5b0] sm:$0xff]
      %v1957 = vld [vmem:[#allocation2 + $0x5b8] sm:$0xff]
      %v1958 = vld [vmem:[#allocation2 + $0x5c0] sm:$0xff]
      %v1959 = vld [vmem:[#allocation2 + $0x5c8] sm:$0xff]
      %v1960 = vld [vmem:[#allocation2 + $0x5d0] sm:$0xff]
      %v1961 = vld [vmem:[#allocation2 + $0x5d8] sm:$0xff]
      %v1962 = vld [vmem:[#allocation2 + $0x5e0] sm:$0xff]
      %v1963 = vld [vmem:[#allocation2 + $0x5e8] sm:$0xff]
      %v1964 = vld [vmem:[#allocation2 + $0x5f0] sm:$0xff]
      %v1965 = vld [vmem:[#allocation2 + $0x5f8] sm:$0xff]
      %v1966 = vld [vmem:[#allocation2 + $0x600] sm:$0xff]
      %v1967 = vld [vmem:[#allocation2 + $0x608] sm:$0xff]
      %v1968 = vld [vmem:[#allocation2 + $0x610] sm:$0xff]
      %v1969 = vld [vmem:[#allocation2 + $0x618] sm:$0xff]
      %v1970 = vld [vmem:[#allocation2 + $0x620] sm:$0xff]
      %v1971 = vld [vmem:[#allocation2 + $0x628] sm:$0xff]
      %v1972 = vld [vmem:[#allocation2 + $0x630] sm:$0xff]
      %v1973 = vld [vmem:[#allocation2 + $0x638] sm:$0xff]
      %v1974 = vld [vmem:[#allocation2 + $0x640] sm:$0xff]
      %v1975 = vld [vmem:[#allocation2 + $0x648] sm:$0xff]
      %v1976 = vld [vmem:[#allocation2 + $0x650] sm:$0xff]
      %v1977 = vld [vmem:[#allocation2 + $0x658] sm:$0xff]
      %v1978 = vld [vmem:[#allocation2 + $0x660] sm:$0xff]
      %v1979 = vld [vmem:[#allocation2 + $0x668] sm:$0xff]
      %v1980 = vld [vmem:[#allocation2 + $0x670] sm:$0xff]
      %v1981 = vld [vmem:[#allocation2 + $0x678] sm:$0xff]
      %v1982 = vld [vmem:[#allocation2 + $0x680] sm:$0xff]
      %v1983 = vld [vmem:[#allocation2 + $0x688] sm:$0xff]
      %v1984 = vld [vmem:[#allocation2 + $0x690] sm:$0xff]
      %v1985 = vld [vmem:[#allocation2 + $0x698] sm:$0xff]
      %v1986 = vld [vmem:[#allocation2 + $0x6a0] sm:$0xff]
      %v1987 = vld [vmem:[#allocation2 + $0x6a8] sm:$0xff]
      %v1988 = vld [vmem:[#allocation2 + $0x6b0] sm:$0xff]
      %v1989 = vld [vmem:[#allocation2 + $0x6b8] sm:$0xff]
      %v1990 = vld [vmem:[#allocation2 + $0x6c0] sm:$0xff]
      %v1991 = vld [vmem:[#allocation2 + $0x6c8] sm:$0xff]
      %v1992 = vld [vmem:[#allocation2 + $0x6d0] sm:$0xff]
      %v1993 = vld [vmem:[#allocation2 + $0x6d8] sm:$0xff]
      %v1994 = vld [vmem:[#allocation2 + $0x6e0] sm:$0xff]
      %v1995 = vld [vmem:[#allocation2 + $0x6e8] sm:$0xff]
      %v1996 = vld [vmem:[#allocation2 + $0x6f0] sm:$0xff]
      %v1997 = vld [vmem:[#allocation2 + $0x6f8] sm:$0xff]
      %v1998 = vld [vmem:[#allocation2 + $0x700] sm:$0xff]
      %v1999 = vld [vmem:[#allocation2 + $0x708] sm:$0xff]
      %v2000 = vld [vmem:[#allocation2 + $0x710] sm:$0xff]
      %v2001 = vld [vmem:[#allocation2 + $0x718] sm:$0xff]
      %v2002 = vld [vmem:[#allocation2 + $0x720] sm:$0xff]
      %v2003 = vld [vmem:[#allocation2 + $0x728] sm:$0xff]
      %v2004 = vld [vmem:[#allocation2 + $0x730] sm:$0xff]
      %v2005 = vld [vmem:[#allocation2 + $0x738] sm:$0xff]
      %v2006 = vld [vmem:[#allocation2 + $0x740] sm:$0xff]
      %v2007 = vld [vmem:[#allocation2 + $0x748] sm:$0xff]
      %v2008 = vld [vmem:[#allocation2 + $0x750] sm:$0xff]
      %v2009 = vld [vmem:[#allocation2 + $0x758] sm:$0xff]
      %v2010 = vld [vmem:[#allocation2 + $0x760] sm:$0xff]
      %v2011 = vld [vmem:[#allocation2 + $0x768] sm:$0xff]
      %v2012 = vld [vmem:[#allocation2 + $0x770] sm:$0xff]
      %v2013 = vld [vmem:[#allocation2 + $0x778] sm:$0xff]
      %v2014 = vld [vmem:[#allocation2 + $0x780] sm:$0xff]
      %v2015 = vld [vmem:[#allocation2 + $0x788] sm:$0xff]
      %v2016 = vld [vmem:[#allocation2 + $0x790] sm:$0xff]
      %v2017 = vld [vmem:[#allocation2 + $0x798] sm:$0xff]
      %v2018 = vld [vmem:[#allocation2 + $0x7a0] sm:$0xff]
      %v2019 = vld [vmem:[#allocation2 + $0x7a8] sm:$0xff]
      %v2020 = vld [vmem:[#allocation2 + $0x7b0] sm:$0xff]
      %v2021 = vld [vmem:[#allocation2 + $0x7b8] sm:$0xff]
      %v2022 = vld [vmem:[#allocation2 + $0x7c0] sm:$0xff]
      %v2023 = vld [vmem:[#allocation2 + $0x7c8] sm:$0xff]
      %v2024 = vld [vmem:[#allocation2 + $0x7d0] sm:$0xff]
      %v2025 = vld [vmem:[#allocation2 + $0x7d8] sm:$0xff]
      %v2026 = vld [vmem:[#allocation2 + $0x7e0] sm:$0xff]
      %v2027 = vld [vmem:[#allocation2 + $0x7e8] sm:$0xff]
      %v2028 = vld [vmem:[#allocation2 + $0x7f0] sm:$0xff]
      %v2029 = vld [vmem:[#allocation2 + $0x7f8] sm:$0xff]
      %v2030 = vld [vmem:[#allocation2 + $0x800] sm:$0xff]
      %v2031 = vld [vmem:[#allocation2 + $0x808] sm:$0xff]
      %v2032 = vld [vmem:[#allocation2 + $0x810] sm:$0xff]
      %v2033 = vld [vmem:[#allocation2 + $0x818] sm:$0xff]
      %v2034 = vld [vmem:[#allocation2 + $0x820] sm:$0xff]
      %v2035 = vld [vmem:[#allocation2 + $0x828] sm:$0xff]
      %v2036 = vld [vmem:[#allocation2 + $0x830] sm:$0xff]
      %v2037 = vld [vmem:[#allocation2 + $0x838] sm:$0xff]
      %v2038 = vld [vmem:[#allocation2 + $0x840] sm:$0xff]
      %v2039 = vld [vmem:[#allocation2 + $0x848] sm:$0xff]
      %v2040 = vld [vmem:[#allocation2 + $0x850] sm:$0xff]
      %v2041 = vld [vmem:[#allocation2 + $0x858] sm:$0xff]
      %v2042 = vld [vmem:[#allocation2 + $0x860] sm:$0xff]
      %v2043 = vld [vmem:[#allocation2 + $0x868] sm:$0xff]
      %v2044 = vld [vmem:[#allocation2 + $0x870] sm:$0xff]
      %v2045 = vld [vmem:[#allocation2 + $0x878] sm:$0xff]
      %v2046 = vld [vmem:[#allocation2 + $0x880] sm:$0xff]
      %v2047 = vld [vmem:[#allocation2 + $0x888] sm:$0xff]
      %v2048 = vld [vmem:[#allocation2 + $0x890] sm:$0xff]
      %v2049 = vld [vmem:[#allocation2 + $0x898] sm:$0xff]
      %v2050 = vld [vmem:[#allocation2 + $0x8a0] sm:$0xff]
      %v2051 = vld [vmem:[#allocation2 + $0x8a8] sm:$0xff]
      %v2052 = vld [vmem:[#allocation2 + $0x8b0] sm:$0xff]
      %v2053 = vld [vmem:[#allocation2 + $0x8b8] sm:$0xff]
      %v2054 = vld [vmem:[#allocation2 + $0x8c0] sm:$0xff]
      %v2055 = vld [vmem:[#allocation2 + $0x8c8] sm:$0xff]
      %v2056 = vld [vmem:[#allocation2 + $0x8d0] sm:$0xff]
      %v2057 = vld [vmem:[#allocation2 + $0x8d8] sm:$0xff]
      %v2058 = vld [vmem:[#allocation2 + $0x8e0] sm:$0xff]
      %v2059 = vld [vmem:[#allocation2 + $0x8e8] sm:$0xff]
      %v2060 = vld [vmem:[#allocation2 + $0x8f0] sm:$0xff]
      %v2061 = vld [vmem:[#allocation2 + $0x8f8] sm:$0xff]
      %v2062 = vld [vmem:[%s2] sm:$0xff]
      %v2063 = vld [vmem:[%s2 + $0x8] sm:$0xff]
      %v2064 = vld [vmem:[%s2 + $0x10] sm:$0xff]
      %v2065 = vld [vmem:[%s2 + $0x18] sm:$0xff]
      %v2066 = vld [vmem:[%s2 + $0x20] sm:$0xff]
      %v2067 = vld [vmem:[%s2 + $0x28] sm:$0xff]
      %v2068 = vld [vmem:[%s2 + $0x30] sm:$0xff]
      %v2069 = vld [vmem:[%s2 + $0x38] sm:$0xff]
      %2071 = vset.pattern.permute.xlu0 0
      %2072 = vperm.xlu0 %2071, %v2062
      %v2073 = vpop.permute.xlu0 %2072
      %2076 = vset.pattern.permute.xlu0 0
      %2077 = vperm.xlu0 %2076, %v2063
      %v2078 = vpop.permute.xlu0 %2077
      %2081 = vset.pattern.permute.xlu0 0
      %2082 = vperm.xlu0 %2081, %v2064
      %v2083 = vpop.permute.xlu0 %2082
      %2086 = vset.pattern.permute.xlu0 0
      %2087 = vperm.xlu0 %2086, %v2065
      %v2088 = vpop.permute.xlu0 %2087
      %2091 = vset.pattern.permute.xlu0 0
      %2092 = vperm.xlu0 %2091, %v2066
      %v2093 = vpop.permute.xlu0 %2092
      %2096 = vset.pattern.permute.xlu0 0
      %2097 = vperm.xlu0 %2096, %v2067
      %v2098 = vpop.permute.xlu0 %2097
      %2101 = vset.pattern.permute.xlu0 0
      %2102 = vperm.xlu0 %2101, %v2068
      %v2103 = vpop.permute.xlu0 %2102
      %2106 = vset.pattern.permute.xlu0 0
      %2107 = vperm.xlu0 %2106, %v2069
      %v2108 = vpop.permute.xlu0 %2107
      %2110 = vmatprep.subr.mxu0 %v1805
      %2111 = vmatpush1.msra.mxu0 %v1804
      %2112 = vmatprep.subr.mxu0 %v1803
      %2113 = vmatpush1.msra.mxu0 %v1802
      %2114 = vmatprep.subr.mxu0 %v1801
      %2115 = vmatpush1.msra.mxu0 %v1800
      %2116 = vmatprep.subr.mxu0 %v1799
      %2117 = vmatpush1.msra.mxu0 %v1798
      %2118 = vmatprep.subr.mxu0 %v1797
      %2119 = vmatpush1.msra.mxu0 %v1796
      %2120 = vmatprep.subr.mxu0 %v1795
      %2121 = vmatpush1.msra.mxu0 %v1794
      %2122 = vmatprep.subr.mxu0 %v1793
      %2123 = vmatpush1.msra.mxu0 %v1792
      %2124 = vmatprep.subr.mxu0 %v1791
      %2125 = vmatpush1.msra.mxu0 %v1790
      %2126 = vmatprep.subr.mxu0 %v1789
      %2127 = vmatpush1.msra.mxu0 %v1788
      %2128 = vmatprep.subr.mxu0 %v1787
      %2129 = vmatpush1.msra.mxu0 %v1786
      %2130 = vmatprep.subr.mxu0 %v1785
      %2131 = vmatpush1.msra.mxu0 %v1784
      %2132 = vmatprep.subr.mxu0 %v1783
      %2133 = vmatpush1.msra.mxu0 %v1782
      %2134 = vmatprep.subr.mxu0 %v1781
      %2135 = vmatpush1.msra.mxu0 %v1780
      %2136 = vmatprep.subr.mxu0 %v1779
      %2137 = vmatpush1.msra.mxu0 %v1778
      %2138 = vmatprep.subr.mxu0 %v1777
      %2139 = vmatpush1.msra.mxu0 %v1776
      %2140 = vmatprep.subr.mxu0 %v1775
      %2141 = vmatpush1.msra.mxu0 %v1774
      %2142 = vmatprep.subr.mxu0 %v1837
      %2143 = vmatpush2.msra.mxu0 %v1836
      %2144 = vmatprep.subr.mxu0 %v1835
      %2145 = vmatpush2.msra.mxu0 %v1834
      %2146 = vmatprep.subr.mxu0 %v1833
      %2147 = vmatpush2.msra.mxu0 %v1832
      %2148 = vmatprep.subr.mxu0 %v1831
      %2149 = vmatpush2.msra.mxu0 %v1830
      %2150 = vmatprep.subr.mxu0 %v1829
      %2151 = vmatpush2.msra.mxu0 %v1828
      %2152 = vmatprep.subr.mxu0 %v1827
      %2153 = vmatpush2.msra.mxu0 %v1826
      %2154 = vmatprep.subr.mxu0 %v1825
      %2155 = vmatpush2.msra.mxu0 %v1824
      %2156 = vmatprep.subr.mxu0 %v1823
      %2157 = vmatpush2.msra.mxu0 %v1822
      %2158 = vmatprep.subr.mxu0 %v1821
      %2159 = vmatpush2.msra.mxu0 %v1820
      %2160 = vmatprep.subr.mxu0 %v1819
      %2161 = vmatpush2.msra.mxu0 %v1818
      %2162 = vmatprep.subr.mxu0 %v1817
      %2163 = vmatpush2.msra.mxu0 %v1816
      %2164 = vmatprep.subr.mxu0 %v1815
      %2165 = vmatpush2.msra.mxu0 %v1814
      %2166 = vmatprep.subr.mxu0 %v1813
      %2167 = vmatpush2.msra.mxu0 %v1812
      %2168 = vmatprep.subr.mxu0 %v1811
      %2169 = vmatpush2.msra.mxu0 %v1810
      %2170 = vmatprep.subr.mxu0 %v1809
      %2171 = vmatpush2.msra.mxu0 %v1808
      %2172 = vmatprep.subr.mxu0 %v1807
      %2173 = vmatpush2.msra.mxu0 %v1806
      %2174 = vmatprep.mubr.f32.mxu0 %v1703
      %2175 = vmatmul.mubr.f32.gmra.mxu0 %v1702
      %v2176 = vpop.f32.mrf.mxu0
      %v2177 = vadd.f32 %v2073, %v2176
      %v2178 = vpop.f32.mrf.mxu0
      %v2179 = vadd.f32 %v2073, %v2178
      %2180 = vmatprep.mubr.f32.mxu0 %v1712
      %2181 = vmatmul.mubr.f32.gmra.mxu0 %v1711
      %v2182 = vpop.f32.mrf.mxu0
      %v2183 = vadd.f32 %v2078, %v2182
      %v2184 = vpop.f32.mrf.mxu0
      %v2185 = vadd.f32 %v2078, %v2184
      %2186 = vmatprep.mubr.f32.mxu0 %v1721
      %2187 = vmatmul.mubr.f32.gmra.mxu0 %v1720
      %v2188 = vpop.f32.mrf.mxu0
      %v2189 = vadd.f32 %v2083, %v2188
      %v2190 = vpop.f32.mrf.mxu0
      %v2191 = vadd.f32 %v2083, %v2190
      %2192 = vmatprep.mubr.f32.mxu0 %v1730
      %2193 = vmatmul.mubr.f32.gmra.mxu0 %v1729
      %v2194 = vpop.f32.mrf.mxu0
      %v2195 = vadd.f32 %v2088, %v2194
      %v2196 = vpop.f32.mrf.mxu0
      %v2197 = vadd.f32 %v2088, %v2196
      %2198 = vmatprep.mubr.f32.mxu0 %v1739
      %2199 = vmatmul.mubr.f32.gmra.mxu0 %v1738
      %v2200 = vpop.f32.mrf.mxu0
      %v2201 = vadd.f32 %v2093, %v2200
      %v2202 = vpop.f32.mrf.mxu0
      %v2203 = vadd.f32 %v2093, %v2202
      %2204 = vmatprep.mubr.f32.mxu0 %v1748
      %2205 = vmatmul.mubr.f32.gmra.mxu0 %v1747
      %v2206 = vpop.f32.mrf.mxu0
      %v2207 = vadd.f32 %v2098, %v2206
      %v2208 = vpop.f32.mrf.mxu0
      %v2209 = vadd.f32 %v2098, %v2208
      %2210 = vmatprep.mubr.f32.mxu0 %v1757
      %2211 = vmatmul.mubr.f32.gmra.mxu0 %v1756
      %v2212 = vpop.f32.mrf.mxu0
      %v2213 = vadd.f32 %v2103, %v2212
      %v2214 = vpop.f32.mrf.mxu0
      %v2215 = vadd.f32 %v2103, %v2214
      %2216 = vmatprep.mubr.f32.mxu0 %v1766
      %2217 = vmatmul.mubr.f32.gmra.mxu0 %v1765
      %v2218 = vpop.f32.mrf.mxu0
      %v2219 = vadd.f32 %v2108, %v2218
      %v2220 = vpop.f32.mrf.mxu0
      %v2221 = vadd.f32 %v2108, %v2220
      %2222 = vdwg.mxu0
      %2223 = vmatprep.subr.mxu0 %v1869
      %2224 = vmatpush1.msra.mxu0 %v1868
      %2225 = vmatprep.subr.mxu0 %v1867
      %2226 = vmatpush1.msra.mxu0 %v1866
      %2227 = vmatprep.subr.mxu0 %v1865
      %2228 = vmatpush1.msra.mxu0 %v1864
      %2229 = vmatprep.subr.mxu0 %v1863
      %2230 = vmatpush1.msra.mxu0 %v1862
      %2231 = vmatprep.subr.mxu0 %v1861
      %2232 = vmatpush1.msra.mxu0 %v1860
      %2233 = vmatprep.subr.mxu0 %v1859
      %2234 = vmatpush1.msra.mxu0 %v1858
      %2235 = vmatprep.subr.mxu0 %v1857
      %2236 = vmatpush1.msra.mxu0 %v1856
      %2237 = vmatprep.subr.mxu0 %v1855
      %2238 = vmatpush1.msra.mxu0 %v1854
      %2239 = vmatprep.subr.mxu0 %v1853
      %2240 = vmatpush1.msra.mxu0 %v1852
      %2241 = vmatprep.subr.mxu0 %v1851
      %2242 = vmatpush1.msra.mxu0 %v1850
      %2243 = vmatprep.subr.mxu0 %v1849
      %2244 = vmatpush1.msra.mxu0 %v1848
      %2245 = vmatprep.subr.mxu0 %v1847
      %2246 = vmatpush1.msra.mxu0 %v1846
      %2247 = vmatprep.subr.mxu0 %v1845
      %2248 = vmatpush1.msra.mxu0 %v1844
      %2249 = vmatprep.subr.mxu0 %v1843
      %2250 = vmatpush1.msra.mxu0 %v1842
      %2251 = vmatprep.subr.mxu0 %v1841
      %2252 = vmatpush1.msra.mxu0 %v1840
      %2253 = vmatprep.subr.mxu0 %v1839
      %2254 = vmatpush1.msra.mxu0 %v1838
      %2255 = vmatprep.subr.mxu0 %v1901
      %2256 = vmatpush2.msra.mxu0 %v1900
      %2257 = vmatprep.subr.mxu0 %v1899
      %2258 = vmatpush2.msra.mxu0 %v1898
      %2259 = vmatprep.subr.mxu0 %v1897
      %2260 = vmatpush2.msra.mxu0 %v1896
      %2261 = vmatprep.subr.mxu0 %v1895
      %2262 = vmatpush2.msra.mxu0 %v1894
      %2263 = vmatprep.subr.mxu0 %v1893
      %2264 = vmatpush2.msra.mxu0 %v1892
      %2265 = vmatprep.subr.mxu0 %v1891
      %2266 = vmatpush2.msra.mxu0 %v1890
      %2267 = vmatprep.subr.mxu0 %v1889
      %2268 = vmatpush2.msra.mxu0 %v1888
      %2269 = vmatprep.subr.mxu0 %v1887
      %2270 = vmatpush2.msra.mxu0 %v1886
      %2271 = vmatprep.subr.mxu0 %v1885
      %2272 = vmatpush2.msra.mxu0 %v1884
      %2273 = vmatprep.subr.mxu0 %v1883
      %2274 = vmatpush2.msra.mxu0 %v1882
      %2275 = vmatprep.subr.mxu0 %v1881
      %2276 = vmatpush2.msra.mxu0 %v1880
      %2277 = vmatprep.subr.mxu0 %v1879
      %2278 = vmatpush2.msra.mxu0 %v1878
      %2279 = vmatprep.subr.mxu0 %v1877
      %2280 = vmatpush2.msra.mxu0 %v1876
      %2281 = vmatprep.subr.mxu0 %v1875
      %2282 = vmatpush2.msra.mxu0 %v1874
      %2283 = vmatprep.subr.mxu0 %v1873
      %2284 = vmatpush2.msra.mxu0 %v1872
      %2285 = vmatprep.subr.mxu0 %v1871
      %2286 = vmatpush2.msra.mxu0 %v1870
      %2287 = vmatprep.mubr.f32.mxu0 %v1705
      %2288 = vmatmul.mubr.f32.gmra.mxu0 %v1704
      %v2289 = vpop.f32.mrf.mxu0
      %v2290 = vadd.f32 %v2177, %v2289
      %v2291 = vpop.f32.mrf.mxu0
      %v2292 = vadd.f32 %v2179, %v2291
      %2293 = vmatprep.mubr.f32.mxu0 %v1714
      %2294 = vmatmul.mubr.f32.gmra.mxu0 %v1713
      %v2295 = vpop.f32.mrf.mxu0
      %v2296 = vadd.f32 %v2183, %v2295
      %v2297 = vpop.f32.mrf.mxu0
      %v2298 = vadd.f32 %v2185, %v2297
      %2299 = vmatprep.mubr.f32.mxu0 %v1723
      %2300 = vmatmul.mubr.f32.gmra.mxu0 %v1722
      %v2301 = vpop.f32.mrf.mxu0
      %v2302 = vadd.f32 %v2189, %v2301
      %v2303 = vpop.f32.mrf.mxu0
      %v2304 = vadd.f32 %v2191, %v2303
      %2305 = vmatprep.mubr.f32.mxu0 %v1732
      %2306 = vmatmul.mubr.f32.gmra.mxu0 %v1731
      %v2307 = vpop.f32.mrf.mxu0
      %v2308 = vadd.f32 %v2195, %v2307
      %v2309 = vpop.f32.mrf.mxu0
      %v2310 = vadd.f32 %v2197, %v2309
      %2311 = vmatprep.mubr.f32.mxu0 %v1741
      %2312 = vmatmul.mubr.f32.gmra.mxu0 %v1740
      %v2313 = vpop.f32.mrf.mxu0
      %v2314 = vadd.f32 %v2201, %v2313
      %v2315 = vpop.f32.mrf.mxu0
      %v2316 = vadd.f32 %v2203, %v2315
      %2317 = vmatprep.mubr.f32.mxu0 %v1750
      %2318 = vmatmul.mubr.f32.gmra.mxu0 %v1749
      %v2319 = vpop.f32.mrf.mxu0
      %v2320 = vadd.f32 %v2207, %v2319
      %v2321 = vpop.f32.mrf.mxu0
      %v2322 = vadd.f32 %v2209, %v2321
      %2323 = vmatprep.mubr.f32.mxu0 %v1759
      %2324 = vmatmul.mubr.f32.gmra.mxu0 %v1758
      %v2325 = vpop.f32.mrf.mxu0
      %v2326 = vadd.f32 %v2213, %v2325
      %v2327 = vpop.f32.mrf.mxu0
      %v2328 = vadd.f32 %v2215, %v2327
      %2329 = vmatprep.mubr.f32.mxu0 %v1768
      %2330 = vmatmul.mubr.f32.gmra.mxu0 %v1767
      %v2331 = vpop.f32.mrf.mxu0
      %v2332 = vadd.f32 %v2219, %v2331
      %v2333 = vpop.f32.mrf.mxu0
      %v2334 = vadd.f32 %v2221, %v2333
      %2335 = vdwg.mxu0
      %2336 = vmatprep.subr.mxu0 %v1933
      %2337 = vmatpush1.msra.mxu0 %v1932
      %2338 = vmatprep.subr.mxu0 %v1931
      %2339 = vmatpush1.msra.mxu0 %v1930
      %2340 = vmatprep.subr.mxu0 %v1929
      %2341 = vmatpush1.msra.mxu0 %v1928
      %2342 = vmatprep.subr.mxu0 %v1927
      %2343 = vmatpush1.msra.mxu0 %v1926
      %2344 = vmatprep.subr.mxu0 %v1925
      %2345 = vmatpush1.msra.mxu0 %v1924
      %2346 = vmatprep.subr.mxu0 %v1923
      %2347 = vmatpush1.msra.mxu0 %v1922
      %2348 = vmatprep.subr.mxu0 %v1921
      %2349 = vmatpush1.msra.mxu0 %v1920
      %2350 = vmatprep.subr.mxu0 %v1919
      %2351 = vmatpush1.msra.mxu0 %v1918
      %2352 = vmatprep.subr.mxu0 %v1917
      %2353 = vmatpush1.msra.mxu0 %v1916
      %2354 = vmatprep.subr.mxu0 %v1915
      %2355 = vmatpush1.msra.mxu0 %v1914
      %2356 = vmatprep.subr.mxu0 %v1913
      %2357 = vmatpush1.msra.mxu0 %v1912
      %2358 = vmatprep.subr.mxu0 %v1911
      %2359 = vmatpush1.msra.mxu0 %v1910
      %2360 = vmatprep.subr.mxu0 %v1909
      %2361 = vmatpush1.msra.mxu0 %v1908
      %2362 = vmatprep.subr.mxu0 %v1907
      %2363 = vmatpush1.msra.mxu0 %v1906
      %2364 = vmatprep.subr.mxu0 %v1905
      %2365 = vmatpush1.msra.mxu0 %v1904
      %2366 = vmatprep.subr.mxu0 %v1903
      %2367 = vmatpush1.msra.mxu0 %v1902
      %2368 = vmatprep.subr.mxu0 %v1965
      %2369 = vmatpush2.msra.mxu0 %v1964
      %2370 = vmatprep.subr.mxu0 %v1963
      %2371 = vmatpush2.msra.mxu0 %v1962
      %2372 = vmatprep.subr.mxu0 %v1961
      %2373 = vmatpush2.msra.mxu0 %v1960
      %2374 = vmatprep.subr.mxu0 %v1959
      %2375 = vmatpush2.msra.mxu0 %v1958
      %2376 = vmatprep.subr.mxu0 %v1957
      %2377 = vmatpush2.msra.mxu0 %v1956
      %2378 = vmatprep.subr.mxu0 %v1955
      %2379 = vmatpush2.msra.mxu0 %v1954
      %2380 = vmatprep.subr.mxu0 %v1953
      %2381 = vmatpush2.msra.mxu0 %v1952
      %2382 = vmatprep.subr.mxu0 %v1951
      %2383 = vmatpush2.msra.mxu0 %v1950
      %2384 = vmatprep.subr.mxu0 %v1949
      %2385 = vmatpush2.msra.mxu0 %v1948
      %2386 = vmatprep.subr.mxu0 %v1947
      %2387 = vmatpush2.msra.mxu0 %v1946
      %2388 = vmatprep.subr.mxu0 %v1945
      %2389 = vmatpush2.msra.mxu0 %v1944
      %2390 = vmatprep.subr.mxu0 %v1943
      %2391 = vmatpush2.msra.mxu0 %v1942
      %2392 = vmatprep.subr.mxu0 %v1941
      %2393 = vmatpush2.msra.mxu0 %v1940
      %2394 = vmatprep.subr.mxu0 %v1939
      %2395 = vmatpush2.msra.mxu0 %v1938
      %2396 = vmatprep.subr.mxu0 %v1937
      %2397 = vmatpush2.msra.mxu0 %v1936
      %2398 = vmatprep.subr.mxu0 %v1935
      %2399 = vmatpush2.msra.mxu0 %v1934
      %2400 = vmatprep.mubr.f32.mxu0 %v1707
      %2401 = vmatmul.mubr.f32.gmra.mxu0 %v1706
      %v2402 = vpop.f32.mrf.mxu0
      %v2403 = vadd.f32 %v2290, %v2402
      %v2404 = vpop.f32.mrf.mxu0
      %v2405 = vadd.f32 %v2292, %v2404
      %2406 = vmatprep.mubr.f32.mxu0 %v1716
      %2407 = vmatmul.mubr.f32.gmra.mxu0 %v1715
      %v2408 = vpop.f32.mrf.mxu0
      %v2409 = vadd.f32 %v2296, %v2408
      %v2410 = vpop.f32.mrf.mxu0
      %v2411 = vadd.f32 %v2298, %v2410
      %2412 = vmatprep.mubr.f32.mxu0 %v1725
      %2413 = vmatmul.mubr.f32.gmra.mxu0 %v1724
      %v2414 = vpop.f32.mrf.mxu0
      %v2415 = vadd.f32 %v2302, %v2414
      %v2416 = vpop.f32.mrf.mxu0
      %v2417 = vadd.f32 %v2304, %v2416
      %2418 = vmatprep.mubr.f32.mxu0 %v1734
      %2419 = vmatmul.mubr.f32.gmra.mxu0 %v1733
      %v2420 = vpop.f32.mrf.mxu0
      %v2421 = vadd.f32 %v2308, %v2420
      %v2422 = vpop.f32.mrf.mxu0
      %v2423 = vadd.f32 %v2310, %v2422
      %2424 = vmatprep.mubr.f32.mxu0 %v1743
      %2425 = vmatmul.mubr.f32.gmra.mxu0 %v1742
      %v2426 = vpop.f32.mrf.mxu0
      %v2427 = vadd.f32 %v2314, %v2426
      %v2428 = vpop.f32.mrf.mxu0
      %v2429 = vadd.f32 %v2316, %v2428
      %2430 = vmatprep.mubr.f32.mxu0 %v1752
      %2431 = vmatmul.mubr.f32.gmra.mxu0 %v1751
      %v2432 = vpop.f32.mrf.mxu0
      %v2433 = vadd.f32 %v2320, %v2432
      %v2434 = vpop.f32.mrf.mxu0
      %v2435 = vadd.f32 %v2322, %v2434
      %2436 = vmatprep.mubr.f32.mxu0 %v1761
      %2437 = vmatmul.mubr.f32.gmra.mxu0 %v1760
      %v2438 = vpop.f32.mrf.mxu0
      %v2439 = vadd.f32 %v2326, %v2438
      %v2440 = vpop.f32.mrf.mxu0
      %v2441 = vadd.f32 %v2328, %v2440
      %2442 = vmatprep.mubr.f32.mxu0 %v1770
      %2443 = vmatmul.mubr.f32.gmra.mxu0 %v1769
      %v2444 = vpop.f32.mrf.mxu0
      %v2445 = vadd.f32 %v2332, %v2444
      %v2446 = vpop.f32.mrf.mxu0
      %v2447 = vadd.f32 %v2334, %v2446
      %2448 = vdwg.mxu0
      %2449 = vmatprep.subr.mxu0 %v1997
      %2450 = vmatpush1.msra.mxu0 %v1996
      %2451 = vmatprep.subr.mxu0 %v1995
      %2452 = vmatpush1.msra.mxu0 %v1994
      %2453 = vmatprep.subr.mxu0 %v1993
      %2454 = vmatpush1.msra.mxu0 %v1992
      %2455 = vmatprep.subr.mxu0 %v1991
      %2456 = vmatpush1.msra.mxu0 %v1990
      %2457 = vmatprep.subr.mxu0 %v1989
      %2458 = vmatpush1.msra.mxu0 %v1988
      %2459 = vmatprep.subr.mxu0 %v1987
      %2460 = vmatpush1.msra.mxu0 %v1986
      %2461 = vmatprep.subr.mxu0 %v1985
      %2462 = vmatpush1.msra.mxu0 %v1984
      %2463 = vmatprep.subr.mxu0 %v1983
      %2464 = vmatpush1.msra.mxu0 %v1982
      %2465 = vmatprep.subr.mxu0 %v1981
      %2466 = vmatpush1.msra.mxu0 %v1980
      %2467 = vmatprep.subr.mxu0 %v1979
      %2468 = vmatpush1.msra.mxu0 %v1978
      %2469 = vmatprep.subr.mxu0 %v1977
      %2470 = vmatpush1.msra.mxu0 %v1976
      %2471 = vmatprep.subr.mxu0 %v1975
      %2472 = vmatpush1.msra.mxu0 %v1974
      %2473 = vmatprep.subr.mxu0 %v1973
      %2474 = vmatpush1.msra.mxu0 %v1972
      %2475 = vmatprep.subr.mxu0 %v1971
      %2476 = vmatpush1.msra.mxu0 %v1970
      %2477 = vmatprep.subr.mxu0 %v1969
      %2478 = vmatpush1.msra.mxu0 %v1968
      %2479 = vmatprep.subr.mxu0 %v1967
      %2480 = vmatpush1.msra.mxu0 %v1966
      %2481 = vmatprep.subr.mxu0 %v2029
      %2482 = vmatpush2.msra.mxu0 %v2028
      %2483 = vmatprep.subr.mxu0 %v2027
      %2484 = vmatpush2.msra.mxu0 %v2026
      %2485 = vmatprep.subr.mxu0 %v2025
      %2486 = vmatpush2.msra.mxu0 %v2024
      %2487 = vmatprep.subr.mxu0 %v2023
      %2488 = vmatpush2.msra.mxu0 %v2022
      %2489 = vmatprep.subr.mxu0 %v2021
      %2490 = vmatpush2.msra.mxu0 %v2020
      %2491 = vmatprep.subr.mxu0 %v2019
      %2492 = vmatpush2.msra.mxu0 %v2018
      %2493 = vmatprep.subr.mxu0 %v2017
      %2494 = vmatpush2.msra.mxu0 %v2016
      %2495 = vmatprep.subr.mxu0 %v2015
      %2496 = vmatpush2.msra.mxu0 %v2014
      %2497 = vmatprep.subr.mxu0 %v2013
      %2498 = vmatpush2.msra.mxu0 %v2012
      %2499 = vmatprep.subr.mxu0 %v2011
      %2500 = vmatpush2.msra.mxu0 %v2010
      %2501 = vmatprep.subr.mxu0 %v2009
      %2502 = vmatpush2.msra.mxu0 %v2008
      %2503 = vmatprep.subr.mxu0 %v2007
      %2504 = vmatpush2.msra.mxu0 %v2006
      %2505 = vmatprep.subr.mxu0 %v2005
      %2506 = vmatpush2.msra.mxu0 %v2004
      %2507 = vmatprep.subr.mxu0 %v2003
      %2508 = vmatpush2.msra.mxu0 %v2002
      %2509 = vmatprep.subr.mxu0 %v2001
      %2510 = vmatpush2.msra.mxu0 %v2000
      %2511 = vmatprep.subr.mxu0 %v1999
      %2512 = vmatpush2.msra.mxu0 %v1998
      %2513 = vmatprep.mubr.f32.mxu0 %v1709
      %2514 = vmatmul.mubr.f32.gmra.mxu0 %v1708
      %v2515 = vpop.f32.mrf.mxu0
      %v2516 = vadd.f32 %v2403, %v2515
      %v2517 = vpop.f32.mrf.mxu0
      %v2518 = vadd.f32 %v2405, %v2517
      %2519 = vmatprep.mubr.f32.mxu0 %v1718
      %2520 = vmatmul.mubr.f32.gmra.mxu0 %v1717
      %v2521 = vpop.f32.mrf.mxu0
      %v2522 = vadd.f32 %v2409, %v2521
      %v2523 = vpop.f32.mrf.mxu0
      %v2524 = vadd.f32 %v2411, %v2523
      %2525 = vmatprep.mubr.f32.mxu0 %v1727
      %2526 = vmatmul.mubr.f32.gmra.mxu0 %v1726
      %v2527 = vpop.f32.mrf.mxu0
      %v2528 = vadd.f32 %v2415, %v2527
      %v2529 = vpop.f32.mrf.mxu0
      %v2530 = vadd.f32 %v2417, %v2529
      %2531 = vmatprep.mubr.f32.mxu0 %v1736
      %2532 = vmatmul.mubr.f32.gmra.mxu0 %v1735
      %v2533 = vpop.f32.mrf.mxu0
      %v2534 = vadd.f32 %v2421, %v2533
      %v2535 = vpop.f32.mrf.mxu0
      %v2536 = vadd.f32 %v2423, %v2535
      %2537 = vmatprep.mubr.f32.mxu0 %v1745
      %2538 = vmatmul.mubr.f32.gmra.mxu0 %v1744
      %v2539 = vpop.f32.mrf.mxu0
      %v2540 = vadd.f32 %v2427, %v2539
      %v2541 = vpop.f32.mrf.mxu0
      %v2542 = vadd.f32 %v2429, %v2541
      %2543 = vmatprep.mubr.f32.mxu0 %v1754
      %2544 = vmatmul.mubr.f32.gmra.mxu0 %v1753
      %v2545 = vpop.f32.mrf.mxu0
      %v2546 = vadd.f32 %v2433, %v2545
      %v2547 = vpop.f32.mrf.mxu0
      %v2548 = vadd.f32 %v2435, %v2547
      %2549 = vmatprep.mubr.f32.mxu0 %v1763
      %2550 = vmatmul.mubr.f32.gmra.mxu0 %v1762
      %v2551 = vpop.f32.mrf.mxu0
      %v2552 = vadd.f32 %v2439, %v2551
      %v2553 = vpop.f32.mrf.mxu0
      %v2554 = vadd.f32 %v2441, %v2553
      %2555 = vmatprep.mubr.f32.mxu0 %v1772
      %2556 = vmatmul.mubr.f32.gmra.mxu0 %v1771
      %v2557 = vpop.f32.mrf.mxu0
      %v2558 = vadd.f32 %v2445, %v2557
      %v2559 = vpop.f32.mrf.mxu0
      %v2560 = vadd.f32 %v2447, %v2559
      %2561 = vdwg.mxu0
      %2562 = vmatprep.subr.mxu0 %v2061
      %2563 = vmatpush1.msra.mxu0 %v2060
      %2564 = vmatprep.subr.mxu0 %v2059
      %2565 = vmatpush1.msra.mxu0 %v2058
      %2566 = vmatprep.subr.mxu0 %v2057
      %2567 = vmatpush1.msra.mxu0 %v2056
      %2568 = vmatprep.subr.mxu0 %v2055
      %2569 = vmatpush1.msra.mxu0 %v2054
      %2570 = vmatprep.subr.mxu0 %v2053
      %2571 = vmatpush1.msra.mxu0 %v2052
      %2572 = vmatprep.subr.mxu0 %v2051
      %2573 = vmatpush1.msra.mxu0 %v2050
      %2574 = vmatprep.subr.mxu0 %v2049
      %2575 = vmatpush1.msra.mxu0 %v2048
      %2576 = vmatprep.subr.mxu0 %v2047
      %2577 = vmatpush1.msra.mxu0 %v2046
      %2578 = vmatprep.subr.mxu0 %v2045
      %2579 = vmatpush1.msra.mxu0 %v2044
      %2580 = vmatprep.subr.mxu0 %v2043
      %2581 = vmatpush1.msra.mxu0 %v2042
      %2582 = vmatprep.subr.mxu0 %v2041
      %2583 = vmatpush1.msra.mxu0 %v2040
      %2584 = vmatprep.subr.mxu0 %v2039
      %2585 = vmatpush1.msra.mxu0 %v2038
      %2586 = vmatprep.subr.mxu0 %v2037
      %2587 = vmatpush1.msra.mxu0 %v2036
      %2588 = vmatprep.subr.mxu0 %v2035
      %2589 = vmatpush1.msra.mxu0 %v2034
      %2590 = vmatprep.subr.mxu0 %v2033
      %2591 = vmatpush1.msra.mxu0 %v2032
      %2592 = vmatprep.subr.mxu0 %v2031
      %2593 = vmatpush1.msra.mxu0 %v2030
      %2594 = vmatprep.subr.mxu0 0.0
      %2595 = vmatpush2.msra.mxu0 0.0
      %2596 = vmatprep.subr.mxu0 0.0
      %2597 = vmatpush2.msra.mxu0 0.0
      %2598 = vmatprep.subr.mxu0 0.0
      %2599 = vmatpush2.msra.mxu0 0.0
      %2600 = vmatprep.subr.mxu0 0.0
      %2601 = vmatpush2.msra.mxu0 0.0
      %2602 = vmatprep.subr.mxu0 0.0
      %2603 = vmatpush2.msra.mxu0 0.0
      %2604 = vmatprep.subr.mxu0 0.0
      %2605 = vmatpush2.msra.mxu0 0.0
      %2606 = vmatprep.subr.mxu0 0.0
      %2607 = vmatpush2.msra.mxu0 0.0
      %2608 = vmatprep.subr.mxu0 0.0
      %2609 = vmatpush2.msra.mxu0 0.0
      %2610 = vmatprep.subr.mxu0 0.0
      %2611 = vmatpush2.msra.mxu0 0.0
      %2612 = vmatprep.subr.mxu0 0.0
      %2613 = vmatpush2.msra.mxu0 0.0
      %2614 = vmatprep.subr.mxu0 0.0
      %2615 = vmatpush2.msra.mxu0 0.0
      %2616 = vmatprep.subr.mxu0 0.0
      %2617 = vmatpush2.msra.mxu0 0.0
      %2618 = vmatprep.subr.mxu0 0.0
      %2619 = vmatpush2.msra.mxu0 0.0
      %2620 = vmatprep.subr.mxu0 0.0
      %2621 = vmatpush2.msra.mxu0 0.0
      %2622 = vmatprep.subr.mxu0 0.0
      %2623 = vmatpush2.msra.mxu0 0.0
      %2624 = vmatprep.subr.mxu0 0.0
      %2625 = vmatpush2.msra.mxu0 0.0
      %2626 = vmatprep.mubr.f32.mxu0 0.0
      %2627 = vmatmul.mubr.f32.gmra.mxu0 %v1710
      %v2628 = vpop.f32.mrf.mxu0
      %v2629 = vadd.f32 %v2516, %v2628
      %v2630 = vpop.f32.mrf.mxu0
      %v2631 = vadd.f32 %v2518, %v2630
      %2632 = vmatprep.mubr.f32.mxu0 0.0
      %2633 = vmatmul.mubr.f32.gmra.mxu0 %v1719
      %v2634 = vpop.f32.mrf.mxu0
      %v2635 = vadd.f32 %v2522, %v2634
      %v2636 = vpop.f32.mrf.mxu0
      %v2637 = vadd.f32 %v2524, %v2636
      %2638 = vmatprep.mubr.f32.mxu0 0.0
      %2639 = vmatmul.mubr.f32.gmra.mxu0 %v1728
      %v2640 = vpop.f32.mrf.mxu0
      %v2641 = vadd.f32 %v2528, %v2640
      %v2642 = vpop.f32.mrf.mxu0
      %v2643 = vadd.f32 %v2530, %v2642
      %2644 = vmatprep.mubr.f32.mxu0 0.0
      %2645 = vmatmul.mubr.f32.gmra.mxu0 %v1737
      %v2646 = vpop.f32.mrf.mxu0
      %v2647 = vadd.f32 %v2534, %v2646
      %v2648 = vpop.f32.mrf.mxu0
      %v2649 = vadd.f32 %v2536, %v2648
      %2650 = vmatprep.mubr.f32.mxu0 0.0
      %2651 = vmatmul.mubr.f32.gmra.mxu0 %v1746
      %v2652 = vpop.f32.mrf.mxu0
      %v2653 = vadd.f32 %v2540, %v2652
      %v2654 = vpop.f32.mrf.mxu0
      %v2655 = vadd.f32 %v2542, %v2654
      %2656 = vmatprep.mubr.f32.mxu0 0.0
      %2657 = vmatmul.mubr.f32.gmra.mxu0 %v1755
      %v2658 = vpop.f32.mrf.mxu0
      %v2659 = vadd.f32 %v2546, %v2658
      %v2660 = vpop.f32.mrf.mxu0
      %v2661 = vadd.f32 %v2548, %v2660
      %2662 = vmatprep.mubr.f32.mxu0 0.0
      %2663 = vmatmul.mubr.f32.gmra.mxu0 %v1764
      %v2664 = vpop.f32.mrf.mxu0
      %v2665 = vadd.f32 %v2552, %v2664
      %v2666 = vpop.f32.mrf.mxu0
      %v2667 = vadd.f32 %v2554, %v2666
      %2668 = vmatprep.mubr.f32.mxu0 0.0
      %2669 = vmatmul.mubr.f32.gmra.mxu0 %v1773
      %v2670 = vpop.f32.mrf.mxu0
      %v2671 = vadd.f32 %v2558, %v2670
      %v2672 = vpop.f32.mrf.mxu0
      %v2673 = vadd.f32 %v2560, %v2672
      %2674 = vdwg.mxu0
      %v2675 = vld [vmem:[%s239] sm:$0xff]
      %v2676 = vld [vmem:[%s239 + $0x8] sm:$0xff]
      %v2677 = vld [vmem:[%s239 + $0x10] sm:$0xff]
      %v2678 = vld [vmem:[%s239 + $0x18] sm:$0xff]
      %v2679 = vld [vmem:[%s239 + $0x20] sm:$0xff]
      %v2680 = vld [vmem:[%s239 + $0x28] sm:$0xff]
      %v2681 = vld [vmem:[%s239 + $0x30] sm:$0xff]
      %v2682 = vld [vmem:[%s239 + $0x38] sm:$0xff]
      %v2683 = vadd.f32 %v2629, 1.0
      %v2684 = vadd.f32 %v2631, 1.0
      %v2685 = vadd.f32 %v2635, 1.0
      %v2686 = vadd.f32 %v2637, 1.0
      %v2687 = vadd.f32 %v2641, 1.0
      %v2688 = vadd.f32 %v2643, 1.0
      %v2689 = vadd.f32 %v2647, 1.0
      %v2690 = vadd.f32 %v2649, 1.0
      %v2691 = vmul.f32 %v2675, %v2683
      %v2692 = vmul.f32 %v2676, %v2684
      %v2693 = vmul.f32 %v2677, %v2685
      %v2694 = vmul.f32 %v2678, %v2686
      %v2695 = vmul.f32 %v2679, %v2687
      %v2696 = vmul.f32 %v2680, %v2688
      %v2697 = vmul.f32 %v2681, %v2689
      %v2698 = vmul.f32 %v2682, %v2690
      %v2699 = vadd.f32 %v2691, %v2653
      %v2700 = vadd.f32 %v2692, %v2655
      %v2701 = vadd.f32 %v2693, %v2659
      %v2702 = vadd.f32 %v2694, %v2661
      %v2703 = vadd.f32 %v2695, %v2665
      %v2704 = vadd.f32 %v2696, %v2667
      %v2705 = vadd.f32 %v2697, %v2671
      %v2706 = vadd.f32 %v2698, %v2673
      %2707 = vst [vmem:[%s244] sm:$0xff] %v2699
      %2708 = vst [vmem:[%s244 + $0x8] sm:$0xff] %v2700
      %2709 = vst [vmem:[%s244 + $0x10] sm:$0xff] %v2701
      %2710 = vst [vmem:[%s244 + $0x18] sm:$0xff] %v2702
      %2711 = vst [vmem:[%s244 + $0x20] sm:$0xff] %v2703
      %2712 = vst [vmem:[%s244 + $0x28] sm:$0xff] %v2704
      %2713 = vst [vmem:[%s244 + $0x30] sm:$0xff] %v2705
      %2714 = vst [vmem:[%s244 + $0x38] sm:$0xff] %v2706
      %p2715 = scmp.lt.s32.totalorder %s16, 1
      %s2716 = scalar_select %p2715, %s16, 1
      %s2717 = smul.addr %s2716, 8
      %s2718 = smul.addr %s2717, 8
      %s2719 = scalar_lea.vmem %s5, %s2718
      // Predicated region
      $region41: #{spade_forward.5} parent=39 // pred_check
        %p2720 = pneg %p149
      $region42: #{spade_forward.5} parent=39 // pred_check_branch
        %2722 = sbr.rel (%p2720) target = $region44
      $region43: #{spade_forward.5} parent=39 // pred_region
        _
      $region44: #{spade_forward.5} parent=39 // pred_fallthru
        _
    $region40: #{spade_forward.5} parent=5 // pred_fallthru
      _
    %p2723 = scmp.le.s32.totalorder 2, %s11
    // Predicated region
    $region45: #{spade_forward.5} parent=5 // pred_check
      %p2724 = pneg %p2723
    $region46: #{spade_forward.5} parent=5 // pred_check_branch
      %2726 = sbr.rel (%p2724) target = $region48
    $region47: #{spade_forward.5} parent=5 // pred_region
      %s2727 = ssub.s32 %s11, 2
      // Predicated region
      $region49: #{spade_forward.5} parent=47 // pred_check
        %p2728 = pneg %p155
      $region50: #{spade_forward.5} parent=47 // pred_check_branch
        %2730 = sbr.rel (%p2728) target = $region52
      $region51: #{spade_forward.5} parent=47 // pred_region
        %p2731 = scmp.lt.s32.totalorder %s17, 1
        %s2732 = scalar_select %p2731, %s17, 1
        %s2733 = smul.addr %s2732, 8
        %s2734 = smul.addr %s2733, 8
        %s2735 = scalar_lea.vmem %s5, %s2734
      $region52: #{spade_forward.5} parent=47 // pred_fallthru
        _
    $region48: #{spade_forward.5} parent=5 // pred_fallthru
      _
  $region6: #{spade_forward.5} parent=0 // loop_footer
    %s15 = sadd.s32 1, %s11
  $region7: #{spade_forward.5} parent=0 // loop_footer_branch
    %10 = sbr.rel target = $region3
  $region8: #{spade_forward.5} parent=0 // loop_exit
    _

</llo_original>
